<compile_context>
chip_gen: v5e
topology: v5e:2x2
jax: 0.10.0
libtpu: 0.0.40
codegen_flags: <defaults>
</compile_context>

<pallas_src>
import jax
import jax.numpy as jnp
from jax.experimental import pallas as pl
from jax.experimental.pallas import tpu as pltpu

EPS = 1e-5


def bn_add_kernel(x_ref, res_ref, gamma_ref, beta_ref, o_ref):
    # x_ref, res_ref, o_ref: (tc, HW) tiles.
    # gamma_ref, beta_ref:   full (C, 1) resident blocks (same block every step).
    x = x_ref[...]                                      # f32
    tc = x.shape[0]
    inv_n = 1.0 / x.shape[-1]

    # Slice this grid step's (tc, 1) gamma/beta column out of the resident block.
    off = pl.multiple_of(pl.program_id(0) * tc, tc)
    gamma = gamma_ref[pl.ds(off, tc), :]                # (tc, 1)
    beta = beta_ref[pl.ds(off, tc), :]                  # (tc, 1)

    # Two-pass batch statistics per channel (biased variance over N*H*W).
    mean = jnp.sum(x, axis=-1, keepdims=True) * inv_n   # (tc, 1)
    d = x - mean
    var = jnp.sum(d * d, axis=-1, keepdims=True) * inv_n
    inv_std = jax.lax.rsqrt(var + EPS)

    # Fold affine params into per-channel scale/bias; per-element work is
    # just mul + add + add.
    scale = inv_std * gamma                             # (tc, 1)
    bias = beta - mean * scale                          # (tc, 1)

    o_ref[...] = x * scale + bias + res_ref[...]


def _default_channel_tile(C):
    """1 grid step on v5e/v6e (and unknown); 2 parallel steps on dual-TC v7x."""
    try:
        kind = jax.devices()[0].device_kind.lower()
    except Exception:
        kind = ""
    if "v7" in kind and C % 2 == 0 and (C // 2) % 8 == 0:
        return C // 2
    return C


def batchnorm_add(x, residual, gamma, beta, *, tc=None):
    """x, residual: (1, C, H, W) float32.  gamma, beta: (C,)."""
    N, C, H, W = x.shape
    assert residual.shape == x.shape
    assert N == 1, "free (C, HW) view of NCHW requires N == 1"
    HW = H * W

    if tc is None:
        tc = _default_channel_tile(C)
    assert C % tc == 0, "channel count must be a multiple of the channel tile"
    grid = C // tc

    # NCHW with N=1 -> (C, HW): a zero-cost reshape (no transpose).
    x2 = x.reshape(C, HW)
    r2 = residual.reshape(C, HW)
    g2 = gamma.reshape(C, 1).astype(jnp.float32)
    b2 = beta.reshape(C, 1).astype(jnp.float32)

    # Advisory cost hint: kernel is tiny and bandwidth-bound; help XLA overlap it.
    cost = pl.CostEstimate(
        flops=10 * C * HW,
        transcendentals=C,
        bytes_accessed=3 * C * HW * 4 + 2 * C * 4,
    )

    out2 = pl.pallas_call(
        bn_add_kernel,
        out_shape=jax.ShapeDtypeStruct((C, HW), x.dtype),
        grid_spec=pltpu.PrefetchScalarGridSpec(
            num_scalar_prefetch=0,
            grid=(grid,),
            in_specs=[
                pl.BlockSpec((tc, HW), lambda j: (j, 0)),
                pl.BlockSpec((tc, HW), lambda j: (j, 0)),
                # gamma/beta: one resident full-(C,1) block, never re-DMA'd.
                pl.BlockSpec((C, 1), lambda j: (0, 0)),
                pl.BlockSpec((C, 1), lambda j: (0, 0)),
            ],
            out_specs=pl.BlockSpec((tc, HW), lambda j: (j, 0)),
        ),
        compiler_params=pltpu.CompilerParams(
            dimension_semantics=("parallel",)),
        cost_estimate=cost,
    )(x2, r2, g2, b2)

    # (C, HW) -> NCHW (again a free reshape for N == 1).
    return out2.reshape(N, C, H, W)


def reference(x, residual, gamma, beta):
    # pure-JAX reference of training-mode BatchNorm2d + add
    mean = jnp.mean(x, axis=(0, 2, 3), keepdims=True)
    var = jnp.mean((x - mean) ** 2, axis=(0, 2, 3), keepdims=True)
    y = (x - mean) * jax.lax.rsqrt(var + EPS)
    y = y * gamma[None, :, None, None] + beta[None, :, None, None]
    return y + residual


if __name__ == "__main__":
    key = jax.random.PRNGKey(0)
    k1, k2, k3, k4 = jax.random.split(key, 4)

    N, C, H, W = 1, 1024, 14, 14  # shapes implied by the module
    x267 = jax.random.normal(k1, (N, C, H, W), dtype=jnp.float32)
    x260 = jax.random.normal(k2, (N, C, H, W), dtype=jnp.float32)

    # BatchNorm2d default init is weight=1, bias=0; use non-trivial values
    # (deterministic) to also exercise the affine fold in the kernel.
    gamma = 1.0 + 0.1 * jax.random.normal(k3, (C,), dtype=jnp.float32)
    beta = 0.1 * jax.random.normal(k4, (C,), dtype=jnp.float32)

    out = batchnorm_add(x267, x260, gamma, beta)
    out = jax.block_until_ready(out)

    ref = reference(x267, x260, gamma, beta)
    assert out.shape == (N, C, H, W)
    assert jnp.allclose(out, ref, atol=1e-4, rtol=1e-4), "mismatch vs reference"

    print("KERNEL_OK")
</pallas_src>

<mosaic_0001>
module attributes {stable_mosaic.version = 11 : i64} {
  func.func @bn_add_kernel(%arg0: i32, %arg1: memref<1024x196xf32, #tpu.memory_space<vmem>>, %arg2: memref<1024x196xf32, #tpu.memory_space<vmem>>, %arg3: memref<1024x1xf32, #tpu.memory_space<vmem>>, %arg4: memref<1024x1xf32, #tpu.memory_space<vmem>>, %arg5: memref<1024x196xf32, #tpu.memory_space<vmem>>) attributes {dimension_semantics = [#tpu.dimension_semantics<parallel>], iteration_bounds = array<i64: 1>, scalar_prefetch = 0 : i64, scratch_operands = 0 : i64, tpu.core_type = #tpu.core_type<tc>, window_params = [{transform_indices = @transform_0, window_bounds = array<i64: 1024, 196>}, {transform_indices = @transform_1, window_bounds = array<i64: 1024, 196>}, {pipeline_mode = #tpu.pipeline_mode<synchronous>, transform_indices = @transform_2, window_bounds = array<i64: 1024, 1>}, {pipeline_mode = #tpu.pipeline_mode<synchronous>, transform_indices = @transform_3, window_bounds = array<i64: 1024, 1>}, {transform_indices = @transform_4, window_bounds = array<i64: 1024, 196>}]} {
    %c0 = arith.constant 0 : index
    %c0_0 = arith.constant 0 : index
    %0 = vector.load %arg1[%c0, %c0_0] : memref<1024x196xf32, #tpu.memory_space<vmem>>, vector<1024x196xf32>
    %c1024_i32 = arith.constant 1024 : i32
    %1 = arith.muli %arg0, %c1024_i32 : i32
    %2 = tpu.assume_multiple %1, 1024 : i32
    %3 = arith.index_cast %2 : i32 to index
    %c0_1 = arith.constant 0 : index
    %4 = vector.load %arg3[%3, %c0_1] : memref<1024x1xf32, #tpu.memory_space<vmem>>, vector<1024x1xf32>
    %5 = arith.index_cast %2 : i32 to index
    %c0_2 = arith.constant 0 : index
    %6 = vector.load %arg4[%5, %c0_2] : memref<1024x1xf32, #tpu.memory_space<vmem>>, vector<1024x1xf32>
    %cst = arith.constant dense<0.000000e+00> : vector<1024xf32>
    %7 = vector.multi_reduction <add>, %0, %cst [1] : vector<1024x196xf32> to vector<1024xf32>
    %8 = vector.shape_cast %7 : vector<1024xf32> to vector<1024x1xf32>
    %cst_3 = arith.constant 0.00510204071 : f32
    %9 = vector.broadcast %cst_3 : f32 to vector<1024x1xf32>
    %10 = arith.mulf %8, %9 : vector<1024x1xf32>
    %11 = vector.broadcast %10 : vector<1024x1xf32> to vector<1024x196xf32>
    %12 = arith.subf %0, %11 : vector<1024x196xf32>
    %13 = arith.mulf %12, %12 : vector<1024x196xf32>
    %cst_4 = arith.constant dense<0.000000e+00> : vector<1024xf32>
    %14 = vector.multi_reduction <add>, %13, %cst_4 [1] : vector<1024x196xf32> to vector<1024xf32>
    %15 = vector.shape_cast %14 : vector<1024xf32> to vector<1024x1xf32>
    %cst_5 = arith.constant 0.00510204071 : f32
    %16 = vector.broadcast %cst_5 : f32 to vector<1024x1xf32>
    %17 = arith.mulf %15, %16 : vector<1024x1xf32>
    %cst_6 = arith.constant 9.99999974E-6 : f32
    %18 = vector.broadcast %cst_6 : f32 to vector<1024x1xf32>
    %19 = arith.addf %17, %18 : vector<1024x1xf32>
    %20 = math.rsqrt %19 : vector<1024x1xf32>
    %21 = arith.mulf %20, %4 : vector<1024x1xf32>
    %22 = arith.mulf %10, %21 : vector<1024x1xf32>
    %23 = arith.subf %6, %22 : vector<1024x1xf32>
    %24 = vector.broadcast %21 : vector<1024x1xf32> to vector<1024x196xf32>
    %25 = arith.mulf %0, %24 : vector<1024x196xf32>
    %26 = vector.broadcast %23 : vector<1024x1xf32> to vector<1024x196xf32>
    %27 = arith.addf %25, %26 : vector<1024x196xf32>
    %c0_7 = arith.constant 0 : index
    %c0_8 = arith.constant 0 : index
    %28 = vector.load %arg2[%c0_7, %c0_8] : memref<1024x196xf32, #tpu.memory_space<vmem>>, vector<1024x196xf32>
    %29 = arith.addf %27, %28 : vector<1024x196xf32>
    %c0_9 = arith.constant 0 : index
    %c0_10 = arith.constant 0 : index
    %30 = vector.load %arg5[%c0_9, %c0_10] : memref<1024x196xf32, #tpu.memory_space<vmem>>, vector<1024x196xf32>
    tpu.vector_store %arg5[%c0_9, %c0_10], %29 {strides = array<i32>} : memref<1024x196xf32, #tpu.memory_space<vmem>>, vector<1024x196xf32>,
    return
  }
  func.func @transform_0(%arg0: i32) -> (i32, i32) {
    %c0_i32 = arith.constant 0 : i32
    %c0_i32_0 = arith.constant 0 : i32
    return %arg0, %c0_i32 : i32, i32
  }
  func.func @transform_1(%arg0: i32) -> (i32, i32) {
    %c0_i32 = arith.constant 0 : i32
    %c0_i32_0 = arith.constant 0 : i32
    return %arg0, %c0_i32 : i32, i32
  }
  func.func @transform_2(%arg0: i32) -> (i32, i32) {
    %c0_i32 = arith.constant 0 : i32
    %c0_i32_0 = arith.constant 0 : i32
    %c0_i32_1 = arith.constant 0 : i32
    return %c0_i32, %c0_i32_0 : i32, i32
  }
  func.func @transform_3(%arg0: i32) -> (i32, i32) {
    %c0_i32 = arith.constant 0 : i32
    %c0_i32_0 = arith.constant 0 : i32
    %c0_i32_1 = arith.constant 0 : i32
    return %c0_i32, %c0_i32_0 : i32, i32
  }
  func.func @transform_4(%arg0: i32) -> (i32, i32) {
    %c0_i32 = arith.constant 0 : i32
    %c0_i32_0 = arith.constant 0 : i32
    return %arg0, %c0_i32 : i32, i32
  }
}

</mosaic_0001>

<llo_original>
// kernel: tpu_custom_call.1
$region0: #{tpu_custom_call.1}
  #allocation0 [shape = 'u32[]', space=smem, size = 0x4, offset = 0x4, fixed_abs, tag = 'smem constant byte address 0x4 - core index']
  #allocation1 [shape = 'u32[72,128]{1,0:T(1,128)}', space=vmem, size = 0x9000, scoped, tag = 'internal scratch']
  %s0 = inlined_call_operand.vmem [shape: f32[1024,196], index: 0, kind: input, shape index: {}]
  %s1 = inlined_call_operand.vmem [shape: f32[1024,196], index: 1, kind: input, shape index: {}]
  %s2 = inlined_call_operand.vmem [shape: f32[1024,1], index: 2, kind: input, shape index: {}]
  %s3 = inlined_call_operand.vmem [shape: f32[1024,1], index: 3, kind: input, shape index: {}]
  %s4 = inlined_call_operand.vmem [shape: f32[1024,196], index: 4, kind: output, shape index: {}]
  %s5 = sld [smem:[#allocation0]]
  $region26: #{tpu_custom_call.1} parent=0
    _
  %s7 = ssub.s32 1, %s5
  %s8 = scalar_select 0, %s7, %s5
  // Predicated region
  $region2: #{tpu_custom_call.1} parent=0 // pred_check
    _
  $region3: #{tpu_custom_call.1} parent=0 // pred_check_branch
    %10 = sbr.rel (0) target = $region5
  $region4: #{tpu_custom_call.1} parent=0 // pred_region
    _
  $region5: #{tpu_custom_call.1} parent=0 // pred_fallthru
    _
  // Predicated region
  $region6: #{tpu_custom_call.1} parent=0 // pred_check
    _
  $region7: #{tpu_custom_call.1} parent=0 // pred_check_branch
    %12 = sbr.rel (0) target = $region9
  $region8: #{tpu_custom_call.1} parent=0 // pred_region
    _
  $region9: #{tpu_custom_call.1} parent=0 // pred_fallthru
    _
  // Predicated region
  $region10: #{tpu_custom_call.1} parent=0 // pred_check
    _
  $region11: #{tpu_custom_call.1} parent=0 // pred_check_branch
    %14 = sbr.rel (0) target = $region13
  $region12: #{tpu_custom_call.1} parent=0 // pred_region
    _
  $region13: #{tpu_custom_call.1} parent=0 // pred_fallthru
    _
  // Predicated region
  $region14: #{tpu_custom_call.1} parent=0 // pred_check
    _
  $region15: #{tpu_custom_call.1} parent=0 // pred_check_branch
    %16 = sbr.rel (0) target = $region17
  $region16: #{tpu_custom_call.1} parent=0 // pred_region
    _
  $region17: #{tpu_custom_call.1} parent=0 // pred_fallthru
    _
  %v17 = vld [vmem:[%s0] sm:$0xff]
  %v18 = vld [vmem:[%s0 + $0x8] sm:$0xff]
  %v19 = vld [vmem:[%s0 + $0x10] sm:$0xff]
  %v20 = vld [vmem:[%s0 + $0x18] sm:$0xff]
  %v21 = vld [vmem:[%s0 + $0x20] sm:$0xff]
  %v22 = vld [vmem:[%s0 + $0x28] sm:$0xff]
  %v23 = vld [vmem:[%s0 + $0x30] sm:$0xff]
  %v24 = vld [vmem:[%s0 + $0x38] sm:$0xff]
  %v25 = vld [vmem:[%s0 + $0x40] sm:$0xff]
  %v26 = vld [vmem:[%s0 + $0x48] sm:$0xff]
  %v27 = vld [vmem:[%s0 + $0x50] sm:$0xff]
  %v28 = vld [vmem:[%s0 + $0x58] sm:$0xff]
  %v29 = vld [vmem:[%s0 + $0x60] sm:$0xff]
  %v30 = vld [vmem:[%s0 + $0x68] sm:$0xff]
  %v31 = vld [vmem:[%s0 + $0x70] sm:$0xff]
  %v32 = vld [vmem:[%s0 + $0x78] sm:$0xff]
  %v33 = vld [vmem:[%s0 + $0x80] sm:$0xff]
  %v34 = vld [vmem:[%s0 + $0x88] sm:$0xff]
  %v35 = vld [vmem:[%s0 + $0x90] sm:$0xff]
  %v36 = vld [vmem:[%s0 + $0x98] sm:$0xff]
  %v37 = vld [vmem:[%s0 + $0xa0] sm:$0xff]
  %v38 = vld [vmem:[%s0 + $0xa8] sm:$0xff]
  %v39 = vld [vmem:[%s0 + $0xb0] sm:$0xff]
  %v40 = vld [vmem:[%s0 + $0xb8] sm:$0xff]
  %v41 = vld [vmem:[%s0 + $0xc0] sm:$0xff]
  %v42 = vld [vmem:[%s0 + $0xc8] sm:$0xff]
  %v43 = vld [vmem:[%s0 + $0xd0] sm:$0xff]
  %v44 = vld [vmem:[%s0 + $0xd8] sm:$0xff]
  %v45 = vld [vmem:[%s0 + $0xe0] sm:$0xff]
  %v46 = vld [vmem:[%s0 + $0xe8] sm:$0xff]
  %v47 = vld [vmem:[%s0 + $0xf0] sm:$0xff]
  %v48 = vld [vmem:[%s0 + $0xf8] sm:$0xff]
  %v49 = vld [vmem:[%s0 + $0x100] sm:$0xff]
  %v50 = vld [vmem:[%s0 + $0x108] sm:$0xff]
  %v51 = vld [vmem:[%s0 + $0x110] sm:$0xff]
  %v52 = vld [vmem:[%s0 + $0x118] sm:$0xff]
  %v53 = vld [vmem:[%s0 + $0x120] sm:$0xff]
  %v54 = vld [vmem:[%s0 + $0x128] sm:$0xff]
  %v55 = vld [vmem:[%s0 + $0x130] sm:$0xff]
  %v56 = vld [vmem:[%s0 + $0x138] sm:$0xff]
  %v57 = vld [vmem:[%s0 + $0x140] sm:$0xff]
  %v58 = vld [vmem:[%s0 + $0x148] sm:$0xff]
  %v59 = vld [vmem:[%s0 + $0x150] sm:$0xff]
  %v60 = vld [vmem:[%s0 + $0x158] sm:$0xff]
  %v61 = vld [vmem:[%s0 + $0x160] sm:$0xff]
  %v62 = vld [vmem:[%s0 + $0x168] sm:$0xff]
  %v63 = vld [vmem:[%s0 + $0x170] sm:$0xff]
  %v64 = vld [vmem:[%s0 + $0x178] sm:$0xff]
  %v65 = vld [vmem:[%s0 + $0x180] sm:$0xff]
  %v66 = vld [vmem:[%s0 + $0x188] sm:$0xff]
  %v67 = vld [vmem:[%s0 + $0x190] sm:$0xff]
  %v68 = vld [vmem:[%s0 + $0x198] sm:$0xff]
  %v69 = vld [vmem:[%s0 + $0x1a0] sm:$0xff]
  %v70 = vld [vmem:[%s0 + $0x1a8] sm:$0xff]
  %v71 = vld [vmem:[%s0 + $0x1b0] sm:$0xff]
  %v72 = vld [vmem:[%s0 + $0x1b8] sm:$0xff]
  %v73 = vld [vmem:[%s0 + $0x1c0] sm:$0xff]
  %v74 = vld [vmem:[%s0 + $0x1c8] sm:$0xff]
  %v75 = vld [vmem:[%s0 + $0x1d0] sm:$0xff]
  %v76 = vld [vmem:[%s0 + $0x1d8] sm:$0xff]
  %v77 = vld [vmem:[%s0 + $0x1e0] sm:$0xff]
  %v78 = vld [vmem:[%s0 + $0x1e8] sm:$0xff]
  %v79 = vld [vmem:[%s0 + $0x1f0] sm:$0xff]
  %v80 = vld [vmem:[%s0 + $0x1f8] sm:$0xff]
  %v81 = vld [vmem:[%s0 + $0x200] sm:$0xff]
  %v82 = vld [vmem:[%s0 + $0x208] sm:$0xff]
  %v83 = vld [vmem:[%s0 + $0x210] sm:$0xff]
  %v84 = vld [vmem:[%s0 + $0x218] sm:$0xff]
  %v85 = vld [vmem:[%s0 + $0x220] sm:$0xff]
  %v86 = vld [vmem:[%s0 + $0x228] sm:$0xff]
  %v87 = vld [vmem:[%s0 + $0x230] sm:$0xff]
  %v88 = vld [vmem:[%s0 + $0x238] sm:$0xff]
  %v89 = vld [vmem:[%s0 + $0x240] sm:$0xff]
  %v90 = vld [vmem:[%s0 + $0x248] sm:$0xff]
  %v91 = vld [vmem:[%s0 + $0x250] sm:$0xff]
  %v92 = vld [vmem:[%s0 + $0x258] sm:$0xff]
  %v93 = vld [vmem:[%s0 + $0x260] sm:$0xff]
  %v94 = vld [vmem:[%s0 + $0x268] sm:$0xff]
  %v95 = vld [vmem:[%s0 + $0x270] sm:$0xff]
  %v96 = vld [vmem:[%s0 + $0x278] sm:$0xff]
  %v97 = vld [vmem:[%s0 + $0x280] sm:$0xff]
  %v98 = vld [vmem:[%s0 + $0x288] sm:$0xff]
  %v99 = vld [vmem:[%s0 + $0x290] sm:$0xff]
  %v100 = vld [vmem:[%s0 + $0x298] sm:$0xff]
  %v101 = vld [vmem:[%s0 + $0x2a0] sm:$0xff]
  %v102 = vld [vmem:[%s0 + $0x2a8] sm:$0xff]
  %v103 = vld [vmem:[%s0 + $0x2b0] sm:$0xff]
  %v104 = vld [vmem:[%s0 + $0x2b8] sm:$0xff]
  %v105 = vld [vmem:[%s0 + $0x2c0] sm:$0xff]
  %v106 = vld [vmem:[%s0 + $0x2c8] sm:$0xff]
  %v107 = vld [vmem:[%s0 + $0x2d0] sm:$0xff]
  %v108 = vld [vmem:[%s0 + $0x2d8] sm:$0xff]
  %v109 = vld [vmem:[%s0 + $0x2e0] sm:$0xff]
  %v110 = vld [vmem:[%s0 + $0x2e8] sm:$0xff]
  %v111 = vld [vmem:[%s0 + $0x2f0] sm:$0xff]
  %v112 = vld [vmem:[%s0 + $0x2f8] sm:$0xff]
  %v113 = vld [vmem:[%s0 + $0x300] sm:$0xff]
  %v114 = vld [vmem:[%s0 + $0x308] sm:$0xff]
  %v115 = vld [vmem:[%s0 + $0x310] sm:$0xff]
  %v116 = vld [vmem:[%s0 + $0x318] sm:$0xff]
  %v117 = vld [vmem:[%s0 + $0x320] sm:$0xff]
  %v118 = vld [vmem:[%s0 + $0x328] sm:$0xff]
  %v119 = vld [vmem:[%s0 + $0x330] sm:$0xff]
  %v120 = vld [vmem:[%s0 + $0x338] sm:$0xff]
  %v121 = vld [vmem:[%s0 + $0x340] sm:$0xff]
  %v122 = vld [vmem:[%s0 + $0x348] sm:$0xff]
  %v123 = vld [vmem:[%s0 + $0x350] sm:$0xff]
  %v124 = vld [vmem:[%s0 + $0x358] sm:$0xff]
  %v125 = vld [vmem:[%s0 + $0x360] sm:$0xff]
  %v126 = vld [vmem:[%s0 + $0x368] sm:$0xff]
  %v127 = vld [vmem:[%s0 + $0x370] sm:$0xff]
  %v128 = vld [vmem:[%s0 + $0x378] sm:$0xff]
  %v129 = vld [vmem:[%s0 + $0x380] sm:$0xff]
  %v130 = vld [vmem:[%s0 + $0x388] sm:$0xff]
  %v131 = vld [vmem:[%s0 + $0x390] sm:$0xff]
  %v132 = vld [vmem:[%s0 + $0x398] sm:$0xff]
  %v133 = vld [vmem:[%s0 + $0x3a0] sm:$0xff]
  %v134 = vld [vmem:[%s0 + $0x3a8] sm:$0xff]
  %v135 = vld [vmem:[%s0 + $0x3b0] sm:$0xff]
  %v136 = vld [vmem:[%s0 + $0x3b8] sm:$0xff]
  %v137 = vld [vmem:[%s0 + $0x3c0] sm:$0xff]
  %v138 = vld [vmem:[%s0 + $0x3c8] sm:$0xff]
  %v139 = vld [vmem:[%s0 + $0x3d0] sm:$0xff]
  %v140 = vld [vmem:[%s0 + $0x3d8] sm:$0xff]
  %v141 = vld [vmem:[%s0 + $0x3e0] sm:$0xff]
  %v142 = vld [vmem:[%s0 + $0x3e8] sm:$0xff]
  %v143 = vld [vmem:[%s0 + $0x3f0] sm:$0xff]
  %v144 = vld [vmem:[%s0 + $0x3f8] sm:$0xff]
  %v145 = vld [vmem:[%s0 + $0x400] sm:$0xff]
  %v146 = vld [vmem:[%s0 + $0x408] sm:$0xff]
  %v147 = vld [vmem:[%s0 + $0x410] sm:$0xff]
  %v148 = vld [vmem:[%s0 + $0x418] sm:$0xff]
  %v149 = vld [vmem:[%s0 + $0x420] sm:$0xff]
  %v150 = vld [vmem:[%s0 + $0x428] sm:$0xff]
  %v151 = vld [vmem:[%s0 + $0x430] sm:$0xff]
  %v152 = vld [vmem:[%s0 + $0x438] sm:$0xff]
  %v153 = vld [vmem:[%s0 + $0x440] sm:$0xff]
  %v154 = vld [vmem:[%s0 + $0x448] sm:$0xff]
  %v155 = vld [vmem:[%s0 + $0x450] sm:$0xff]
  %v156 = vld [vmem:[%s0 + $0x458] sm:$0xff]
  %v157 = vld [vmem:[%s0 + $0x460] sm:$0xff]
  %v158 = vld [vmem:[%s0 + $0x468] sm:$0xff]
  %v159 = vld [vmem:[%s0 + $0x470] sm:$0xff]
  %v160 = vld [vmem:[%s0 + $0x478] sm:$0xff]
  %v161 = vld [vmem:[%s0 + $0x480] sm:$0xff]
  %v162 = vld [vmem:[%s0 + $0x488] sm:$0xff]
  %v163 = vld [vmem:[%s0 + $0x490] sm:$0xff]
  %v164 = vld [vmem:[%s0 + $0x498] sm:$0xff]
  %v165 = vld [vmem:[%s0 + $0x4a0] sm:$0xff]
  %v166 = vld [vmem:[%s0 + $0x4a8] sm:$0xff]
  %v167 = vld [vmem:[%s0 + $0x4b0] sm:$0xff]
  %v168 = vld [vmem:[%s0 + $0x4b8] sm:$0xff]
  %v169 = vld [vmem:[%s0 + $0x4c0] sm:$0xff]
  %v170 = vld [vmem:[%s0 + $0x4c8] sm:$0xff]
  %v171 = vld [vmem:[%s0 + $0x4d0] sm:$0xff]
  %v172 = vld [vmem:[%s0 + $0x4d8] sm:$0xff]
  %v173 = vld [vmem:[%s0 + $0x4e0] sm:$0xff]
  %v174 = vld [vmem:[%s0 + $0x4e8] sm:$0xff]
  %v175 = vld [vmem:[%s0 + $0x4f0] sm:$0xff]
  %v176 = vld [vmem:[%s0 + $0x4f8] sm:$0xff]
  %v177 = vld [vmem:[%s0 + $0x500] sm:$0xff]
  %v178 = vld [vmem:[%s0 + $0x508] sm:$0xff]
  %v179 = vld [vmem:[%s0 + $0x510] sm:$0xff]
  %v180 = vld [vmem:[%s0 + $0x518] sm:$0xff]
  %v181 = vld [vmem:[%s0 + $0x520] sm:$0xff]
  %v182 = vld [vmem:[%s0 + $0x528] sm:$0xff]
  %v183 = vld [vmem:[%s0 + $0x530] sm:$0xff]
  %v184 = vld [vmem:[%s0 + $0x538] sm:$0xff]
  %v185 = vld [vmem:[%s0 + $0x540] sm:$0xff]
  %v186 = vld [vmem:[%s0 + $0x548] sm:$0xff]
  %v187 = vld [vmem:[%s0 + $0x550] sm:$0xff]
  %v188 = vld [vmem:[%s0 + $0x558] sm:$0xff]
  %v189 = vld [vmem:[%s0 + $0x560] sm:$0xff]
  %v190 = vld [vmem:[%s0 + $0x568] sm:$0xff]
  %v191 = vld [vmem:[%s0 + $0x570] sm:$0xff]
  %v192 = vld [vmem:[%s0 + $0x578] sm:$0xff]
  %v193 = vld [vmem:[%s0 + $0x580] sm:$0xff]
  %v194 = vld [vmem:[%s0 + $0x588] sm:$0xff]
  %v195 = vld [vmem:[%s0 + $0x590] sm:$0xff]
  %v196 = vld [vmem:[%s0 + $0x598] sm:$0xff]
  %v197 = vld [vmem:[%s0 + $0x5a0] sm:$0xff]
  %v198 = vld [vmem:[%s0 + $0x5a8] sm:$0xff]
  %v199 = vld [vmem:[%s0 + $0x5b0] sm:$0xff]
  %v200 = vld [vmem:[%s0 + $0x5b8] sm:$0xff]
  %v201 = vld [vmem:[%s0 + $0x5c0] sm:$0xff]
  %v202 = vld [vmem:[%s0 + $0x5c8] sm:$0xff]
  %v203 = vld [vmem:[%s0 + $0x5d0] sm:$0xff]
  %v204 = vld [vmem:[%s0 + $0x5d8] sm:$0xff]
  %v205 = vld [vmem:[%s0 + $0x5e0] sm:$0xff]
  %v206 = vld [vmem:[%s0 + $0x5e8] sm:$0xff]
  %v207 = vld [vmem:[%s0 + $0x5f0] sm:$0xff]
  %v208 = vld [vmem:[%s0 + $0x5f8] sm:$0xff]
  %v209 = vld [vmem:[%s0 + $0x600] sm:$0xff]
  %v210 = vld [vmem:[%s0 + $0x608] sm:$0xff]
  %v211 = vld [vmem:[%s0 + $0x610] sm:$0xff]
  %v212 = vld [vmem:[%s0 + $0x618] sm:$0xff]
  %v213 = vld [vmem:[%s0 + $0x620] sm:$0xff]
  %v214 = vld [vmem:[%s0 + $0x628] sm:$0xff]
  %v215 = vld [vmem:[%s0 + $0x630] sm:$0xff]
  %v216 = vld [vmem:[%s0 + $0x638] sm:$0xff]
  %v217 = vld [vmem:[%s0 + $0x640] sm:$0xff]
  %v218 = vld [vmem:[%s0 + $0x648] sm:$0xff]
  %v219 = vld [vmem:[%s0 + $0x650] sm:$0xff]
  %v220 = vld [vmem:[%s0 + $0x658] sm:$0xff]
  %v221 = vld [vmem:[%s0 + $0x660] sm:$0xff]
  %v222 = vld [vmem:[%s0 + $0x668] sm:$0xff]
  %v223 = vld [vmem:[%s0 + $0x670] sm:$0xff]
  %v224 = vld [vmem:[%s0 + $0x678] sm:$0xff]
  %v225 = vld [vmem:[%s0 + $0x680] sm:$0xff]
  %v226 = vld [vmem:[%s0 + $0x688] sm:$0xff]
  %v227 = vld [vmem:[%s0 + $0x690] sm:$0xff]
  %v228 = vld [vmem:[%s0 + $0x698] sm:$0xff]
  %v229 = vld [vmem:[%s0 + $0x6a0] sm:$0xff]
  %v230 = vld [vmem:[%s0 + $0x6a8] sm:$0xff]
  %v231 = vld [vmem:[%s0 + $0x6b0] sm:$0xff]
  %v232 = vld [vmem:[%s0 + $0x6b8] sm:$0xff]
  %v233 = vld [vmem:[%s0 + $0x6c0] sm:$0xff]
  %v234 = vld [vmem:[%s0 + $0x6c8] sm:$0xff]
  %v235 = vld [vmem:[%s0 + $0x6d0] sm:$0xff]
  %v236 = vld [vmem:[%s0 + $0x6d8] sm:$0xff]
  %v237 = vld [vmem:[%s0 + $0x6e0] sm:$0xff]
  %v238 = vld [vmem:[%s0 + $0x6e8] sm:$0xff]
  %v239 = vld [vmem:[%s0 + $0x6f0] sm:$0xff]
  %v240 = vld [vmem:[%s0 + $0x6f8] sm:$0xff]
  %v241 = vld [vmem:[%s0 + $0x700] sm:$0xff]
  %v242 = vld [vmem:[%s0 + $0x708] sm:$0xff]
  %v243 = vld [vmem:[%s0 + $0x710] sm:$0xff]
  %v244 = vld [vmem:[%s0 + $0x718] sm:$0xff]
  %v245 = vld [vmem:[%s0 + $0x720] sm:$0xff]
  %v246 = vld [vmem:[%s0 + $0x728] sm:$0xff]
  %v247 = vld [vmem:[%s0 + $0x730] sm:$0xff]
  %v248 = vld [vmem:[%s0 + $0x738] sm:$0xff]
  %v249 = vld [vmem:[%s0 + $0x740] sm:$0xff]
  %v250 = vld [vmem:[%s0 + $0x748] sm:$0xff]
  %v251 = vld [vmem:[%s0 + $0x750] sm:$0xff]
  %v252 = vld [vmem:[%s0 + $0x758] sm:$0xff]
  %v253 = vld [vmem:[%s0 + $0x760] sm:$0xff]
  %v254 = vld [vmem:[%s0 + $0x768] sm:$0xff]
  %v255 = vld [vmem:[%s0 + $0x770] sm:$0xff]
  %v256 = vld [vmem:[%s0 + $0x778] sm:$0xff]
  %v257 = vld [vmem:[%s0 + $0x780] sm:$0xff]
  %v258 = vld [vmem:[%s0 + $0x788] sm:$0xff]
  %v259 = vld [vmem:[%s0 + $0x790] sm:$0xff]
  %v260 = vld [vmem:[%s0 + $0x798] sm:$0xff]
  %v261 = vld [vmem:[%s0 + $0x7a0] sm:$0xff]
  %v262 = vld [vmem:[%s0 + $0x7a8] sm:$0xff]
  %v263 = vld [vmem:[%s0 + $0x7b0] sm:$0xff]
  %v264 = vld [vmem:[%s0 + $0x7b8] sm:$0xff]
  %v265 = vld [vmem:[%s0 + $0x7c0] sm:$0xff]
  %v266 = vld [vmem:[%s0 + $0x7c8] sm:$0xff]
  %v267 = vld [vmem:[%s0 + $0x7d0] sm:$0xff]
  %v268 = vld [vmem:[%s0 + $0x7d8] sm:$0xff]
  %v269 = vld [vmem:[%s0 + $0x7e0] sm:$0xff]
  %v270 = vld [vmem:[%s0 + $0x7e8] sm:$0xff]
  %v271 = vld [vmem:[%s0 + $0x7f0] sm:$0xff]
  %v272 = vld [vmem:[%s0 + $0x7f8] sm:$0xff]
  %s273 = smul.u32 0, 1024
  %s274 = scalar_lea.vmem %s2, %s273
  %v275 = vld [vmem:[%s274] sm:$0xff]
  %v276 = vld [vmem:[%s274 + $0x8] sm:$0xff]
  %v277 = vld [vmem:[%s274 + $0x10] sm:$0xff]
  %v278 = vld [vmem:[%s274 + $0x18] sm:$0xff]
  %v279 = vld [vmem:[%s274 + $0x20] sm:$0xff]
  %v280 = vld [vmem:[%s274 + $0x28] sm:$0xff]
  %v281 = vld [vmem:[%s274 + $0x30] sm:$0xff]
  %v282 = vld [vmem:[%s274 + $0x38] sm:$0xff]
  %v283 = vld [vmem:[%s274 + $0x40] sm:$0xff]
  %v284 = vld [vmem:[%s274 + $0x48] sm:$0xff]
  %v285 = vld [vmem:[%s274 + $0x50] sm:$0xff]
  %v286 = vld [vmem:[%s274 + $0x58] sm:$0xff]
  %v287 = vld [vmem:[%s274 + $0x60] sm:$0xff]
  %v288 = vld [vmem:[%s274 + $0x68] sm:$0xff]
  %v289 = vld [vmem:[%s274 + $0x70] sm:$0xff]
  %v290 = vld [vmem:[%s274 + $0x78] sm:$0xff]
  %v291 = vld [vmem:[%s274 + $0x80] sm:$0xff]
  %v292 = vld [vmem:[%s274 + $0x88] sm:$0xff]
  %v293 = vld [vmem:[%s274 + $0x90] sm:$0xff]
  %v294 = vld [vmem:[%s274 + $0x98] sm:$0xff]
  %v295 = vld [vmem:[%s274 + $0xa0] sm:$0xff]
  %v296 = vld [vmem:[%s274 + $0xa8] sm:$0xff]
  %v297 = vld [vmem:[%s274 + $0xb0] sm:$0xff]
  %v298 = vld [vmem:[%s274 + $0xb8] sm:$0xff]
  %v299 = vld [vmem:[%s274 + $0xc0] sm:$0xff]
  %v300 = vld [vmem:[%s274 + $0xc8] sm:$0xff]
  %v301 = vld [vmem:[%s274 + $0xd0] sm:$0xff]
  %v302 = vld [vmem:[%s274 + $0xd8] sm:$0xff]
  %v303 = vld [vmem:[%s274 + $0xe0] sm:$0xff]
  %v304 = vld [vmem:[%s274 + $0xe8] sm:$0xff]
  %v305 = vld [vmem:[%s274 + $0xf0] sm:$0xff]
  %v306 = vld [vmem:[%s274 + $0xf8] sm:$0xff]
  %v307 = vld [vmem:[%s274 + $0x100] sm:$0xff]
  %v308 = vld [vmem:[%s274 + $0x108] sm:$0xff]
  %v309 = vld [vmem:[%s274 + $0x110] sm:$0xff]
  %v310 = vld [vmem:[%s274 + $0x118] sm:$0xff]
  %v311 = vld [vmem:[%s274 + $0x120] sm:$0xff]
  %v312 = vld [vmem:[%s274 + $0x128] sm:$0xff]
  %v313 = vld [vmem:[%s274 + $0x130] sm:$0xff]
  %v314 = vld [vmem:[%s274 + $0x138] sm:$0xff]
  %v315 = vld [vmem:[%s274 + $0x140] sm:$0xff]
  %v316 = vld [vmem:[%s274 + $0x148] sm:$0xff]
  %v317 = vld [vmem:[%s274 + $0x150] sm:$0xff]
  %v318 = vld [vmem:[%s274 + $0x158] sm:$0xff]
  %v319 = vld [vmem:[%s274 + $0x160] sm:$0xff]
  %v320 = vld [vmem:[%s274 + $0x168] sm:$0xff]
  %v321 = vld [vmem:[%s274 + $0x170] sm:$0xff]
  %v322 = vld [vmem:[%s274 + $0x178] sm:$0xff]
  %v323 = vld [vmem:[%s274 + $0x180] sm:$0xff]
  %v324 = vld [vmem:[%s274 + $0x188] sm:$0xff]
  %v325 = vld [vmem:[%s274 + $0x190] sm:$0xff]
  %v326 = vld [vmem:[%s274 + $0x198] sm:$0xff]
  %v327 = vld [vmem:[%s274 + $0x1a0] sm:$0xff]
  %v328 = vld [vmem:[%s274 + $0x1a8] sm:$0xff]
  %v329 = vld [vmem:[%s274 + $0x1b0] sm:$0xff]
  %v330 = vld [vmem:[%s274 + $0x1b8] sm:$0xff]
  %v331 = vld [vmem:[%s274 + $0x1c0] sm:$0xff]
  %v332 = vld [vmem:[%s274 + $0x1c8] sm:$0xff]
  %v333 = vld [vmem:[%s274 + $0x1d0] sm:$0xff]
  %v334 = vld [vmem:[%s274 + $0x1d8] sm:$0xff]
  %v335 = vld [vmem:[%s274 + $0x1e0] sm:$0xff]
  %v336 = vld [vmem:[%s274 + $0x1e8] sm:$0xff]
  %v337 = vld [vmem:[%s274 + $0x1f0] sm:$0xff]
  %v338 = vld [vmem:[%s274 + $0x1f8] sm:$0xff]
  %v339 = vld [vmem:[%s274 + $0x200] sm:$0xff]
  %v340 = vld [vmem:[%s274 + $0x208] sm:$0xff]
  %v341 = vld [vmem:[%s274 + $0x210] sm:$0xff]
  %v342 = vld [vmem:[%s274 + $0x218] sm:$0xff]
  %v343 = vld [vmem:[%s274 + $0x220] sm:$0xff]
  %v344 = vld [vmem:[%s274 + $0x228] sm:$0xff]
  %v345 = vld [vmem:[%s274 + $0x230] sm:$0xff]
  %v346 = vld [vmem:[%s274 + $0x238] sm:$0xff]
  %v347 = vld [vmem:[%s274 + $0x240] sm:$0xff]
  %v348 = vld [vmem:[%s274 + $0x248] sm:$0xff]
  %v349 = vld [vmem:[%s274 + $0x250] sm:$0xff]
  %v350 = vld [vmem:[%s274 + $0x258] sm:$0xff]
  %v351 = vld [vmem:[%s274 + $0x260] sm:$0xff]
  %v352 = vld [vmem:[%s274 + $0x268] sm:$0xff]
  %v353 = vld [vmem:[%s274 + $0x270] sm:$0xff]
  %v354 = vld [vmem:[%s274 + $0x278] sm:$0xff]
  %v355 = vld [vmem:[%s274 + $0x280] sm:$0xff]
  %v356 = vld [vmem:[%s274 + $0x288] sm:$0xff]
  %v357 = vld [vmem:[%s274 + $0x290] sm:$0xff]
  %v358 = vld [vmem:[%s274 + $0x298] sm:$0xff]
  %v359 = vld [vmem:[%s274 + $0x2a0] sm:$0xff]
  %v360 = vld [vmem:[%s274 + $0x2a8] sm:$0xff]
  %v361 = vld [vmem:[%s274 + $0x2b0] sm:$0xff]
  %v362 = vld [vmem:[%s274 + $0x2b8] sm:$0xff]
  %v363 = vld [vmem:[%s274 + $0x2c0] sm:$0xff]
  %v364 = vld [vmem:[%s274 + $0x2c8] sm:$0xff]
  %v365 = vld [vmem:[%s274 + $0x2d0] sm:$0xff]
  %v366 = vld [vmem:[%s274 + $0x2d8] sm:$0xff]
  %v367 = vld [vmem:[%s274 + $0x2e0] sm:$0xff]
  %v368 = vld [vmem:[%s274 + $0x2e8] sm:$0xff]
  %v369 = vld [vmem:[%s274 + $0x2f0] sm:$0xff]
  %v370 = vld [vmem:[%s274 + $0x2f8] sm:$0xff]
  %v371 = vld [vmem:[%s274 + $0x300] sm:$0xff]
  %v372 = vld [vmem:[%s274 + $0x308] sm:$0xff]
  %v373 = vld [vmem:[%s274 + $0x310] sm:$0xff]
  %v374 = vld [vmem:[%s274 + $0x318] sm:$0xff]
  %v375 = vld [vmem:[%s274 + $0x320] sm:$0xff]
  %v376 = vld [vmem:[%s274 + $0x328] sm:$0xff]
  %v377 = vld [vmem:[%s274 + $0x330] sm:$0xff]
  %v378 = vld [vmem:[%s274 + $0x338] sm:$0xff]
  %v379 = vld [vmem:[%s274 + $0x340] sm:$0xff]
  %v380 = vld [vmem:[%s274 + $0x348] sm:$0xff]
  %v381 = vld [vmem:[%s274 + $0x350] sm:$0xff]
  %v382 = vld [vmem:[%s274 + $0x358] sm:$0xff]
  %v383 = vld [vmem:[%s274 + $0x360] sm:$0xff]
  %v384 = vld [vmem:[%s274 + $0x368] sm:$0xff]
  %v385 = vld [vmem:[%s274 + $0x370] sm:$0xff]
  %v386 = vld [vmem:[%s274 + $0x378] sm:$0xff]
  %v387 = vld [vmem:[%s274 + $0x380] sm:$0xff]
  %v388 = vld [vmem:[%s274 + $0x388] sm:$0xff]
  %v389 = vld [vmem:[%s274 + $0x390] sm:$0xff]
  %v390 = vld [vmem:[%s274 + $0x398] sm:$0xff]
  %v391 = vld [vmem:[%s274 + $0x3a0] sm:$0xff]
  %v392 = vld [vmem:[%s274 + $0x3a8] sm:$0xff]
  %v393 = vld [vmem:[%s274 + $0x3b0] sm:$0xff]
  %v394 = vld [vmem:[%s274 + $0x3b8] sm:$0xff]
  %v395 = vld [vmem:[%s274 + $0x3c0] sm:$0xff]
  %v396 = vld [vmem:[%s274 + $0x3c8] sm:$0xff]
  %v397 = vld [vmem:[%s274 + $0x3d0] sm:$0xff]
  %v398 = vld [vmem:[%s274 + $0x3d8] sm:$0xff]
  %v399 = vld [vmem:[%s274 + $0x3e0] sm:$0xff]
  %v400 = vld [vmem:[%s274 + $0x3e8] sm:$0xff]
  %v401 = vld [vmem:[%s274 + $0x3f0] sm:$0xff]
  %v402 = vld [vmem:[%s274 + $0x3f8] sm:$0xff]
  %s403 = scalar_lea.vmem %s3, %s273
  %v404 = vld [vmem:[%s403] sm:$0xff]
  %v405 = vld [vmem:[%s403 + $0x8] sm:$0xff]
  %v406 = vld [vmem:[%s403 + $0x10] sm:$0xff]
  %v407 = vld [vmem:[%s403 + $0x18] sm:$0xff]
  %v408 = vld [vmem:[%s403 + $0x20] sm:$0xff]
  %v409 = vld [vmem:[%s403 + $0x28] sm:$0xff]
  %v410 = vld [vmem:[%s403 + $0x30] sm:$0xff]
  %v411 = vld [vmem:[%s403 + $0x38] sm:$0xff]
  %v412 = vld [vmem:[%s403 + $0x40] sm:$0xff]
  %v413 = vld [vmem:[%s403 + $0x48] sm:$0xff]
  %v414 = vld [vmem:[%s403 + $0x50] sm:$0xff]
  %v415 = vld [vmem:[%s403 + $0x58] sm:$0xff]
  %v416 = vld [vmem:[%s403 + $0x60] sm:$0xff]
  %v417 = vld [vmem:[%s403 + $0x68] sm:$0xff]
  %v418 = vld [vmem:[%s403 + $0x70] sm:$0xff]
  %v419 = vld [vmem:[%s403 + $0x78] sm:$0xff]
  %v420 = vld [vmem:[%s403 + $0x80] sm:$0xff]
  %v421 = vld [vmem:[%s403 + $0x88] sm:$0xff]
  %v422 = vld [vmem:[%s403 + $0x90] sm:$0xff]
  %v423 = vld [vmem:[%s403 + $0x98] sm:$0xff]
  %v424 = vld [vmem:[%s403 + $0xa0] sm:$0xff]
  %v425 = vld [vmem:[%s403 + $0xa8] sm:$0xff]
  %v426 = vld [vmem:[%s403 + $0xb0] sm:$0xff]
  %v427 = vld [vmem:[%s403 + $0xb8] sm:$0xff]
  %v428 = vld [vmem:[%s403 + $0xc0] sm:$0xff]
  %v429 = vld [vmem:[%s403 + $0xc8] sm:$0xff]
  %v430 = vld [vmem:[%s403 + $0xd0] sm:$0xff]
  %v431 = vld [vmem:[%s403 + $0xd8] sm:$0xff]
  %v432 = vld [vmem:[%s403 + $0xe0] sm:$0xff]
  %v433 = vld [vmem:[%s403 + $0xe8] sm:$0xff]
  %v434 = vld [vmem:[%s403 + $0xf0] sm:$0xff]
  %v435 = vld [vmem:[%s403 + $0xf8] sm:$0xff]
  %v436 = vld [vmem:[%s403 + $0x100] sm:$0xff]
  %v437 = vld [vmem:[%s403 + $0x108] sm:$0xff]
  %v438 = vld [vmem:[%s403 + $0x110] sm:$0xff]
  %v439 = vld [vmem:[%s403 + $0x118] sm:$0xff]
  %v440 = vld [vmem:[%s403 + $0x120] sm:$0xff]
  %v441 = vld [vmem:[%s403 + $0x128] sm:$0xff]
  %v442 = vld [vmem:[%s403 + $0x130] sm:$0xff]
  %v443 = vld [vmem:[%s403 + $0x138] sm:$0xff]
  %v444 = vld [vmem:[%s403 + $0x140] sm:$0xff]
  %v445 = vld [vmem:[%s403 + $0x148] sm:$0xff]
  %v446 = vld [vmem:[%s403 + $0x150] sm:$0xff]
  %v447 = vld [vmem:[%s403 + $0x158] sm:$0xff]
  %v448 = vld [vmem:[%s403 + $0x160] sm:$0xff]
  %v449 = vld [vmem:[%s403 + $0x168] sm:$0xff]
  %v450 = vld [vmem:[%s403 + $0x170] sm:$0xff]
  %v451 = vld [vmem:[%s403 + $0x178] sm:$0xff]
  %v452 = vld [vmem:[%s403 + $0x180] sm:$0xff]
  %v453 = vld [vmem:[%s403 + $0x188] sm:$0xff]
  %v454 = vld [vmem:[%s403 + $0x190] sm:$0xff]
  %v455 = vld [vmem:[%s403 + $0x198] sm:$0xff]
  %v456 = vld [vmem:[%s403 + $0x1a0] sm:$0xff]
  %v457 = vld [vmem:[%s403 + $0x1a8] sm:$0xff]
  %v458 = vld [vmem:[%s403 + $0x1b0] sm:$0xff]
  %v459 = vld [vmem:[%s403 + $0x1b8] sm:$0xff]
  %v460 = vld [vmem:[%s403 + $0x1c0] sm:$0xff]
  %v461 = vld [vmem:[%s403 + $0x1c8] sm:$0xff]
  %v462 = vld [vmem:[%s403 + $0x1d0] sm:$0xff]
  %v463 = vld [vmem:[%s403 + $0x1d8] sm:$0xff]
  %v464 = vld [vmem:[%s403 + $0x1e0] sm:$0xff]
  %v465 = vld [vmem:[%s403 + $0x1e8] sm:$0xff]
  %v466 = vld [vmem:[%s403 + $0x1f0] sm:$0xff]
  %v467 = vld [vmem:[%s403 + $0x1f8] sm:$0xff]
  %v468 = vld [vmem:[%s403 + $0x200] sm:$0xff]
  %v469 = vld [vmem:[%s403 + $0x208] sm:$0xff]
  %v470 = vld [vmem:[%s403 + $0x210] sm:$0xff]
  %v471 = vld [vmem:[%s403 + $0x218] sm:$0xff]
  %v472 = vld [vmem:[%s403 + $0x220] sm:$0xff]
  %v473 = vld [vmem:[%s403 + $0x228] sm:$0xff]
  %v474 = vld [vmem:[%s403 + $0x230] sm:$0xff]
  %v475 = vld [vmem:[%s403 + $0x238] sm:$0xff]
  %v476 = vld [vmem:[%s403 + $0x240] sm:$0xff]
  %v477 = vld [vmem:[%s403 + $0x248] sm:$0xff]
  %v478 = vld [vmem:[%s403 + $0x250] sm:$0xff]
  %v479 = vld [vmem:[%s403 + $0x258] sm:$0xff]
  %v480 = vld [vmem:[%s403 + $0x260] sm:$0xff]
  %v481 = vld [vmem:[%s403 + $0x268] sm:$0xff]
  %v482 = vld [vmem:[%s403 + $0x270] sm:$0xff]
  %v483 = vld [vmem:[%s403 + $0x278] sm:$0xff]
  %v484 = vld [vmem:[%s403 + $0x280] sm:$0xff]
  %v485 = vld [vmem:[%s403 + $0x288] sm:$0xff]
  %v486 = vld [vmem:[%s403 + $0x290] sm:$0xff]
  %v487 = vld [vmem:[%s403 + $0x298] sm:$0xff]
  %v488 = vld [vmem:[%s403 + $0x2a0] sm:$0xff]
  %v489 = vld [vmem:[%s403 + $0x2a8] sm:$0xff]
  %v490 = vld [vmem:[%s403 + $0x2b0] sm:$0xff]
  %v491 = vld [vmem:[%s403 + $0x2b8] sm:$0xff]
  %v492 = vld [vmem:[%s403 + $0x2c0] sm:$0xff]
  %v493 = vld [vmem:[%s403 + $0x2c8] sm:$0xff]
  %v494 = vld [vmem:[%s403 + $0x2d0] sm:$0xff]
  %v495 = vld [vmem:[%s403 + $0x2d8] sm:$0xff]
  %v496 = vld [vmem:[%s403 + $0x2e0] sm:$0xff]
  %v497 = vld [vmem:[%s403 + $0x2e8] sm:$0xff]
  %v498 = vld [vmem:[%s403 + $0x2f0] sm:$0xff]
  %v499 = vld [vmem:[%s403 + $0x2f8] sm:$0xff]
  %v500 = vld [vmem:[%s403 + $0x300] sm:$0xff]
  %v501 = vld [vmem:[%s403 + $0x308] sm:$0xff]
  %v502 = vld [vmem:[%s403 + $0x310] sm:$0xff]
  %v503 = vld [vmem:[%s403 + $0x318] sm:$0xff]
  %v504 = vld [vmem:[%s403 + $0x320] sm:$0xff]
  %v505 = vld [vmem:[%s403 + $0x328] sm:$0xff]
  %v506 = vld [vmem:[%s403 + $0x330] sm:$0xff]
  %v507 = vld [vmem:[%s403 + $0x338] sm:$0xff]
  %v508 = vld [vmem:[%s403 + $0x340] sm:$0xff]
  %v509 = vld [vmem:[%s403 + $0x348] sm:$0xff]
  %v510 = vld [vmem:[%s403 + $0x350] sm:$0xff]
  %v511 = vld [vmem:[%s403 + $0x358] sm:$0xff]
  %v512 = vld [vmem:[%s403 + $0x360] sm:$0xff]
  %v513 = vld [vmem:[%s403 + $0x368] sm:$0xff]
  %v514 = vld [vmem:[%s403 + $0x370] sm:$0xff]
  %v515 = vld [vmem:[%s403 + $0x378] sm:$0xff]
  %v516 = vld [vmem:[%s403 + $0x380] sm:$0xff]
  %v517 = vld [vmem:[%s403 + $0x388] sm:$0xff]
  %v518 = vld [vmem:[%s403 + $0x390] sm:$0xff]
  %v519 = vld [vmem:[%s403 + $0x398] sm:$0xff]
  %v520 = vld [vmem:[%s403 + $0x3a0] sm:$0xff]
  %v521 = vld [vmem:[%s403 + $0x3a8] sm:$0xff]
  %v522 = vld [vmem:[%s403 + $0x3b0] sm:$0xff]
  %v523 = vld [vmem:[%s403 + $0x3b8] sm:$0xff]
  %v524 = vld [vmem:[%s403 + $0x3c0] sm:$0xff]
  %v525 = vld [vmem:[%s403 + $0x3c8] sm:$0xff]
  %v526 = vld [vmem:[%s403 + $0x3d0] sm:$0xff]
  %v527 = vld [vmem:[%s403 + $0x3d8] sm:$0xff]
  %v528 = vld [vmem:[%s403 + $0x3e0] sm:$0xff]
  %v529 = vld [vmem:[%s403 + $0x3e8] sm:$0xff]
  %v530 = vld [vmem:[%s403 + $0x3f0] sm:$0xff]
  %v531 = vld [vmem:[%s403 + $0x3f8] sm:$0xff]
  %vm532 = vcmask 556032
  %v533 = vsel %vm532, %v18, 0.0
  %v534 = vadd.f32 %v17, %v533
  %535 = vadd.xlane.f32.xlu0 %v534
  %v536 = vpop.xlane.xlu0 %535
  %v537 = vsel %vm532, %v20, 0.0
  %v538 = vadd.f32 %v19, %v537
  %539 = vadd.xlane.f32.xlu0 %v538
  %v540 = vpop.xlane.xlu0 %539
  %v541 = vsel %vm532, %v22, 0.0
  %v542 = vadd.f32 %v21, %v541
  %543 = vadd.xlane.f32.xlu0 %v542
  %v544 = vpop.xlane.xlu0 %543
  %v545 = vsel %vm532, %v24, 0.0
  %v546 = vadd.f32 %v23, %v545
  %547 = vadd.xlane.f32.xlu0 %v546
  %v548 = vpop.xlane.xlu0 %547
  %v549 = vsel %vm532, %v26, 0.0
  %v550 = vadd.f32 %v25, %v549
  %551 = vadd.xlane.f32.xlu0 %v550
  %v552 = vpop.xlane.xlu0 %551
  %v553 = vsel %vm532, %v28, 0.0
  %v554 = vadd.f32 %v27, %v553
  %555 = vadd.xlane.f32.xlu0 %v554
  %v556 = vpop.xlane.xlu0 %555
  %v557 = vsel %vm532, %v30, 0.0
  %v558 = vadd.f32 %v29, %v557
  %559 = vadd.xlane.f32.xlu0 %v558
  %v560 = vpop.xlane.xlu0 %559
  %v561 = vsel %vm532, %v32, 0.0
  %v562 = vadd.f32 %v31, %v561
  %563 = vadd.xlane.f32.xlu0 %v562
  %v564 = vpop.xlane.xlu0 %563
  %v565 = vsel %vm532, %v34, 0.0
  %v566 = vadd.f32 %v33, %v565
  %567 = vadd.xlane.f32.xlu0 %v566
  %v568 = vpop.xlane.xlu0 %567
  %v569 = vsel %vm532, %v36, 0.0
  %v570 = vadd.f32 %v35, %v569
  %571 = vadd.xlane.f32.xlu0 %v570
  %v572 = vpop.xlane.xlu0 %571
  %v573 = vsel %vm532, %v38, 0.0
  %v574 = vadd.f32 %v37, %v573
  %575 = vadd.xlane.f32.xlu0 %v574
  %v576 = vpop.xlane.xlu0 %575
  %v577 = vsel %vm532, %v40, 0.0
  %v578 = vadd.f32 %v39, %v577
  %579 = vadd.xlane.f32.xlu0 %v578
  %v580 = vpop.xlane.xlu0 %579
  %v581 = vsel %vm532, %v42, 0.0
  %v582 = vadd.f32 %v41, %v581
  %583 = vadd.xlane.f32.xlu0 %v582
  %v584 = vpop.xlane.xlu0 %583
  %v585 = vsel %vm532, %v44, 0.0
  %v586 = vadd.f32 %v43, %v585
  %587 = vadd.xlane.f32.xlu0 %v586
  %v588 = vpop.xlane.xlu0 %587
  %v589 = vsel %vm532, %v46, 0.0
  %v590 = vadd.f32 %v45, %v589
  %591 = vadd.xlane.f32.xlu0 %v590
  %v592 = vpop.xlane.xlu0 %591
  %v593 = vsel %vm532, %v48, 0.0
  %v594 = vadd.f32 %v47, %v593
  %595 = vadd.xlane.f32.xlu0 %v594
  %v596 = vpop.xlane.xlu0 %595
  %v597 = vsel %vm532, %v50, 0.0
  %v598 = vadd.f32 %v49, %v597
  %599 = vadd.xlane.f32.xlu0 %v598
  %v600 = vpop.xlane.xlu0 %599
  %v601 = vsel %vm532, %v52, 0.0
  %v602 = vadd.f32 %v51, %v601
  %603 = vadd.xlane.f32.xlu0 %v602
  %v604 = vpop.xlane.xlu0 %603
  %v605 = vsel %vm532, %v54, 0.0
  %v606 = vadd.f32 %v53, %v605
  %607 = vadd.xlane.f32.xlu0 %v606
  %v608 = vpop.xlane.xlu0 %607
  %v609 = vsel %vm532, %v56, 0.0
  %v610 = vadd.f32 %v55, %v609
  %611 = vadd.xlane.f32.xlu0 %v610
  %v612 = vpop.xlane.xlu0 %611
  %v613 = vsel %vm532, %v58, 0.0
  %v614 = vadd.f32 %v57, %v613
  %615 = vadd.xlane.f32.xlu0 %v614
  %v616 = vpop.xlane.xlu0 %615
  %v617 = vsel %vm532, %v60, 0.0
  %v618 = vadd.f32 %v59, %v617
  %619 = vadd.xlane.f32.xlu0 %v618
  %v620 = vpop.xlane.xlu0 %619
  %v621 = vsel %vm532, %v62, 0.0
  %v622 = vadd.f32 %v61, %v621
  %623 = vadd.xlane.f32.xlu0 %v622
  %v624 = vpop.xlane.xlu0 %623
  %v625 = vsel %vm532, %v64, 0.0
  %v626 = vadd.f32 %v63, %v625
  %627 = vadd.xlane.f32.xlu0 %v626
  %v628 = vpop.xlane.xlu0 %627
  %v629 = vsel %vm532, %v66, 0.0
  %v630 = vadd.f32 %v65, %v629
  %631 = vadd.xlane.f32.xlu0 %v630
  %v632 = vpop.xlane.xlu0 %631
  %v633 = vsel %vm532, %v68, 0.0
  %v634 = vadd.f32 %v67, %v633
  %635 = vadd.xlane.f32.xlu0 %v634
  %v636 = vpop.xlane.xlu0 %635
  %v637 = vsel %vm532, %v70, 0.0
  %v638 = vadd.f32 %v69, %v637
  %639 = vadd.xlane.f32.xlu0 %v638
  %v640 = vpop.xlane.xlu0 %639
  %v641 = vsel %vm532, %v72, 0.0
  %v642 = vadd.f32 %v71, %v641
  %643 = vadd.xlane.f32.xlu0 %v642
  %v644 = vpop.xlane.xlu0 %643
  %v645 = vsel %vm532, %v74, 0.0
  %v646 = vadd.f32 %v73, %v645
  %647 = vadd.xlane.f32.xlu0 %v646
  %v648 = vpop.xlane.xlu0 %647
  %v649 = vsel %vm532, %v76, 0.0
  %v650 = vadd.f32 %v75, %v649
  %651 = vadd.xlane.f32.xlu0 %v650
  %v652 = vpop.xlane.xlu0 %651
  %v653 = vsel %vm532, %v78, 0.0
  %v654 = vadd.f32 %v77, %v653
  %655 = vadd.xlane.f32.xlu0 %v654
  %v656 = vpop.xlane.xlu0 %655
  %v657 = vsel %vm532, %v80, 0.0
  %v658 = vadd.f32 %v79, %v657
  %659 = vadd.xlane.f32.xlu0 %v658
  %v660 = vpop.xlane.xlu0 %659
  %v661 = vsel %vm532, %v82, 0.0
  %v662 = vadd.f32 %v81, %v661
  %663 = vadd.xlane.f32.xlu0 %v662
  %v664 = vpop.xlane.xlu0 %663
  %v665 = vsel %vm532, %v84, 0.0
  %v666 = vadd.f32 %v83, %v665
  %667 = vadd.xlane.f32.xlu0 %v666
  %v668 = vpop.xlane.xlu0 %667
  %v669 = vsel %vm532, %v86, 0.0
  %v670 = vadd.f32 %v85, %v669
  %671 = vadd.xlane.f32.xlu0 %v670
  %v672 = vpop.xlane.xlu0 %671
  %v673 = vsel %vm532, %v88, 0.0
  %v674 = vadd.f32 %v87, %v673
  %675 = vadd.xlane.f32.xlu0 %v674
  %v676 = vpop.xlane.xlu0 %675
  %v677 = vsel %vm532, %v90, 0.0
  %v678 = vadd.f32 %v89, %v677
  %679 = vadd.xlane.f32.xlu0 %v678
  %v680 = vpop.xlane.xlu0 %679
  %v681 = vsel %vm532, %v92, 0.0
  %v682 = vadd.f32 %v91, %v681
  %683 = vadd.xlane.f32.xlu0 %v682
  %v684 = vpop.xlane.xlu0 %683
  %v685 = vsel %vm532, %v94, 0.0
  %v686 = vadd.f32 %v93, %v685
  %687 = vadd.xlane.f32.xlu0 %v686
  %v688 = vpop.xlane.xlu0 %687
  %v689 = vsel %vm532, %v96, 0.0
  %v690 = vadd.f32 %v95, %v689
  %691 = vadd.xlane.f32.xlu0 %v690
  %v692 = vpop.xlane.xlu0 %691
  %v693 = vsel %vm532, %v98, 0.0
  %v694 = vadd.f32 %v97, %v693
  %695 = vadd.xlane.f32.xlu0 %v694
  %v696 = vpop.xlane.xlu0 %695
  %v697 = vsel %vm532, %v100, 0.0
  %v698 = vadd.f32 %v99, %v697
  %699 = vadd.xlane.f32.xlu0 %v698
  %v700 = vpop.xlane.xlu0 %699
  %v701 = vsel %vm532, %v102, 0.0
  %v702 = vadd.f32 %v101, %v701
  %703 = vadd.xlane.f32.xlu0 %v702
  %v704 = vpop.xlane.xlu0 %703
  %v705 = vsel %vm532, %v104, 0.0
  %v706 = vadd.f32 %v103, %v705
  %707 = vadd.xlane.f32.xlu0 %v706
  %v708 = vpop.xlane.xlu0 %707
  %v709 = vsel %vm532, %v106, 0.0
  %v710 = vadd.f32 %v105, %v709
  %711 = vadd.xlane.f32.xlu0 %v710
  %v712 = vpop.xlane.xlu0 %711
  %v713 = vsel %vm532, %v108, 0.0
  %v714 = vadd.f32 %v107, %v713
  %715 = vadd.xlane.f32.xlu0 %v714
  %v716 = vpop.xlane.xlu0 %715
  %v717 = vsel %vm532, %v110, 0.0
  %v718 = vadd.f32 %v109, %v717
  %719 = vadd.xlane.f32.xlu0 %v718
  %v720 = vpop.xlane.xlu0 %719
  %v721 = vsel %vm532, %v112, 0.0
  %v722 = vadd.f32 %v111, %v721
  %723 = vadd.xlane.f32.xlu0 %v722
  %v724 = vpop.xlane.xlu0 %723
  %v725 = vsel %vm532, %v114, 0.0
  %v726 = vadd.f32 %v113, %v725
  %727 = vadd.xlane.f32.xlu0 %v726
  %v728 = vpop.xlane.xlu0 %727
  %v729 = vsel %vm532, %v116, 0.0
  %v730 = vadd.f32 %v115, %v729
  %731 = vadd.xlane.f32.xlu0 %v730
  %v732 = vpop.xlane.xlu0 %731
  %v733 = vsel %vm532, %v118, 0.0
  %v734 = vadd.f32 %v117, %v733
  %735 = vadd.xlane.f32.xlu0 %v734
  %v736 = vpop.xlane.xlu0 %735
  %v737 = vsel %vm532, %v120, 0.0
  %v738 = vadd.f32 %v119, %v737
  %739 = vadd.xlane.f32.xlu0 %v738
  %v740 = vpop.xlane.xlu0 %739
  %v741 = vsel %vm532, %v122, 0.0
  %v742 = vadd.f32 %v121, %v741
  %743 = vadd.xlane.f32.xlu0 %v742
  %v744 = vpop.xlane.xlu0 %743
  %v745 = vsel %vm532, %v124, 0.0
  %v746 = vadd.f32 %v123, %v745
  %747 = vadd.xlane.f32.xlu0 %v746
  %v748 = vpop.xlane.xlu0 %747
  %v749 = vsel %vm532, %v126, 0.0
  %v750 = vadd.f32 %v125, %v749
  %751 = vadd.xlane.f32.xlu0 %v750
  %v752 = vpop.xlane.xlu0 %751
  %v753 = vsel %vm532, %v128, 0.0
  %v754 = vadd.f32 %v127, %v753
  %755 = vadd.xlane.f32.xlu0 %v754
  %v756 = vpop.xlane.xlu0 %755
  %v757 = vsel %vm532, %v130, 0.0
  %v758 = vadd.f32 %v129, %v757
  %759 = vadd.xlane.f32.xlu0 %v758
  %v760 = vpop.xlane.xlu0 %759
  %v761 = vsel %vm532, %v132, 0.0
  %v762 = vadd.f32 %v131, %v761
  %763 = vadd.xlane.f32.xlu0 %v762
  %v764 = vpop.xlane.xlu0 %763
  %v765 = vsel %vm532, %v134, 0.0
  %v766 = vadd.f32 %v133, %v765
  %767 = vadd.xlane.f32.xlu0 %v766
  %v768 = vpop.xlane.xlu0 %767
  %v769 = vsel %vm532, %v136, 0.0
  %v770 = vadd.f32 %v135, %v769
  %771 = vadd.xlane.f32.xlu0 %v770
  %v772 = vpop.xlane.xlu0 %771
  %v773 = vsel %vm532, %v138, 0.0
  %v774 = vadd.f32 %v137, %v773
  %775 = vadd.xlane.f32.xlu0 %v774
  %v776 = vpop.xlane.xlu0 %775
  %v777 = vsel %vm532, %v140, 0.0
  %v778 = vadd.f32 %v139, %v777
  %779 = vadd.xlane.f32.xlu0 %v778
  %v780 = vpop.xlane.xlu0 %779
  %v781 = vsel %vm532, %v142, 0.0
  %v782 = vadd.f32 %v141, %v781
  %783 = vadd.xlane.f32.xlu0 %v782
  %v784 = vpop.xlane.xlu0 %783
  %v785 = vsel %vm532, %v144, 0.0
  %v786 = vadd.f32 %v143, %v785
  %787 = vadd.xlane.f32.xlu0 %v786
  %v788 = vpop.xlane.xlu0 %787
  %v789 = vsel %vm532, %v146, 0.0
  %v790 = vadd.f32 %v145, %v789
  %791 = vadd.xlane.f32.xlu0 %v790
  %v792 = vpop.xlane.xlu0 %791
  %v793 = vsel %vm532, %v148, 0.0
  %v794 = vadd.f32 %v147, %v793
  %795 = vadd.xlane.f32.xlu0 %v794
  %v796 = vpop.xlane.xlu0 %795
  %v797 = vsel %vm532, %v150, 0.0
  %v798 = vadd.f32 %v149, %v797
  %799 = vadd.xlane.f32.xlu0 %v798
  %v800 = vpop.xlane.xlu0 %799
  %v801 = vsel %vm532, %v152, 0.0
  %v802 = vadd.f32 %v151, %v801
  %803 = vadd.xlane.f32.xlu0 %v802
  %v804 = vpop.xlane.xlu0 %803
  %v805 = vsel %vm532, %v154, 0.0
  %v806 = vadd.f32 %v153, %v805
  %807 = vadd.xlane.f32.xlu0 %v806
  %v808 = vpop.xlane.xlu0 %807
  %v809 = vsel %vm532, %v156, 0.0
  %v810 = vadd.f32 %v155, %v809
  %811 = vadd.xlane.f32.xlu0 %v810
  %v812 = vpop.xlane.xlu0 %811
  %v813 = vsel %vm532, %v158, 0.0
  %v814 = vadd.f32 %v157, %v813
  %815 = vadd.xlane.f32.xlu0 %v814
  %v816 = vpop.xlane.xlu0 %815
  %v817 = vsel %vm532, %v160, 0.0
  %v818 = vadd.f32 %v159, %v817
  %819 = vadd.xlane.f32.xlu0 %v818
  %v820 = vpop.xlane.xlu0 %819
  %v821 = vsel %vm532, %v162, 0.0
  %v822 = vadd.f32 %v161, %v821
  %823 = vadd.xlane.f32.xlu0 %v822
  %v824 = vpop.xlane.xlu0 %823
  %v825 = vsel %vm532, %v164, 0.0
  %v826 = vadd.f32 %v163, %v825
  %827 = vadd.xlane.f32.xlu0 %v826
  %v828 = vpop.xlane.xlu0 %827
  %v829 = vsel %vm532, %v166, 0.0
  %v830 = vadd.f32 %v165, %v829
  %831 = vadd.xlane.f32.xlu0 %v830
  %v832 = vpop.xlane.xlu0 %831
  %v833 = vsel %vm532, %v168, 0.0
  %v834 = vadd.f32 %v167, %v833
  %835 = vadd.xlane.f32.xlu0 %v834
  %v836 = vpop.xlane.xlu0 %835
  %v837 = vsel %vm532, %v170, 0.0
  %v838 = vadd.f32 %v169, %v837
  %839 = vadd.xlane.f32.xlu0 %v838
  %v840 = vpop.xlane.xlu0 %839
  %v841 = vsel %vm532, %v172, 0.0
  %v842 = vadd.f32 %v171, %v841
  %843 = vadd.xlane.f32.xlu0 %v842
  %v844 = vpop.xlane.xlu0 %843
  %v845 = vsel %vm532, %v174, 0.0
  %v846 = vadd.f32 %v173, %v845
  %847 = vadd.xlane.f32.xlu0 %v846
  %v848 = vpop.xlane.xlu0 %847
  %v849 = vsel %vm532, %v176, 0.0
  %v850 = vadd.f32 %v175, %v849
  %851 = vadd.xlane.f32.xlu0 %v850
  %v852 = vpop.xlane.xlu0 %851
  %v853 = vsel %vm532, %v178, 0.0
  %v854 = vadd.f32 %v177, %v853
  %855 = vadd.xlane.f32.xlu0 %v854
  %v856 = vpop.xlane.xlu0 %855
  %v857 = vsel %vm532, %v180, 0.0
  %v858 = vadd.f32 %v179, %v857
  %859 = vadd.xlane.f32.xlu0 %v858
  %v860 = vpop.xlane.xlu0 %859
  %v861 = vsel %vm532, %v182, 0.0
  %v862 = vadd.f32 %v181, %v861
  %863 = vadd.xlane.f32.xlu0 %v862
  %v864 = vpop.xlane.xlu0 %863
  %v865 = vsel %vm532, %v184, 0.0
  %v866 = vadd.f32 %v183, %v865
  %867 = vadd.xlane.f32.xlu0 %v866
  %v868 = vpop.xlane.xlu0 %867
  %v869 = vsel %vm532, %v186, 0.0
  %v870 = vadd.f32 %v185, %v869
  %871 = vadd.xlane.f32.xlu0 %v870
  %v872 = vpop.xlane.xlu0 %871
  %v873 = vsel %vm532, %v188, 0.0
  %v874 = vadd.f32 %v187, %v873
  %875 = vadd.xlane.f32.xlu0 %v874
  %v876 = vpop.xlane.xlu0 %875
  %v877 = vsel %vm532, %v190, 0.0
  %v878 = vadd.f32 %v189, %v877
  %879 = vadd.xlane.f32.xlu0 %v878
  %v880 = vpop.xlane.xlu0 %879
  %v881 = vsel %vm532, %v192, 0.0
  %v882 = vadd.f32 %v191, %v881
  %883 = vadd.xlane.f32.xlu0 %v882
  %v884 = vpop.xlane.xlu0 %883
  %v885 = vsel %vm532, %v194, 0.0
  %v886 = vadd.f32 %v193, %v885
  %887 = vadd.xlane.f32.xlu0 %v886
  %v888 = vpop.xlane.xlu0 %887
  %v889 = vsel %vm532, %v196, 0.0
  %v890 = vadd.f32 %v195, %v889
  %891 = vadd.xlane.f32.xlu0 %v890
  %v892 = vpop.xlane.xlu0 %891
  %v893 = vsel %vm532, %v198, 0.0
  %v894 = vadd.f32 %v197, %v893
  %895 = vadd.xlane.f32.xlu0 %v894
  %v896 = vpop.xlane.xlu0 %895
  %v897 = vsel %vm532, %v200, 0.0
  %v898 = vadd.f32 %v199, %v897
  %899 = vadd.xlane.f32.xlu0 %v898
  %v900 = vpop.xlane.xlu0 %899
  %v901 = vsel %vm532, %v202, 0.0
  %v902 = vadd.f32 %v201, %v901
  %903 = vadd.xlane.f32.xlu0 %v902
  %v904 = vpop.xlane.xlu0 %903
  %v905 = vsel %vm532, %v204, 0.0
  %v906 = vadd.f32 %v203, %v905
  %907 = vadd.xlane.f32.xlu0 %v906
  %v908 = vpop.xlane.xlu0 %907
  %v909 = vsel %vm532, %v206, 0.0
  %v910 = vadd.f32 %v205, %v909
  %911 = vadd.xlane.f32.xlu0 %v910
  %v912 = vpop.xlane.xlu0 %911
  %v913 = vsel %vm532, %v208, 0.0
  %v914 = vadd.f32 %v207, %v913
  %915 = vadd.xlane.f32.xlu0 %v914
  %v916 = vpop.xlane.xlu0 %915
  %v917 = vsel %vm532, %v210, 0.0
  %v918 = vadd.f32 %v209, %v917
  %919 = vadd.xlane.f32.xlu0 %v918
  %v920 = vpop.xlane.xlu0 %919
  %v921 = vsel %vm532, %v212, 0.0
  %v922 = vadd.f32 %v211, %v921
  %923 = vadd.xlane.f32.xlu0 %v922
  %v924 = vpop.xlane.xlu0 %923
  %v925 = vsel %vm532, %v214, 0.0
  %v926 = vadd.f32 %v213, %v925
  %927 = vadd.xlane.f32.xlu0 %v926
  %v928 = vpop.xlane.xlu0 %927
  %v929 = vsel %vm532, %v216, 0.0
  %v930 = vadd.f32 %v215, %v929
  %931 = vadd.xlane.f32.xlu0 %v930
  %v932 = vpop.xlane.xlu0 %931
  %v933 = vsel %vm532, %v218, 0.0
  %v934 = vadd.f32 %v217, %v933
  %935 = vadd.xlane.f32.xlu0 %v934
  %v936 = vpop.xlane.xlu0 %935
  %v937 = vsel %vm532, %v220, 0.0
  %v938 = vadd.f32 %v219, %v937
  %939 = vadd.xlane.f32.xlu0 %v938
  %v940 = vpop.xlane.xlu0 %939
  %v941 = vsel %vm532, %v222, 0.0
  %v942 = vadd.f32 %v221, %v941
  %943 = vadd.xlane.f32.xlu0 %v942
  %v944 = vpop.xlane.xlu0 %943
  %v945 = vsel %vm532, %v224, 0.0
  %v946 = vadd.f32 %v223, %v945
  %947 = vadd.xlane.f32.xlu0 %v946
  %v948 = vpop.xlane.xlu0 %947
  %v949 = vsel %vm532, %v226, 0.0
  %v950 = vadd.f32 %v225, %v949
  %951 = vadd.xlane.f32.xlu0 %v950
  %v952 = vpop.xlane.xlu0 %951
  %v953 = vsel %vm532, %v228, 0.0
  %v954 = vadd.f32 %v227, %v953
  %955 = vadd.xlane.f32.xlu0 %v954
  %v956 = vpop.xlane.xlu0 %955
  %v957 = vsel %vm532, %v230, 0.0
  %v958 = vadd.f32 %v229, %v957
  %959 = vadd.xlane.f32.xlu0 %v958
  %v960 = vpop.xlane.xlu0 %959
  %v961 = vsel %vm532, %v232, 0.0
  %v962 = vadd.f32 %v231, %v961
  %963 = vadd.xlane.f32.xlu0 %v962
  %v964 = vpop.xlane.xlu0 %963
  %v965 = vsel %vm532, %v234, 0.0
  %v966 = vadd.f32 %v233, %v965
  %967 = vadd.xlane.f32.xlu0 %v966
  %v968 = vpop.xlane.xlu0 %967
  %v969 = vsel %vm532, %v236, 0.0
  %v970 = vadd.f32 %v235, %v969
  %971 = vadd.xlane.f32.xlu0 %v970
  %v972 = vpop.xlane.xlu0 %971
  %v973 = vsel %vm532, %v238, 0.0
  %v974 = vadd.f32 %v237, %v973
  %975 = vadd.xlane.f32.xlu0 %v974
  %v976 = vpop.xlane.xlu0 %975
  %v977 = vsel %vm532, %v240, 0.0
  %v978 = vadd.f32 %v239, %v977
  %979 = vadd.xlane.f32.xlu0 %v978
  %v980 = vpop.xlane.xlu0 %979
  %v981 = vsel %vm532, %v242, 0.0
  %v982 = vadd.f32 %v241, %v981
  %983 = vadd.xlane.f32.xlu0 %v982
  %v984 = vpop.xlane.xlu0 %983
  %v985 = vsel %vm532, %v244, 0.0
  %v986 = vadd.f32 %v243, %v985
  %987 = vadd.xlane.f32.xlu0 %v986
  %v988 = vpop.xlane.xlu0 %987
  %v989 = vsel %vm532, %v246, 0.0
  %v990 = vadd.f32 %v245, %v989
  %991 = vadd.xlane.f32.xlu0 %v990
  %v992 = vpop.xlane.xlu0 %991
  %v993 = vsel %vm532, %v248, 0.0
  %v994 = vadd.f32 %v247, %v993
  %995 = vadd.xlane.f32.xlu0 %v994
  %v996 = vpop.xlane.xlu0 %995
  %v997 = vsel %vm532, %v250, 0.0
  %v998 = vadd.f32 %v249, %v997
  %999 = vadd.xlane.f32.xlu0 %v998
  %v1000 = vpop.xlane.xlu0 %999
  %v1001 = vsel %vm532, %v252, 0.0
  %v1002 = vadd.f32 %v251, %v1001
  %1003 = vadd.xlane.f32.xlu0 %v1002
  %v1004 = vpop.xlane.xlu0 %1003
  %v1005 = vsel %vm532, %v254, 0.0
  %v1006 = vadd.f32 %v253, %v1005
  %1007 = vadd.xlane.f32.xlu0 %v1006
  %v1008 = vpop.xlane.xlu0 %1007
  %v1009 = vsel %vm532, %v256, 0.0
  %v1010 = vadd.f32 %v255, %v1009
  %1011 = vadd.xlane.f32.xlu0 %v1010
  %v1012 = vpop.xlane.xlu0 %1011
  %v1013 = vsel %vm532, %v258, 0.0
  %v1014 = vadd.f32 %v257, %v1013
  %1015 = vadd.xlane.f32.xlu0 %v1014
  %v1016 = vpop.xlane.xlu0 %1015
  %v1017 = vsel %vm532, %v260, 0.0
  %v1018 = vadd.f32 %v259, %v1017
  %1019 = vadd.xlane.f32.xlu0 %v1018
  %v1020 = vpop.xlane.xlu0 %1019
  %v1021 = vsel %vm532, %v262, 0.0
  %v1022 = vadd.f32 %v261, %v1021
  %1023 = vadd.xlane.f32.xlu0 %v1022
  %v1024 = vpop.xlane.xlu0 %1023
  %v1025 = vsel %vm532, %v264, 0.0
  %v1026 = vadd.f32 %v263, %v1025
  %1027 = vadd.xlane.f32.xlu0 %v1026
  %v1028 = vpop.xlane.xlu0 %1027
  %v1029 = vsel %vm532, %v266, 0.0
  %v1030 = vadd.f32 %v265, %v1029
  %1031 = vadd.xlane.f32.xlu0 %v1030
  %v1032 = vpop.xlane.xlu0 %1031
  %v1033 = vsel %vm532, %v268, 0.0
  %v1034 = vadd.f32 %v267, %v1033
  %1035 = vadd.xlane.f32.xlu0 %v1034
  %v1036 = vpop.xlane.xlu0 %1035
  %v1037 = vsel %vm532, %v270, 0.0
  %v1038 = vadd.f32 %v269, %v1037
  %1039 = vadd.xlane.f32.xlu0 %v1038
  %v1040 = vpop.xlane.xlu0 %1039
  %v1041 = vsel %vm532, %v272, 0.0
  %v1042 = vadd.f32 %v271, %v1041
  %1043 = vadd.xlane.f32.xlu0 %v1042
  %v1044 = vpop.xlane.xlu0 %1043
  %v1045 = vmul.f32 %v536, 0.0051020407
  %v1046 = vmul.f32 %v540, 0.0051020407
  %v1047 = vmul.f32 %v544, 0.0051020407
  %v1048 = vmul.f32 %v548, 0.0051020407
  %v1049 = vmul.f32 %v552, 0.0051020407
  %v1050 = vmul.f32 %v556, 0.0051020407
  %v1051 = vmul.f32 %v560, 0.0051020407
  %v1052 = vmul.f32 %v564, 0.0051020407
  %v1053 = vmul.f32 %v568, 0.0051020407
  %v1054 = vmul.f32 %v572, 0.0051020407
  %v1055 = vmul.f32 %v576, 0.0051020407
  %v1056 = vmul.f32 %v580, 0.0051020407
  %v1057 = vmul.f32 %v584, 0.0051020407
  %v1058 = vmul.f32 %v588, 0.0051020407
  %v1059 = vmul.f32 %v592, 0.0051020407
  %v1060 = vmul.f32 %v596, 0.0051020407
  %v1061 = vmul.f32 %v600, 0.0051020407
  %v1062 = vmul.f32 %v604, 0.0051020407
  %v1063 = vmul.f32 %v608, 0.0051020407
  %v1064 = vmul.f32 %v612, 0.0051020407
  %v1065 = vmul.f32 %v616, 0.0051020407
  %v1066 = vmul.f32 %v620, 0.0051020407
  %v1067 = vmul.f32 %v624, 0.0051020407
  %v1068 = vmul.f32 %v628, 0.0051020407
  %v1069 = vmul.f32 %v632, 0.0051020407
  %v1070 = vmul.f32 %v636, 0.0051020407
  %v1071 = vmul.f32 %v640, 0.0051020407
  %v1072 = vmul.f32 %v644, 0.0051020407
  %v1073 = vmul.f32 %v648, 0.0051020407
  %v1074 = vmul.f32 %v652, 0.0051020407
  %v1075 = vmul.f32 %v656, 0.0051020407
  %v1076 = vmul.f32 %v660, 0.0051020407
  %v1077 = vmul.f32 %v664, 0.0051020407
  %v1078 = vmul.f32 %v668, 0.0051020407
  %v1079 = vmul.f32 %v672, 0.0051020407
  %v1080 = vmul.f32 %v676, 0.0051020407
  %v1081 = vmul.f32 %v680, 0.0051020407
  %v1082 = vmul.f32 %v684, 0.0051020407
  %v1083 = vmul.f32 %v688, 0.0051020407
  %v1084 = vmul.f32 %v692, 0.0051020407
  %v1085 = vmul.f32 %v696, 0.0051020407
  %v1086 = vmul.f32 %v700, 0.0051020407
  %v1087 = vmul.f32 %v704, 0.0051020407
  %v1088 = vmul.f32 %v708, 0.0051020407
  %v1089 = vmul.f32 %v712, 0.0051020407
  %v1090 = vmul.f32 %v716, 0.0051020407
  %v1091 = vmul.f32 %v720, 0.0051020407
  %v1092 = vmul.f32 %v724, 0.0051020407
  %v1093 = vmul.f32 %v728, 0.0051020407
  %v1094 = vmul.f32 %v732, 0.0051020407
  %v1095 = vmul.f32 %v736, 0.0051020407
  %v1096 = vmul.f32 %v740, 0.0051020407
  %v1097 = vmul.f32 %v744, 0.0051020407
  %v1098 = vmul.f32 %v748, 0.0051020407
  %v1099 = vmul.f32 %v752, 0.0051020407
  %v1100 = vmul.f32 %v756, 0.0051020407
  %v1101 = vmul.f32 %v760, 0.0051020407
  %v1102 = vmul.f32 %v764, 0.0051020407
  %v1103 = vmul.f32 %v768, 0.0051020407
  %v1104 = vmul.f32 %v772, 0.0051020407
  %v1105 = vmul.f32 %v776, 0.0051020407
  %v1106 = vmul.f32 %v780, 0.0051020407
  %v1107 = vmul.f32 %v784, 0.0051020407
  %v1108 = vmul.f32 %v788, 0.0051020407
  %v1109 = vmul.f32 %v792, 0.0051020407
  %v1110 = vmul.f32 %v796, 0.0051020407
  %v1111 = vmul.f32 %v800, 0.0051020407
  %v1112 = vmul.f32 %v804, 0.0051020407
  %v1113 = vmul.f32 %v808, 0.0051020407
  %v1114 = vmul.f32 %v812, 0.0051020407
  %v1115 = vmul.f32 %v816, 0.0051020407
  %v1116 = vmul.f32 %v820, 0.0051020407
  %v1117 = vmul.f32 %v824, 0.0051020407
  %v1118 = vmul.f32 %v828, 0.0051020407
  %v1119 = vmul.f32 %v832, 0.0051020407
  %v1120 = vmul.f32 %v836, 0.0051020407
  %v1121 = vmul.f32 %v840, 0.0051020407
  %v1122 = vmul.f32 %v844, 0.0051020407
  %v1123 = vmul.f32 %v848, 0.0051020407
  %v1124 = vmul.f32 %v852, 0.0051020407
  %v1125 = vmul.f32 %v856, 0.0051020407
  %v1126 = vmul.f32 %v860, 0.0051020407
  %v1127 = vmul.f32 %v864, 0.0051020407
  %v1128 = vmul.f32 %v868, 0.0051020407
  %v1129 = vmul.f32 %v872, 0.0051020407
  %v1130 = vmul.f32 %v876, 0.0051020407
  %v1131 = vmul.f32 %v880, 0.0051020407
  %v1132 = vmul.f32 %v884, 0.0051020407
  %v1133 = vmul.f32 %v888, 0.0051020407
  %v1134 = vmul.f32 %v892, 0.0051020407
  %v1135 = vmul.f32 %v896, 0.0051020407
  %v1136 = vmul.f32 %v900, 0.0051020407
  %v1137 = vmul.f32 %v904, 0.0051020407
  %v1138 = vmul.f32 %v908, 0.0051020407
  %v1139 = vmul.f32 %v912, 0.0051020407
  %v1140 = vmul.f32 %v916, 0.0051020407
  %v1141 = vmul.f32 %v920, 0.0051020407
  %v1142 = vmul.f32 %v924, 0.0051020407
  %v1143 = vmul.f32 %v928, 0.0051020407
  %v1144 = vmul.f32 %v932, 0.0051020407
  %v1145 = vmul.f32 %v936, 0.0051020407
  %v1146 = vmul.f32 %v940, 0.0051020407
  %v1147 = vmul.f32 %v944, 0.0051020407
  %v1148 = vmul.f32 %v948, 0.0051020407
  %v1149 = vmul.f32 %v952, 0.0051020407
  %v1150 = vmul.f32 %v956, 0.0051020407
  %v1151 = vmul.f32 %v960, 0.0051020407
  %v1152 = vmul.f32 %v964, 0.0051020407
  %v1153 = vmul.f32 %v968, 0.0051020407
  %v1154 = vmul.f32 %v972, 0.0051020407
  %v1155 = vmul.f32 %v976, 0.0051020407
  %v1156 = vmul.f32 %v980, 0.0051020407
  %v1157 = vmul.f32 %v984, 0.0051020407
  %v1158 = vmul.f32 %v988, 0.0051020407
  %v1159 = vmul.f32 %v992, 0.0051020407
  %v1160 = vmul.f32 %v996, 0.0051020407
  %v1161 = vmul.f32 %v1000, 0.0051020407
  %v1162 = vmul.f32 %v1004, 0.0051020407
  %v1163 = vmul.f32 %v1008, 0.0051020407
  %v1164 = vmul.f32 %v1012, 0.0051020407
  %v1165 = vmul.f32 %v1016, 0.0051020407
  %v1166 = vmul.f32 %v1020, 0.0051020407
  %v1167 = vmul.f32 %v1024, 0.0051020407
  %v1168 = vmul.f32 %v1028, 0.0051020407
  %v1169 = vmul.f32 %v1032, 0.0051020407
  %v1170 = vmul.f32 %v1036, 0.0051020407
  %v1171 = vmul.f32 %v1040, 0.0051020407
  %v1172 = vmul.f32 %v1044, 0.0051020407
  %v1173 = vsub.f32 %v17, %v1045
  %v1174 = vsub.f32 %v18, %v1045
  %v1175 = vsub.f32 %v19, %v1046
  %v1176 = vsub.f32 %v20, %v1046
  %v1177 = vsub.f32 %v21, %v1047
  %v1178 = vsub.f32 %v22, %v1047
  %v1179 = vsub.f32 %v23, %v1048
  %v1180 = vsub.f32 %v24, %v1048
  %v1181 = vsub.f32 %v25, %v1049
  %v1182 = vsub.f32 %v26, %v1049
  %v1183 = vsub.f32 %v27, %v1050
  %v1184 = vsub.f32 %v28, %v1050
  %v1185 = vsub.f32 %v29, %v1051
  %v1186 = vsub.f32 %v30, %v1051
  %v1187 = vsub.f32 %v31, %v1052
  %v1188 = vsub.f32 %v32, %v1052
  %v1189 = vsub.f32 %v33, %v1053
  %v1190 = vsub.f32 %v34, %v1053
  %v1191 = vsub.f32 %v35, %v1054
  %v1192 = vsub.f32 %v36, %v1054
  %v1193 = vsub.f32 %v37, %v1055
  %v1194 = vsub.f32 %v38, %v1055
  %v1195 = vsub.f32 %v39, %v1056
  %v1196 = vsub.f32 %v40, %v1056
  %v1197 = vsub.f32 %v41, %v1057
  %v1198 = vsub.f32 %v42, %v1057
  %v1199 = vsub.f32 %v43, %v1058
  %v1200 = vsub.f32 %v44, %v1058
  %v1201 = vsub.f32 %v45, %v1059
  %v1202 = vsub.f32 %v46, %v1059
  %v1203 = vsub.f32 %v47, %v1060
  %v1204 = vsub.f32 %v48, %v1060
  %v1205 = vsub.f32 %v49, %v1061
  %v1206 = vsub.f32 %v50, %v1061
  %v1207 = vsub.f32 %v51, %v1062
  %v1208 = vsub.f32 %v52, %v1062
  %v1209 = vsub.f32 %v53, %v1063
  %v1210 = vsub.f32 %v54, %v1063
  %v1211 = vsub.f32 %v55, %v1064
  %v1212 = vsub.f32 %v56, %v1064
  %v1213 = vsub.f32 %v57, %v1065
  %v1214 = vsub.f32 %v58, %v1065
  %v1215 = vsub.f32 %v59, %v1066
  %v1216 = vsub.f32 %v60, %v1066
  %v1217 = vsub.f32 %v61, %v1067
  %v1218 = vsub.f32 %v62, %v1067
  %v1219 = vsub.f32 %v63, %v1068
  %v1220 = vsub.f32 %v64, %v1068
  %v1221 = vsub.f32 %v65, %v1069
  %v1222 = vsub.f32 %v66, %v1069
  %v1223 = vsub.f32 %v67, %v1070
  %v1224 = vsub.f32 %v68, %v1070
  %v1225 = vsub.f32 %v69, %v1071
  %v1226 = vsub.f32 %v70, %v1071
  %v1227 = vsub.f32 %v71, %v1072
  %v1228 = vsub.f32 %v72, %v1072
  %v1229 = vsub.f32 %v73, %v1073
  %v1230 = vsub.f32 %v74, %v1073
  %v1231 = vsub.f32 %v75, %v1074
  %v1232 = vsub.f32 %v76, %v1074
  %v1233 = vsub.f32 %v77, %v1075
  %v1234 = vsub.f32 %v78, %v1075
  %v1235 = vsub.f32 %v79, %v1076
  %v1236 = vsub.f32 %v80, %v1076
  %v1237 = vsub.f32 %v81, %v1077
  %v1238 = vsub.f32 %v82, %v1077
  %v1239 = vsub.f32 %v83, %v1078
  %v1240 = vsub.f32 %v84, %v1078
  %v1241 = vsub.f32 %v85, %v1079
  %v1242 = vsub.f32 %v86, %v1079
  %v1243 = vsub.f32 %v87, %v1080
  %v1244 = vsub.f32 %v88, %v1080
  %v1245 = vsub.f32 %v89, %v1081
  %v1246 = vsub.f32 %v90, %v1081
  %v1247 = vsub.f32 %v91, %v1082
  %v1248 = vsub.f32 %v92, %v1082
  %v1249 = vsub.f32 %v93, %v1083
  %v1250 = vsub.f32 %v94, %v1083
  %v1251 = vsub.f32 %v95, %v1084
  %v1252 = vsub.f32 %v96, %v1084
  %v1253 = vsub.f32 %v97, %v1085
  %v1254 = vsub.f32 %v98, %v1085
  %v1255 = vsub.f32 %v99, %v1086
  %v1256 = vsub.f32 %v100, %v1086
  %v1257 = vsub.f32 %v101, %v1087
  %v1258 = vsub.f32 %v102, %v1087
  %v1259 = vsub.f32 %v103, %v1088
  %v1260 = vsub.f32 %v104, %v1088
  %v1261 = vsub.f32 %v105, %v1089
  %v1262 = vsub.f32 %v106, %v1089
  %v1263 = vsub.f32 %v107, %v1090
  %v1264 = vsub.f32 %v108, %v1090
  %v1265 = vsub.f32 %v109, %v1091
  %v1266 = vsub.f32 %v110, %v1091
  %v1267 = vsub.f32 %v111, %v1092
  %v1268 = vsub.f32 %v112, %v1092
  %v1269 = vsub.f32 %v113, %v1093
  %v1270 = vsub.f32 %v114, %v1093
  %v1271 = vsub.f32 %v115, %v1094
  %v1272 = vsub.f32 %v116, %v1094
  %v1273 = vsub.f32 %v117, %v1095
  %v1274 = vsub.f32 %v118, %v1095
  %v1275 = vsub.f32 %v119, %v1096
  %v1276 = vsub.f32 %v120, %v1096
  %v1277 = vsub.f32 %v121, %v1097
  %v1278 = vsub.f32 %v122, %v1097
  %v1279 = vsub.f32 %v123, %v1098
  %v1280 = vsub.f32 %v124, %v1098
  %v1281 = vsub.f32 %v125, %v1099
  %v1282 = vsub.f32 %v126, %v1099
  %v1283 = vsub.f32 %v127, %v1100
  %v1284 = vsub.f32 %v128, %v1100
  %v1285 = vsub.f32 %v129, %v1101
  %v1286 = vsub.f32 %v130, %v1101
  %v1287 = vsub.f32 %v131, %v1102
  %v1288 = vsub.f32 %v132, %v1102
  %v1289 = vsub.f32 %v133, %v1103
  %v1290 = vsub.f32 %v134, %v1103
  %v1291 = vsub.f32 %v135, %v1104
  %v1292 = vsub.f32 %v136, %v1104
  %v1293 = vsub.f32 %v137, %v1105
  %v1294 = vsub.f32 %v138, %v1105
  %v1295 = vsub.f32 %v139, %v1106
  %v1296 = vsub.f32 %v140, %v1106
  %v1297 = vsub.f32 %v141, %v1107
  %v1298 = vsub.f32 %v142, %v1107
  %v1299 = vsub.f32 %v143, %v1108
  %v1300 = vsub.f32 %v144, %v1108
  %v1301 = vsub.f32 %v145, %v1109
  %v1302 = vsub.f32 %v146, %v1109
  %v1303 = vsub.f32 %v147, %v1110
  %v1304 = vsub.f32 %v148, %v1110
  %v1305 = vsub.f32 %v149, %v1111
  %v1306 = vsub.f32 %v150, %v1111
  %v1307 = vsub.f32 %v151, %v1112
  %v1308 = vsub.f32 %v152, %v1112
  %v1309 = vsub.f32 %v153, %v1113
  %v1310 = vsub.f32 %v154, %v1113
  %v1311 = vsub.f32 %v155, %v1114
  %v1312 = vsub.f32 %v156, %v1114
  %v1313 = vsub.f32 %v157, %v1115
  %v1314 = vsub.f32 %v158, %v1115
  %v1315 = vsub.f32 %v159, %v1116
  %v1316 = vsub.f32 %v160, %v1116
  %v1317 = vsub.f32 %v161, %v1117
  %v1318 = vsub.f32 %v162, %v1117
  %v1319 = vsub.f32 %v163, %v1118
  %v1320 = vsub.f32 %v164, %v1118
  %v1321 = vsub.f32 %v165, %v1119
  %v1322 = vsub.f32 %v166, %v1119
  %v1323 = vsub.f32 %v167, %v1120
  %v1324 = vsub.f32 %v168, %v1120
  %v1325 = vsub.f32 %v169, %v1121
  %v1326 = vsub.f32 %v170, %v1121
  %v1327 = vsub.f32 %v171, %v1122
  %v1328 = vsub.f32 %v172, %v1122
  %v1329 = vsub.f32 %v173, %v1123
  %v1330 = vsub.f32 %v174, %v1123
  %v1331 = vsub.f32 %v175, %v1124
  %v1332 = vsub.f32 %v176, %v1124
  %v1333 = vsub.f32 %v177, %v1125
  %v1334 = vsub.f32 %v178, %v1125
  %v1335 = vsub.f32 %v179, %v1126
  %v1336 = vsub.f32 %v180, %v1126
  %v1337 = vsub.f32 %v181, %v1127
  %v1338 = vsub.f32 %v182, %v1127
  %v1339 = vsub.f32 %v183, %v1128
  %v1340 = vsub.f32 %v184, %v1128
  %v1341 = vsub.f32 %v185, %v1129
  %v1342 = vsub.f32 %v186, %v1129
  %v1343 = vsub.f32 %v187, %v1130
  %v1344 = vsub.f32 %v188, %v1130
  %v1345 = vsub.f32 %v189, %v1131
  %v1346 = vsub.f32 %v190, %v1131
  %v1347 = vsub.f32 %v191, %v1132
  %v1348 = vsub.f32 %v192, %v1132
  %v1349 = vsub.f32 %v193, %v1133
  %v1350 = vsub.f32 %v194, %v1133
  %v1351 = vsub.f32 %v195, %v1134
  %v1352 = vsub.f32 %v196, %v1134
  %v1353 = vsub.f32 %v197, %v1135
  %v1354 = vsub.f32 %v198, %v1135
  %v1355 = vsub.f32 %v199, %v1136
  %v1356 = vsub.f32 %v200, %v1136
  %v1357 = vsub.f32 %v201, %v1137
  %v1358 = vsub.f32 %v202, %v1137
  %v1359 = vsub.f32 %v203, %v1138
  %v1360 = vsub.f32 %v204, %v1138
  %v1361 = vsub.f32 %v205, %v1139
  %v1362 = vsub.f32 %v206, %v1139
  %v1363 = vsub.f32 %v207, %v1140
  %v1364 = vsub.f32 %v208, %v1140
  %v1365 = vsub.f32 %v209, %v1141
  %v1366 = vsub.f32 %v210, %v1141
  %v1367 = vsub.f32 %v211, %v1142
  %v1368 = vsub.f32 %v212, %v1142
  %v1369 = vsub.f32 %v213, %v1143
  %v1370 = vsub.f32 %v214, %v1143
  %v1371 = vsub.f32 %v215, %v1144
  %v1372 = vsub.f32 %v216, %v1144
  %v1373 = vsub.f32 %v217, %v1145
  %v1374 = vsub.f32 %v218, %v1145
  %v1375 = vsub.f32 %v219, %v1146
  %v1376 = vsub.f32 %v220, %v1146
  %v1377 = vsub.f32 %v221, %v1147
  %v1378 = vsub.f32 %v222, %v1147
  %v1379 = vsub.f32 %v223, %v1148
  %v1380 = vsub.f32 %v224, %v1148
  %v1381 = vsub.f32 %v225, %v1149
  %v1382 = vsub.f32 %v226, %v1149
  %v1383 = vsub.f32 %v227, %v1150
  %v1384 = vsub.f32 %v228, %v1150
  %v1385 = vsub.f32 %v229, %v1151
  %v1386 = vsub.f32 %v230, %v1151
  %v1387 = vsub.f32 %v231, %v1152
  %v1388 = vsub.f32 %v232, %v1152
  %v1389 = vsub.f32 %v233, %v1153
  %v1390 = vsub.f32 %v234, %v1153
  %v1391 = vsub.f32 %v235, %v1154
  %v1392 = vsub.f32 %v236, %v1154
  %v1393 = vsub.f32 %v237, %v1155
  %v1394 = vsub.f32 %v238, %v1155
  %v1395 = vsub.f32 %v239, %v1156
  %v1396 = vsub.f32 %v240, %v1156
  %v1397 = vsub.f32 %v241, %v1157
  %v1398 = vsub.f32 %v242, %v1157
  %v1399 = vsub.f32 %v243, %v1158
  %v1400 = vsub.f32 %v244, %v1158
  %v1401 = vsub.f32 %v245, %v1159
  %v1402 = vsub.f32 %v246, %v1159
  %v1403 = vsub.f32 %v247, %v1160
  %v1404 = vsub.f32 %v248, %v1160
  %v1405 = vsub.f32 %v249, %v1161
  %v1406 = vsub.f32 %v250, %v1161
  %v1407 = vsub.f32 %v251, %v1162
  %v1408 = vsub.f32 %v252, %v1162
  %v1409 = vsub.f32 %v253, %v1163
  %v1410 = vsub.f32 %v254, %v1163
  %v1411 = vsub.f32 %v255, %v1164
  %v1412 = vsub.f32 %v256, %v1164
  %v1413 = vsub.f32 %v257, %v1165
  %v1414 = vsub.f32 %v258, %v1165
  %v1415 = vsub.f32 %v259, %v1166
  %v1416 = vsub.f32 %v260, %v1166
  %v1417 = vsub.f32 %v261, %v1167
  %v1418 = vsub.f32 %v262, %v1167
  %v1419 = vsub.f32 %v263, %v1168
  %v1420 = vsub.f32 %v264, %v1168
  %v1421 = vsub.f32 %v265, %v1169
  %v1422 = vsub.f32 %v266, %v1169
  %v1423 = vsub.f32 %v267, %v1170
  %v1424 = vsub.f32 %v268, %v1170
  %v1425 = vsub.f32 %v269, %v1171
  %v1426 = vsub.f32 %v270, %v1171
  %v1427 = vsub.f32 %v271, %v1172
  %v1428 = vsub.f32 %v272, %v1172
  %v1429 = vmul.f32 %v1173, %v1173
  %v1430 = vmul.f32 %v1174, %v1174
  %v1431 = vmul.f32 %v1175, %v1175
  %v1432 = vmul.f32 %v1176, %v1176
  %v1433 = vmul.f32 %v1177, %v1177
  %v1434 = vmul.f32 %v1178, %v1178
  %v1435 = vmul.f32 %v1179, %v1179
  %v1436 = vmul.f32 %v1180, %v1180
  %v1437 = vmul.f32 %v1181, %v1181
  %v1438 = vmul.f32 %v1182, %v1182
  %v1439 = vmul.f32 %v1183, %v1183
  %v1440 = vmul.f32 %v1184, %v1184
  %v1441 = vmul.f32 %v1185, %v1185
  %v1442 = vmul.f32 %v1186, %v1186
  %v1443 = vmul.f32 %v1187, %v1187
  %v1444 = vmul.f32 %v1188, %v1188
  %v1445 = vmul.f32 %v1189, %v1189
  %v1446 = vmul.f32 %v1190, %v1190
  %v1447 = vmul.f32 %v1191, %v1191
  %v1448 = vmul.f32 %v1192, %v1192
  %v1449 = vmul.f32 %v1193, %v1193
  %v1450 = vmul.f32 %v1194, %v1194
  %v1451 = vmul.f32 %v1195, %v1195
  %v1452 = vmul.f32 %v1196, %v1196
  %v1453 = vmul.f32 %v1197, %v1197
  %v1454 = vmul.f32 %v1198, %v1198
  %v1455 = vmul.f32 %v1199, %v1199
  %v1456 = vmul.f32 %v1200, %v1200
  %v1457 = vmul.f32 %v1201, %v1201
  %v1458 = vmul.f32 %v1202, %v1202
  %v1459 = vmul.f32 %v1203, %v1203
  %v1460 = vmul.f32 %v1204, %v1204
  %v1461 = vmul.f32 %v1205, %v1205
  %v1462 = vmul.f32 %v1206, %v1206
  %v1463 = vmul.f32 %v1207, %v1207
  %v1464 = vmul.f32 %v1208, %v1208
  %v1465 = vmul.f32 %v1209, %v1209
  %v1466 = vmul.f32 %v1210, %v1210
  %v1467 = vmul.f32 %v1211, %v1211
  %v1468 = vmul.f32 %v1212, %v1212
  %v1469 = vmul.f32 %v1213, %v1213
  %v1470 = vmul.f32 %v1214, %v1214
  %v1471 = vmul.f32 %v1215, %v1215
  %v1472 = vmul.f32 %v1216, %v1216
  %v1473 = vmul.f32 %v1217, %v1217
  %v1474 = vmul.f32 %v1218, %v1218
  %v1475 = vmul.f32 %v1219, %v1219
  %v1476 = vmul.f32 %v1220, %v1220
  %v1477 = vmul.f32 %v1221, %v1221
  %v1478 = vmul.f32 %v1222, %v1222
  %v1479 = vmul.f32 %v1223, %v1223
  %v1480 = vmul.f32 %v1224, %v1224
  %v1481 = vmul.f32 %v1225, %v1225
  %v1482 = vmul.f32 %v1226, %v1226
  %v1483 = vmul.f32 %v1227, %v1227
  %v1484 = vmul.f32 %v1228, %v1228
  %v1485 = vmul.f32 %v1229, %v1229
  %v1486 = vmul.f32 %v1230, %v1230
  %v1487 = vmul.f32 %v1231, %v1231
  %v1488 = vmul.f32 %v1232, %v1232
  %v1489 = vmul.f32 %v1233, %v1233
  %v1490 = vmul.f32 %v1234, %v1234
  %v1491 = vmul.f32 %v1235, %v1235
  %v1492 = vmul.f32 %v1236, %v1236
  %v1493 = vmul.f32 %v1237, %v1237
  %v1494 = vmul.f32 %v1238, %v1238
  %v1495 = vmul.f32 %v1239, %v1239
  %v1496 = vmul.f32 %v1240, %v1240
  %v1497 = vmul.f32 %v1241, %v1241
  %v1498 = vmul.f32 %v1242, %v1242
  %v1499 = vmul.f32 %v1243, %v1243
  %v1500 = vmul.f32 %v1244, %v1244
  %v1501 = vmul.f32 %v1245, %v1245
  %v1502 = vmul.f32 %v1246, %v1246
  %v1503 = vmul.f32 %v1247, %v1247
  %v1504 = vmul.f32 %v1248, %v1248
  %v1505 = vmul.f32 %v1249, %v1249
  %v1506 = vmul.f32 %v1250, %v1250
  %v1507 = vmul.f32 %v1251, %v1251
  %v1508 = vmul.f32 %v1252, %v1252
  %v1509 = vmul.f32 %v1253, %v1253
  %v1510 = vmul.f32 %v1254, %v1254
  %v1511 = vmul.f32 %v1255, %v1255
  %v1512 = vmul.f32 %v1256, %v1256
  %v1513 = vmul.f32 %v1257, %v1257
  %v1514 = vmul.f32 %v1258, %v1258
  %v1515 = vmul.f32 %v1259, %v1259
  %v1516 = vmul.f32 %v1260, %v1260
  %v1517 = vmul.f32 %v1261, %v1261
  %v1518 = vmul.f32 %v1262, %v1262
  %v1519 = vmul.f32 %v1263, %v1263
  %v1520 = vmul.f32 %v1264, %v1264
  %v1521 = vmul.f32 %v1265, %v1265
  %v1522 = vmul.f32 %v1266, %v1266
  %v1523 = vmul.f32 %v1267, %v1267
  %v1524 = vmul.f32 %v1268, %v1268
  %v1525 = vmul.f32 %v1269, %v1269
  %v1526 = vmul.f32 %v1270, %v1270
  %v1527 = vmul.f32 %v1271, %v1271
  %v1528 = vmul.f32 %v1272, %v1272
  %v1529 = vmul.f32 %v1273, %v1273
  %v1530 = vmul.f32 %v1274, %v1274
  %v1531 = vmul.f32 %v1275, %v1275
  %v1532 = vmul.f32 %v1276, %v1276
  %v1533 = vmul.f32 %v1277, %v1277
  %v1534 = vmul.f32 %v1278, %v1278
  %v1535 = vmul.f32 %v1279, %v1279
  %v1536 = vmul.f32 %v1280, %v1280
  %v1537 = vmul.f32 %v1281, %v1281
  %v1538 = vmul.f32 %v1282, %v1282
  %v1539 = vmul.f32 %v1283, %v1283
  %v1540 = vmul.f32 %v1284, %v1284
  %v1541 = vmul.f32 %v1285, %v1285
  %v1542 = vmul.f32 %v1286, %v1286
  %v1543 = vmul.f32 %v1287, %v1287
  %v1544 = vmul.f32 %v1288, %v1288
  %v1545 = vmul.f32 %v1289, %v1289
  %v1546 = vmul.f32 %v1290, %v1290
  %v1547 = vmul.f32 %v1291, %v1291
  %v1548 = vmul.f32 %v1292, %v1292
  %v1549 = vmul.f32 %v1293, %v1293
  %v1550 = vmul.f32 %v1294, %v1294
  %v1551 = vmul.f32 %v1295, %v1295
  %v1552 = vmul.f32 %v1296, %v1296
  %v1553 = vmul.f32 %v1297, %v1297
  %v1554 = vmul.f32 %v1298, %v1298
  %v1555 = vmul.f32 %v1299, %v1299
  %v1556 = vmul.f32 %v1300, %v1300
  %v1557 = vmul.f32 %v1301, %v1301
  %v1558 = vmul.f32 %v1302, %v1302
  %v1559 = vmul.f32 %v1303, %v1303
  %v1560 = vmul.f32 %v1304, %v1304
  %v1561 = vmul.f32 %v1305, %v1305
  %v1562 = vmul.f32 %v1306, %v1306
  %v1563 = vmul.f32 %v1307, %v1307
  %v1564 = vmul.f32 %v1308, %v1308
  %v1565 = vmul.f32 %v1309, %v1309
  %v1566 = vmul.f32 %v1310, %v1310
  %v1567 = vmul.f32 %v1311, %v1311
  %v1568 = vmul.f32 %v1312, %v1312
  %v1569 = vmul.f32 %v1313, %v1313
  %v1570 = vmul.f32 %v1314, %v1314
  %v1571 = vmul.f32 %v1315, %v1315
  %v1572 = vmul.f32 %v1316, %v1316
  %v1573 = vmul.f32 %v1317, %v1317
  %v1574 = vmul.f32 %v1318, %v1318
  %v1575 = vmul.f32 %v1319, %v1319
  %v1576 = vmul.f32 %v1320, %v1320
  %v1577 = vmul.f32 %v1321, %v1321
  %v1578 = vmul.f32 %v1322, %v1322
  %v1579 = vmul.f32 %v1323, %v1323
  %v1580 = vmul.f32 %v1324, %v1324
  %v1581 = vmul.f32 %v1325, %v1325
  %v1582 = vmul.f32 %v1326, %v1326
  %v1583 = vmul.f32 %v1327, %v1327
  %v1584 = vmul.f32 %v1328, %v1328
  %v1585 = vmul.f32 %v1329, %v1329
  %v1586 = vmul.f32 %v1330, %v1330
  %v1587 = vmul.f32 %v1331, %v1331
  %v1588 = vmul.f32 %v1332, %v1332
  %v1589 = vmul.f32 %v1333, %v1333
  %v1590 = vmul.f32 %v1334, %v1334
  %v1591 = vmul.f32 %v1335, %v1335
  %v1592 = vmul.f32 %v1336, %v1336
  %v1593 = vmul.f32 %v1337, %v1337
  %v1594 = vmul.f32 %v1338, %v1338
  %v1595 = vmul.f32 %v1339, %v1339
  %v1596 = vmul.f32 %v1340, %v1340
  %v1597 = vmul.f32 %v1341, %v1341
  %v1598 = vmul.f32 %v1342, %v1342
  %v1599 = vmul.f32 %v1343, %v1343
  %v1600 = vmul.f32 %v1344, %v1344
  %v1601 = vmul.f32 %v1345, %v1345
  %v1602 = vmul.f32 %v1346, %v1346
  %v1603 = vmul.f32 %v1347, %v1347
  %v1604 = vmul.f32 %v1348, %v1348
  %v1605 = vmul.f32 %v1349, %v1349
  %v1606 = vmul.f32 %v1350, %v1350
  %v1607 = vmul.f32 %v1351, %v1351
  %v1608 = vmul.f32 %v1352, %v1352
  %v1609 = vmul.f32 %v1353, %v1353
  %v1610 = vmul.f32 %v1354, %v1354
  %v1611 = vmul.f32 %v1355, %v1355
  %v1612 = vmul.f32 %v1356, %v1356
  %v1613 = vmul.f32 %v1357, %v1357
  %v1614 = vmul.f32 %v1358, %v1358
  %v1615 = vmul.f32 %v1359, %v1359
  %v1616 = vmul.f32 %v1360, %v1360
  %v1617 = vmul.f32 %v1361, %v1361
  %v1618 = vmul.f32 %v1362, %v1362
  %v1619 = vmul.f32 %v1363, %v1363
  %v1620 = vmul.f32 %v1364, %v1364
  %v1621 = vmul.f32 %v1365, %v1365
  %v1622 = vmul.f32 %v1366, %v1366
  %v1623 = vmul.f32 %v1367, %v1367
  %v1624 = vmul.f32 %v1368, %v1368
  %v1625 = vmul.f32 %v1369, %v1369
  %v1626 = vmul.f32 %v1370, %v1370
  %v1627 = vmul.f32 %v1371, %v1371
  %v1628 = vmul.f32 %v1372, %v1372
  %v1629 = vmul.f32 %v1373, %v1373
  %v1630 = vmul.f32 %v1374, %v1374
  %v1631 = vmul.f32 %v1375, %v1375
  %v1632 = vmul.f32 %v1376, %v1376
  %v1633 = vmul.f32 %v1377, %v1377
  %v1634 = vmul.f32 %v1378, %v1378
  %v1635 = vmul.f32 %v1379, %v1379
  %v1636 = vmul.f32 %v1380, %v1380
  %v1637 = vmul.f32 %v1381, %v1381
  %v1638 = vmul.f32 %v1382, %v1382
  %v1639 = vmul.f32 %v1383, %v1383
  %v1640 = vmul.f32 %v1384, %v1384
  %v1641 = vmul.f32 %v1385, %v1385
  %v1642 = vmul.f32 %v1386, %v1386
  %v1643 = vmul.f32 %v1387, %v1387
  %v1644 = vmul.f32 %v1388, %v1388
  %v1645 = vmul.f32 %v1389, %v1389
  %v1646 = vmul.f32 %v1390, %v1390
  %v1647 = vmul.f32 %v1391, %v1391
  %v1648 = vmul.f32 %v1392, %v1392
  %v1649 = vmul.f32 %v1393, %v1393
  %v1650 = vmul.f32 %v1394, %v1394
  %v1651 = vmul.f32 %v1395, %v1395
  %v1652 = vmul.f32 %v1396, %v1396
  %v1653 = vmul.f32 %v1397, %v1397
  %v1654 = vmul.f32 %v1398, %v1398
  %v1655 = vmul.f32 %v1399, %v1399
  %v1656 = vmul.f32 %v1400, %v1400
  %v1657 = vmul.f32 %v1401, %v1401
  %v1658 = vmul.f32 %v1402, %v1402
  %v1659 = vmul.f32 %v1403, %v1403
  %v1660 = vmul.f32 %v1404, %v1404
  %v1661 = vmul.f32 %v1405, %v1405
  %v1662 = vmul.f32 %v1406, %v1406
  %v1663 = vmul.f32 %v1407, %v1407
  %v1664 = vmul.f32 %v1408, %v1408
  %v1665 = vmul.f32 %v1409, %v1409
  %v1666 = vmul.f32 %v1410, %v1410
  %v1667 = vmul.f32 %v1411, %v1411
  %v1668 = vmul.f32 %v1412, %v1412
  %v1669 = vmul.f32 %v1413, %v1413
  %v1670 = vmul.f32 %v1414, %v1414
  %v1671 = vmul.f32 %v1415, %v1415
  %v1672 = vmul.f32 %v1416, %v1416
  %v1673 = vmul.f32 %v1417, %v1417
  %v1674 = vmul.f32 %v1418, %v1418
  %v1675 = vmul.f32 %v1419, %v1419
  %v1676 = vmul.f32 %v1420, %v1420
  %v1677 = vmul.f32 %v1421, %v1421
  %v1678 = vmul.f32 %v1422, %v1422
  %v1679 = vmul.f32 %v1423, %v1423
  %v1680 = vmul.f32 %v1424, %v1424
  %v1681 = vmul.f32 %v1425, %v1425
  %v1682 = vmul.f32 %v1426, %v1426
  %v1683 = vmul.f32 %v1427, %v1427
  %v1684 = vmul.f32 %v1428, %v1428
  %v1685 = vsel %vm532, %v1430, 0.0
  %v1686 = vadd.f32 %v1429, %v1685
  %1687 = vadd.xlane.f32.xlu0 %v1686
  %v1688 = vpop.xlane.xlu0 %1687
  %v1689 = vsel %vm532, %v1432, 0.0
  %v1690 = vadd.f32 %v1431, %v1689
  %1691 = vadd.xlane.f32.xlu0 %v1690
  %v1692 = vpop.xlane.xlu0 %1691
  %v1693 = vsel %vm532, %v1434, 0.0
  %v1694 = vadd.f32 %v1433, %v1693
  %1695 = vadd.xlane.f32.xlu0 %v1694
  %v1696 = vpop.xlane.xlu0 %1695
  %v1697 = vsel %vm532, %v1436, 0.0
  %v1698 = vadd.f32 %v1435, %v1697
  %1699 = vadd.xlane.f32.xlu0 %v1698
  %v1700 = vpop.xlane.xlu0 %1699
  %v1701 = vsel %vm532, %v1438, 0.0
  %v1702 = vadd.f32 %v1437, %v1701
  %1703 = vadd.xlane.f32.xlu0 %v1702
  %v1704 = vpop.xlane.xlu0 %1703
  %v1705 = vsel %vm532, %v1440, 0.0
  %v1706 = vadd.f32 %v1439, %v1705
  %1707 = vadd.xlane.f32.xlu0 %v1706
  %v1708 = vpop.xlane.xlu0 %1707
  %v1709 = vsel %vm532, %v1442, 0.0
  %v1710 = vadd.f32 %v1441, %v1709
  %1711 = vadd.xlane.f32.xlu0 %v1710
  %v1712 = vpop.xlane.xlu0 %1711
  %v1713 = vsel %vm532, %v1444, 0.0
  %v1714 = vadd.f32 %v1443, %v1713
  %1715 = vadd.xlane.f32.xlu0 %v1714
  %v1716 = vpop.xlane.xlu0 %1715
  %v1717 = vsel %vm532, %v1446, 0.0
  %v1718 = vadd.f32 %v1445, %v1717
  %1719 = vadd.xlane.f32.xlu0 %v1718
  %v1720 = vpop.xlane.xlu0 %1719
  %v1721 = vsel %vm532, %v1448, 0.0
  %v1722 = vadd.f32 %v1447, %v1721
  %1723 = vadd.xlane.f32.xlu0 %v1722
  %v1724 = vpop.xlane.xlu0 %1723
  %v1725 = vsel %vm532, %v1450, 0.0
  %v1726 = vadd.f32 %v1449, %v1725
  %1727 = vadd.xlane.f32.xlu0 %v1726
  %v1728 = vpop.xlane.xlu0 %1727
  %v1729 = vsel %vm532, %v1452, 0.0
  %v1730 = vadd.f32 %v1451, %v1729
  %1731 = vadd.xlane.f32.xlu0 %v1730
  %v1732 = vpop.xlane.xlu0 %1731
  %v1733 = vsel %vm532, %v1454, 0.0
  %v1734 = vadd.f32 %v1453, %v1733
  %1735 = vadd.xlane.f32.xlu0 %v1734
  %v1736 = vpop.xlane.xlu0 %1735
  %v1737 = vsel %vm532, %v1456, 0.0
  %v1738 = vadd.f32 %v1455, %v1737
  %1739 = vadd.xlane.f32.xlu0 %v1738
  %v1740 = vpop.xlane.xlu0 %1739
  %v1741 = vsel %vm532, %v1458, 0.0
  %v1742 = vadd.f32 %v1457, %v1741
  %1743 = vadd.xlane.f32.xlu0 %v1742
  %v1744 = vpop.xlane.xlu0 %1743
  %v1745 = vsel %vm532, %v1460, 0.0
  %v1746 = vadd.f32 %v1459, %v1745
  %1747 = vadd.xlane.f32.xlu0 %v1746
  %v1748 = vpop.xlane.xlu0 %1747
  %v1749 = vsel %vm532, %v1462, 0.0
  %v1750 = vadd.f32 %v1461, %v1749
  %1751 = vadd.xlane.f32.xlu0 %v1750
  %v1752 = vpop.xlane.xlu0 %1751
  %v1753 = vsel %vm532, %v1464, 0.0
  %v1754 = vadd.f32 %v1463, %v1753
  %1755 = vadd.xlane.f32.xlu0 %v1754
  %v1756 = vpop.xlane.xlu0 %1755
  %v1757 = vsel %vm532, %v1466, 0.0
  %v1758 = vadd.f32 %v1465, %v1757
  %1759 = vadd.xlane.f32.xlu0 %v1758
  %v1760 = vpop.xlane.xlu0 %1759
  %v1761 = vsel %vm532, %v1468, 0.0
  %v1762 = vadd.f32 %v1467, %v1761
  %1763 = vadd.xlane.f32.xlu0 %v1762
  %v1764 = vpop.xlane.xlu0 %1763
  %v1765 = vsel %vm532, %v1470, 0.0
  %v1766 = vadd.f32 %v1469, %v1765
  %1767 = vadd.xlane.f32.xlu0 %v1766
  %v1768 = vpop.xlane.xlu0 %1767
  %v1769 = vsel %vm532, %v1472, 0.0
  %v1770 = vadd.f32 %v1471, %v1769
  %1771 = vadd.xlane.f32.xlu0 %v1770
  %v1772 = vpop.xlane.xlu0 %1771
  %v1773 = vsel %vm532, %v1474, 0.0
  %v1774 = vadd.f32 %v1473, %v1773
  %1775 = vadd.xlane.f32.xlu0 %v1774
  %v1776 = vpop.xlane.xlu0 %1775
  %v1777 = vsel %vm532, %v1476, 0.0
  %v1778 = vadd.f32 %v1475, %v1777
  %1779 = vadd.xlane.f32.xlu0 %v1778
  %v1780 = vpop.xlane.xlu0 %1779
  %v1781 = vsel %vm532, %v1478, 0.0
  %v1782 = vadd.f32 %v1477, %v1781
  %1783 = vadd.xlane.f32.xlu0 %v1782
  %v1784 = vpop.xlane.xlu0 %1783
  %v1785 = vsel %vm532, %v1480, 0.0
  %v1786 = vadd.f32 %v1479, %v1785
  %1787 = vadd.xlane.f32.xlu0 %v1786
  %v1788 = vpop.xlane.xlu0 %1787
  %v1789 = vsel %vm532, %v1482, 0.0
  %v1790 = vadd.f32 %v1481, %v1789
  %1791 = vadd.xlane.f32.xlu0 %v1790
  %v1792 = vpop.xlane.xlu0 %1791
  %v1793 = vsel %vm532, %v1484, 0.0
  %v1794 = vadd.f32 %v1483, %v1793
  %1795 = vadd.xlane.f32.xlu0 %v1794
  %v1796 = vpop.xlane.xlu0 %1795
  %v1797 = vsel %vm532, %v1486, 0.0
  %v1798 = vadd.f32 %v1485, %v1797
  %1799 = vadd.xlane.f32.xlu0 %v1798
  %v1800 = vpop.xlane.xlu0 %1799
  %v1801 = vsel %vm532, %v1488, 0.0
  %v1802 = vadd.f32 %v1487, %v1801
  %1803 = vadd.xlane.f32.xlu0 %v1802
  %v1804 = vpop.xlane.xlu0 %1803
  %v1805 = vsel %vm532, %v1490, 0.0
  %v1806 = vadd.f32 %v1489, %v1805
  %1807 = vadd.xlane.f32.xlu0 %v1806
  %v1808 = vpop.xlane.xlu0 %1807
  %v1809 = vsel %vm532, %v1492, 0.0
  %v1810 = vadd.f32 %v1491, %v1809
  %1811 = vadd.xlane.f32.xlu0 %v1810
  %v1812 = vpop.xlane.xlu0 %1811
  %v1813 = vsel %vm532, %v1494, 0.0
  %v1814 = vadd.f32 %v1493, %v1813
  %1815 = vadd.xlane.f32.xlu0 %v1814
  %v1816 = vpop.xlane.xlu0 %1815
  %v1817 = vsel %vm532, %v1496, 0.0
  %v1818 = vadd.f32 %v1495, %v1817
  %1819 = vadd.xlane.f32.xlu0 %v1818
  %v1820 = vpop.xlane.xlu0 %1819
  %v1821 = vsel %vm532, %v1498, 0.0
  %v1822 = vadd.f32 %v1497, %v1821
  %1823 = vadd.xlane.f32.xlu0 %v1822
  %v1824 = vpop.xlane.xlu0 %1823
  %v1825 = vsel %vm532, %v1500, 0.0
  %v1826 = vadd.f32 %v1499, %v1825
  %1827 = vadd.xlane.f32.xlu0 %v1826
  %v1828 = vpop.xlane.xlu0 %1827
  %v1829 = vsel %vm532, %v1502, 0.0
  %v1830 = vadd.f32 %v1501, %v1829
  %1831 = vadd.xlane.f32.xlu0 %v1830
  %v1832 = vpop.xlane.xlu0 %1831
  %v1833 = vsel %vm532, %v1504, 0.0
  %v1834 = vadd.f32 %v1503, %v1833
  %1835 = vadd.xlane.f32.xlu0 %v1834
  %v1836 = vpop.xlane.xlu0 %1835
  %v1837 = vsel %vm532, %v1506, 0.0
  %v1838 = vadd.f32 %v1505, %v1837
  %1839 = vadd.xlane.f32.xlu0 %v1838
  %v1840 = vpop.xlane.xlu0 %1839
  %v1841 = vsel %vm532, %v1508, 0.0
  %v1842 = vadd.f32 %v1507, %v1841
  %1843 = vadd.xlane.f32.xlu0 %v1842
  %v1844 = vpop.xlane.xlu0 %1843
  %v1845 = vsel %vm532, %v1510, 0.0
  %v1846 = vadd.f32 %v1509, %v1845
  %1847 = vadd.xlane.f32.xlu0 %v1846
  %v1848 = vpop.xlane.xlu0 %1847
  %v1849 = vsel %vm532, %v1512, 0.0
  %v1850 = vadd.f32 %v1511, %v1849
  %1851 = vadd.xlane.f32.xlu0 %v1850
  %v1852 = vpop.xlane.xlu0 %1851
  %v1853 = vsel %vm532, %v1514, 0.0
  %v1854 = vadd.f32 %v1513, %v1853
  %1855 = vadd.xlane.f32.xlu0 %v1854
  %v1856 = vpop.xlane.xlu0 %1855
  %v1857 = vsel %vm532, %v1516, 0.0
  %v1858 = vadd.f32 %v1515, %v1857
  %1859 = vadd.xlane.f32.xlu0 %v1858
  %v1860 = vpop.xlane.xlu0 %1859
  %v1861 = vsel %vm532, %v1518, 0.0
  %v1862 = vadd.f32 %v1517, %v1861
  %1863 = vadd.xlane.f32.xlu0 %v1862
  %v1864 = vpop.xlane.xlu0 %1863
  %v1865 = vsel %vm532, %v1520, 0.0
  %v1866 = vadd.f32 %v1519, %v1865
  %1867 = vadd.xlane.f32.xlu0 %v1866
  %v1868 = vpop.xlane.xlu0 %1867
  %v1869 = vsel %vm532, %v1522, 0.0
  %v1870 = vadd.f32 %v1521, %v1869
  %1871 = vadd.xlane.f32.xlu0 %v1870
  %v1872 = vpop.xlane.xlu0 %1871
  %v1873 = vsel %vm532, %v1524, 0.0
  %v1874 = vadd.f32 %v1523, %v1873
  %1875 = vadd.xlane.f32.xlu0 %v1874
  %v1876 = vpop.xlane.xlu0 %1875
  %v1877 = vsel %vm532, %v1526, 0.0
  %v1878 = vadd.f32 %v1525, %v1877
  %1879 = vadd.xlane.f32.xlu0 %v1878
  %v1880 = vpop.xlane.xlu0 %1879
  %v1881 = vsel %vm532, %v1528, 0.0
  %v1882 = vadd.f32 %v1527, %v1881
  %1883 = vadd.xlane.f32.xlu0 %v1882
  %v1884 = vpop.xlane.xlu0 %1883
  %v1885 = vsel %vm532, %v1530, 0.0
  %v1886 = vadd.f32 %v1529, %v1885
  %1887 = vadd.xlane.f32.xlu0 %v1886
  %v1888 = vpop.xlane.xlu0 %1887
  %v1889 = vsel %vm532, %v1532, 0.0
  %v1890 = vadd.f32 %v1531, %v1889
  %1891 = vadd.xlane.f32.xlu0 %v1890
  %v1892 = vpop.xlane.xlu0 %1891
  %v1893 = vsel %vm532, %v1534, 0.0
  %v1894 = vadd.f32 %v1533, %v1893
  %1895 = vadd.xlane.f32.xlu0 %v1894
  %v1896 = vpop.xlane.xlu0 %1895
  %v1897 = vsel %vm532, %v1536, 0.0
  %v1898 = vadd.f32 %v1535, %v1897
  %1899 = vadd.xlane.f32.xlu0 %v1898
  %v1900 = vpop.xlane.xlu0 %1899
  %v1901 = vsel %vm532, %v1538, 0.0
  %v1902 = vadd.f32 %v1537, %v1901
  %1903 = vadd.xlane.f32.xlu0 %v1902
  %v1904 = vpop.xlane.xlu0 %1903
  %v1905 = vsel %vm532, %v1540, 0.0
  %v1906 = vadd.f32 %v1539, %v1905
  %1907 = vadd.xlane.f32.xlu0 %v1906
  %v1908 = vpop.xlane.xlu0 %1907
  %v1909 = vsel %vm532, %v1542, 0.0
  %v1910 = vadd.f32 %v1541, %v1909
  %1911 = vadd.xlane.f32.xlu0 %v1910
  %v1912 = vpop.xlane.xlu0 %1911
  %v1913 = vsel %vm532, %v1544, 0.0
  %v1914 = vadd.f32 %v1543, %v1913
  %1915 = vadd.xlane.f32.xlu0 %v1914
  %v1916 = vpop.xlane.xlu0 %1915
  %v1917 = vsel %vm532, %v1546, 0.0
  %v1918 = vadd.f32 %v1545, %v1917
  %1919 = vadd.xlane.f32.xlu0 %v1918
  %v1920 = vpop.xlane.xlu0 %1919
  %v1921 = vsel %vm532, %v1548, 0.0
  %v1922 = vadd.f32 %v1547, %v1921
  %1923 = vadd.xlane.f32.xlu0 %v1922
  %v1924 = vpop.xlane.xlu0 %1923
  %v1925 = vsel %vm532, %v1550, 0.0
  %v1926 = vadd.f32 %v1549, %v1925
  %1927 = vadd.xlane.f32.xlu0 %v1926
  %v1928 = vpop.xlane.xlu0 %1927
  %v1929 = vsel %vm532, %v1552, 0.0
  %v1930 = vadd.f32 %v1551, %v1929
  %1931 = vadd.xlane.f32.xlu0 %v1930
  %v1932 = vpop.xlane.xlu0 %1931
  %v1933 = vsel %vm532, %v1554, 0.0
  %v1934 = vadd.f32 %v1553, %v1933
  %1935 = vadd.xlane.f32.xlu0 %v1934
  %v1936 = vpop.xlane.xlu0 %1935
  %v1937 = vsel %vm532, %v1556, 0.0
  %v1938 = vadd.f32 %v1555, %v1937
  %1939 = vadd.xlane.f32.xlu0 %v1938
  %v1940 = vpop.xlane.xlu0 %1939
  %v1941 = vsel %vm532, %v1558, 0.0
  %v1942 = vadd.f32 %v1557, %v1941
  %1943 = vadd.xlane.f32.xlu0 %v1942
  %v1944 = vpop.xlane.xlu0 %1943
  %v1945 = vsel %vm532, %v1560, 0.0
  %v1946 = vadd.f32 %v1559, %v1945
  %1947 = vadd.xlane.f32.xlu0 %v1946
  %v1948 = vpop.xlane.xlu0 %1947
  %v1949 = vsel %vm532, %v1562, 0.0
  %v1950 = vadd.f32 %v1561, %v1949
  %1951 = vadd.xlane.f32.xlu0 %v1950
  %v1952 = vpop.xlane.xlu0 %1951
  %v1953 = vsel %vm532, %v1564, 0.0
  %v1954 = vadd.f32 %v1563, %v1953
  %1955 = vadd.xlane.f32.xlu0 %v1954
  %v1956 = vpop.xlane.xlu0 %1955
  %v1957 = vsel %vm532, %v1566, 0.0
  %v1958 = vadd.f32 %v1565, %v1957
  %1959 = vadd.xlane.f32.xlu0 %v1958
  %v1960 = vpop.xlane.xlu0 %1959
  %v1961 = vsel %vm532, %v1568, 0.0
  %v1962 = vadd.f32 %v1567, %v1961
  %1963 = vadd.xlane.f32.xlu0 %v1962
  %v1964 = vpop.xlane.xlu0 %1963
  %v1965 = vsel %vm532, %v1570, 0.0
  %v1966 = vadd.f32 %v1569, %v1965
  %1967 = vadd.xlane.f32.xlu0 %v1966
  %v1968 = vpop.xlane.xlu0 %1967
  %v1969 = vsel %vm532, %v1572, 0.0
  %v1970 = vadd.f32 %v1571, %v1969
  %1971 = vadd.xlane.f32.xlu0 %v1970
  %v1972 = vpop.xlane.xlu0 %1971
  %v1973 = vsel %vm532, %v1574, 0.0
  %v1974 = vadd.f32 %v1573, %v1973
  %1975 = vadd.xlane.f32.xlu0 %v1974
  %v1976 = vpop.xlane.xlu0 %1975
  %v1977 = vsel %vm532, %v1576, 0.0
  %v1978 = vadd.f32 %v1575, %v1977
  %1979 = vadd.xlane.f32.xlu0 %v1978
  %v1980 = vpop.xlane.xlu0 %1979
  %v1981 = vsel %vm532, %v1578, 0.0
  %v1982 = vadd.f32 %v1577, %v1981
  %1983 = vadd.xlane.f32.xlu0 %v1982
  %v1984 = vpop.xlane.xlu0 %1983
  %v1985 = vsel %vm532, %v1580, 0.0
  %v1986 = vadd.f32 %v1579, %v1985
  %1987 = vadd.xlane.f32.xlu0 %v1986
  %v1988 = vpop.xlane.xlu0 %1987
  %v1989 = vsel %vm532, %v1582, 0.0
  %v1990 = vadd.f32 %v1581, %v1989
  %1991 = vadd.xlane.f32.xlu0 %v1990
  %v1992 = vpop.xlane.xlu0 %1991
  %v1993 = vsel %vm532, %v1584, 0.0
  %v1994 = vadd.f32 %v1583, %v1993
  %1995 = vadd.xlane.f32.xlu0 %v1994
  %v1996 = vpop.xlane.xlu0 %1995
  %v1997 = vsel %vm532, %v1586, 0.0
  %v1998 = vadd.f32 %v1585, %v1997
  %1999 = vadd.xlane.f32.xlu0 %v1998
  %v2000 = vpop.xlane.xlu0 %1999
  %v2001 = vsel %vm532, %v1588, 0.0
  %v2002 = vadd.f32 %v1587, %v2001
  %2003 = vadd.xlane.f32.xlu0 %v2002
  %v2004 = vpop.xlane.xlu0 %2003
  %v2005 = vsel %vm532, %v1590, 0.0
  %v2006 = vadd.f32 %v1589, %v2005
  %2007 = vadd.xlane.f32.xlu0 %v2006
  %v2008 = vpop.xlane.xlu0 %2007
  %v2009 = vsel %vm532, %v1592, 0.0
  %v2010 = vadd.f32 %v1591, %v2009
  %2011 = vadd.xlane.f32.xlu0 %v2010
  %v2012 = vpop.xlane.xlu0 %2011
  %v2013 = vsel %vm532, %v1594, 0.0
  %v2014 = vadd.f32 %v1593, %v2013
  %2015 = vadd.xlane.f32.xlu0 %v2014
  %v2016 = vpop.xlane.xlu0 %2015
  %v2017 = vsel %vm532, %v1596, 0.0
  %v2018 = vadd.f32 %v1595, %v2017
  %2019 = vadd.xlane.f32.xlu0 %v2018
  %v2020 = vpop.xlane.xlu0 %2019
  %v2021 = vsel %vm532, %v1598, 0.0
  %v2022 = vadd.f32 %v1597, %v2021
  %2023 = vadd.xlane.f32.xlu0 %v2022
  %v2024 = vpop.xlane.xlu0 %2023
  %v2025 = vsel %vm532, %v1600, 0.0
  %v2026 = vadd.f32 %v1599, %v2025
  %2027 = vadd.xlane.f32.xlu0 %v2026
  %v2028 = vpop.xlane.xlu0 %2027
  %v2029 = vsel %vm532, %v1602, 0.0
  %v2030 = vadd.f32 %v1601, %v2029
  %2031 = vadd.xlane.f32.xlu0 %v2030
  %v2032 = vpop.xlane.xlu0 %2031
  %v2033 = vsel %vm532, %v1604, 0.0
  %v2034 = vadd.f32 %v1603, %v2033
  %2035 = vadd.xlane.f32.xlu0 %v2034
  %v2036 = vpop.xlane.xlu0 %2035
  %v2037 = vsel %vm532, %v1606, 0.0
  %v2038 = vadd.f32 %v1605, %v2037
  %2039 = vadd.xlane.f32.xlu0 %v2038
  %v2040 = vpop.xlane.xlu0 %2039
  %v2041 = vsel %vm532, %v1608, 0.0
  %v2042 = vadd.f32 %v1607, %v2041
  %2043 = vadd.xlane.f32.xlu0 %v2042
  %v2044 = vpop.xlane.xlu0 %2043
  %v2045 = vsel %vm532, %v1610, 0.0
  %v2046 = vadd.f32 %v1609, %v2045
  %2047 = vadd.xlane.f32.xlu0 %v2046
  %v2048 = vpop.xlane.xlu0 %2047
  %v2049 = vsel %vm532, %v1612, 0.0
  %v2050 = vadd.f32 %v1611, %v2049
  %2051 = vadd.xlane.f32.xlu0 %v2050
  %v2052 = vpop.xlane.xlu0 %2051
  %v2053 = vsel %vm532, %v1614, 0.0
  %v2054 = vadd.f32 %v1613, %v2053
  %2055 = vadd.xlane.f32.xlu0 %v2054
  %v2056 = vpop.xlane.xlu0 %2055
  %v2057 = vsel %vm532, %v1616, 0.0
  %v2058 = vadd.f32 %v1615, %v2057
  %2059 = vadd.xlane.f32.xlu0 %v2058
  %v2060 = vpop.xlane.xlu0 %2059
  %v2061 = vsel %vm532, %v1618, 0.0
  %v2062 = vadd.f32 %v1617, %v2061
  %2063 = vadd.xlane.f32.xlu0 %v2062
  %v2064 = vpop.xlane.xlu0 %2063
  %v2065 = vsel %vm532, %v1620, 0.0
  %v2066 = vadd.f32 %v1619, %v2065
  %2067 = vadd.xlane.f32.xlu0 %v2066
  %v2068 = vpop.xlane.xlu0 %2067
  %v2069 = vsel %vm532, %v1622, 0.0
  %v2070 = vadd.f32 %v1621, %v2069
  %2071 = vadd.xlane.f32.xlu0 %v2070
  %v2072 = vpop.xlane.xlu0 %2071
  %v2073 = vsel %vm532, %v1624, 0.0
  %v2074 = vadd.f32 %v1623, %v2073
  %2075 = vadd.xlane.f32.xlu0 %v2074
  %v2076 = vpop.xlane.xlu0 %2075
  %v2077 = vsel %vm532, %v1626, 0.0
  %v2078 = vadd.f32 %v1625, %v2077
  %2079 = vadd.xlane.f32.xlu0 %v2078
  %v2080 = vpop.xlane.xlu0 %2079
  %v2081 = vsel %vm532, %v1628, 0.0
  %v2082 = vadd.f32 %v1627, %v2081
  %2083 = vadd.xlane.f32.xlu0 %v2082
  %v2084 = vpop.xlane.xlu0 %2083
  %v2085 = vsel %vm532, %v1630, 0.0
  %v2086 = vadd.f32 %v1629, %v2085
  %2087 = vadd.xlane.f32.xlu0 %v2086
  %v2088 = vpop.xlane.xlu0 %2087
  %v2089 = vsel %vm532, %v1632, 0.0
  %v2090 = vadd.f32 %v1631, %v2089
  %2091 = vadd.xlane.f32.xlu0 %v2090
  %v2092 = vpop.xlane.xlu0 %2091
  %v2093 = vsel %vm532, %v1634, 0.0
  %v2094 = vadd.f32 %v1633, %v2093
  %2095 = vadd.xlane.f32.xlu0 %v2094
  %v2096 = vpop.xlane.xlu0 %2095
  %v2097 = vsel %vm532, %v1636, 0.0
  %v2098 = vadd.f32 %v1635, %v2097
  %2099 = vadd.xlane.f32.xlu0 %v2098
  %v2100 = vpop.xlane.xlu0 %2099
  %v2101 = vsel %vm532, %v1638, 0.0
  %v2102 = vadd.f32 %v1637, %v2101
  %2103 = vadd.xlane.f32.xlu0 %v2102
  %v2104 = vpop.xlane.xlu0 %2103
  %v2105 = vsel %vm532, %v1640, 0.0
  %v2106 = vadd.f32 %v1639, %v2105
  %2107 = vadd.xlane.f32.xlu0 %v2106
  %v2108 = vpop.xlane.xlu0 %2107
  %v2109 = vsel %vm532, %v1642, 0.0
  %v2110 = vadd.f32 %v1641, %v2109
  %2111 = vadd.xlane.f32.xlu0 %v2110
  %v2112 = vpop.xlane.xlu0 %2111
  %v2113 = vsel %vm532, %v1644, 0.0
  %v2114 = vadd.f32 %v1643, %v2113
  %2115 = vadd.xlane.f32.xlu0 %v2114
  %v2116 = vpop.xlane.xlu0 %2115
  %v2117 = vsel %vm532, %v1646, 0.0
  %v2118 = vadd.f32 %v1645, %v2117
  %2119 = vadd.xlane.f32.xlu0 %v2118
  %v2120 = vpop.xlane.xlu0 %2119
  %v2121 = vsel %vm532, %v1648, 0.0
  %v2122 = vadd.f32 %v1647, %v2121
  %2123 = vadd.xlane.f32.xlu0 %v2122
  %v2124 = vpop.xlane.xlu0 %2123
  %v2125 = vsel %vm532, %v1650, 0.0
  %v2126 = vadd.f32 %v1649, %v2125
  %2127 = vadd.xlane.f32.xlu0 %v2126
  %v2128 = vpop.xlane.xlu0 %2127
  %v2129 = vsel %vm532, %v1652, 0.0
  %v2130 = vadd.f32 %v1651, %v2129
  %2131 = vadd.xlane.f32.xlu0 %v2130
  %v2132 = vpop.xlane.xlu0 %2131
  %v2133 = vsel %vm532, %v1654, 0.0
  %v2134 = vadd.f32 %v1653, %v2133
  %2135 = vadd.xlane.f32.xlu0 %v2134
  %v2136 = vpop.xlane.xlu0 %2135
  %v2137 = vsel %vm532, %v1656, 0.0
  %v2138 = vadd.f32 %v1655, %v2137
  %2139 = vadd.xlane.f32.xlu0 %v2138
  %v2140 = vpop.xlane.xlu0 %2139
  %v2141 = vsel %vm532, %v1658, 0.0
  %v2142 = vadd.f32 %v1657, %v2141
  %2143 = vadd.xlane.f32.xlu0 %v2142
  %v2144 = vpop.xlane.xlu0 %2143
  %v2145 = vsel %vm532, %v1660, 0.0
  %v2146 = vadd.f32 %v1659, %v2145
  %2147 = vadd.xlane.f32.xlu0 %v2146
  %v2148 = vpop.xlane.xlu0 %2147
  %v2149 = vsel %vm532, %v1662, 0.0
  %v2150 = vadd.f32 %v1661, %v2149
  %2151 = vadd.xlane.f32.xlu0 %v2150
  %v2152 = vpop.xlane.xlu0 %2151
  %v2153 = vsel %vm532, %v1664, 0.0
  %v2154 = vadd.f32 %v1663, %v2153
  %2155 = vadd.xlane.f32.xlu0 %v2154
  %v2156 = vpop.xlane.xlu0 %2155
  %v2157 = vsel %vm532, %v1666, 0.0
  %v2158 = vadd.f32 %v1665, %v2157
  %2159 = vadd.xlane.f32.xlu0 %v2158
  %v2160 = vpop.xlane.xlu0 %2159
  %v2161 = vsel %vm532, %v1668, 0.0
  %v2162 = vadd.f32 %v1667, %v2161
  %2163 = vadd.xlane.f32.xlu0 %v2162
  %v2164 = vpop.xlane.xlu0 %2163
  %v2165 = vsel %vm532, %v1670, 0.0
  %v2166 = vadd.f32 %v1669, %v2165
  %2167 = vadd.xlane.f32.xlu0 %v2166
  %v2168 = vpop.xlane.xlu0 %2167
  %v2169 = vsel %vm532, %v1672, 0.0
  %v2170 = vadd.f32 %v1671, %v2169
  %2171 = vadd.xlane.f32.xlu0 %v2170
  %v2172 = vpop.xlane.xlu0 %2171
  %v2173 = vsel %vm532, %v1674, 0.0
  %v2174 = vadd.f32 %v1673, %v2173
  %2175 = vadd.xlane.f32.xlu0 %v2174
  %v2176 = vpop.xlane.xlu0 %2175
  %v2177 = vsel %vm532, %v1676, 0.0
  %v2178 = vadd.f32 %v1675, %v2177
  %2179 = vadd.xlane.f32.xlu0 %v2178
  %v2180 = vpop.xlane.xlu0 %2179
  %v2181 = vsel %vm532, %v1678, 0.0
  %v2182 = vadd.f32 %v1677, %v2181
  %2183 = vadd.xlane.f32.xlu0 %v2182
  %v2184 = vpop.xlane.xlu0 %2183
  %v2185 = vsel %vm532, %v1680, 0.0
  %v2186 = vadd.f32 %v1679, %v2185
  %2187 = vadd.xlane.f32.xlu0 %v2186
  %v2188 = vpop.xlane.xlu0 %2187
  %v2189 = vsel %vm532, %v1682, 0.0
  %v2190 = vadd.f32 %v1681, %v2189
  %2191 = vadd.xlane.f32.xlu0 %v2190
  %v2192 = vpop.xlane.xlu0 %2191
  %v2193 = vsel %vm532, %v1684, 0.0
  %v2194 = vadd.f32 %v1683, %v2193
  %2195 = vadd.xlane.f32.xlu0 %v2194
  %v2196 = vpop.xlane.xlu0 %2195
  %v2197 = vmul.f32 %v1688, 0.0051020407
  %v2198 = vmul.f32 %v1692, 0.0051020407
  %v2199 = vmul.f32 %v1696, 0.0051020407
  %v2200 = vmul.f32 %v1700, 0.0051020407
  %v2201 = vmul.f32 %v1704, 0.0051020407
  %v2202 = vmul.f32 %v1708, 0.0051020407
  %v2203 = vmul.f32 %v1712, 0.0051020407
  %v2204 = vmul.f32 %v1716, 0.0051020407
  %v2205 = vmul.f32 %v1720, 0.0051020407
  %v2206 = vmul.f32 %v1724, 0.0051020407
  %v2207 = vmul.f32 %v1728, 0.0051020407
  %v2208 = vmul.f32 %v1732, 0.0051020407
  %v2209 = vmul.f32 %v1736, 0.0051020407
  %v2210 = vmul.f32 %v1740, 0.0051020407
  %v2211 = vmul.f32 %v1744, 0.0051020407
  %v2212 = vmul.f32 %v1748, 0.0051020407
  %v2213 = vmul.f32 %v1752, 0.0051020407
  %v2214 = vmul.f32 %v1756, 0.0051020407
  %v2215 = vmul.f32 %v1760, 0.0051020407
  %v2216 = vmul.f32 %v1764, 0.0051020407
  %v2217 = vmul.f32 %v1768, 0.0051020407
  %v2218 = vmul.f32 %v1772, 0.0051020407
  %v2219 = vmul.f32 %v1776, 0.0051020407
  %v2220 = vmul.f32 %v1780, 0.0051020407
  %v2221 = vmul.f32 %v1784, 0.0051020407
  %v2222 = vmul.f32 %v1788, 0.0051020407
  %v2223 = vmul.f32 %v1792, 0.0051020407
  %v2224 = vmul.f32 %v1796, 0.0051020407
  %v2225 = vmul.f32 %v1800, 0.0051020407
  %v2226 = vmul.f32 %v1804, 0.0051020407
  %v2227 = vmul.f32 %v1808, 0.0051020407
  %v2228 = vmul.f32 %v1812, 0.0051020407
  %v2229 = vmul.f32 %v1816, 0.0051020407
  %v2230 = vmul.f32 %v1820, 0.0051020407
  %v2231 = vmul.f32 %v1824, 0.0051020407
  %v2232 = vmul.f32 %v1828, 0.0051020407
  %v2233 = vmul.f32 %v1832, 0.0051020407
  %v2234 = vmul.f32 %v1836, 0.0051020407
  %v2235 = vmul.f32 %v1840, 0.0051020407
  %v2236 = vmul.f32 %v1844, 0.0051020407
  %v2237 = vmul.f32 %v1848, 0.0051020407
  %v2238 = vmul.f32 %v1852, 0.0051020407
  %v2239 = vmul.f32 %v1856, 0.0051020407
  %v2240 = vmul.f32 %v1860, 0.0051020407
  %v2241 = vmul.f32 %v1864, 0.0051020407
  %v2242 = vmul.f32 %v1868, 0.0051020407
  %v2243 = vmul.f32 %v1872, 0.0051020407
  %v2244 = vmul.f32 %v1876, 0.0051020407
  %v2245 = vmul.f32 %v1880, 0.0051020407
  %v2246 = vmul.f32 %v1884, 0.0051020407
  %v2247 = vmul.f32 %v1888, 0.0051020407
  %v2248 = vmul.f32 %v1892, 0.0051020407
  %v2249 = vmul.f32 %v1896, 0.0051020407
  %v2250 = vmul.f32 %v1900, 0.0051020407
  %v2251 = vmul.f32 %v1904, 0.0051020407
  %v2252 = vmul.f32 %v1908, 0.0051020407
  %v2253 = vmul.f32 %v1912, 0.0051020407
  %v2254 = vmul.f32 %v1916, 0.0051020407
  %v2255 = vmul.f32 %v1920, 0.0051020407
  %v2256 = vmul.f32 %v1924, 0.0051020407
  %v2257 = vmul.f32 %v1928, 0.0051020407
  %v2258 = vmul.f32 %v1932, 0.0051020407
  %v2259 = vmul.f32 %v1936, 0.0051020407
  %v2260 = vmul.f32 %v1940, 0.0051020407
  %v2261 = vmul.f32 %v1944, 0.0051020407
  %v2262 = vmul.f32 %v1948, 0.0051020407
  %v2263 = vmul.f32 %v1952, 0.0051020407
  %v2264 = vmul.f32 %v1956, 0.0051020407
  %v2265 = vmul.f32 %v1960, 0.0051020407
  %v2266 = vmul.f32 %v1964, 0.0051020407
  %v2267 = vmul.f32 %v1968, 0.0051020407
  %v2268 = vmul.f32 %v1972, 0.0051020407
  %v2269 = vmul.f32 %v1976, 0.0051020407
  %v2270 = vmul.f32 %v1980, 0.0051020407
  %v2271 = vmul.f32 %v1984, 0.0051020407
  %v2272 = vmul.f32 %v1988, 0.0051020407
  %v2273 = vmul.f32 %v1992, 0.0051020407
  %v2274 = vmul.f32 %v1996, 0.0051020407
  %v2275 = vmul.f32 %v2000, 0.0051020407
  %v2276 = vmul.f32 %v2004, 0.0051020407
  %v2277 = vmul.f32 %v2008, 0.0051020407
  %v2278 = vmul.f32 %v2012, 0.0051020407
  %v2279 = vmul.f32 %v2016, 0.0051020407
  %v2280 = vmul.f32 %v2020, 0.0051020407
  %v2281 = vmul.f32 %v2024, 0.0051020407
  %v2282 = vmul.f32 %v2028, 0.0051020407
  %v2283 = vmul.f32 %v2032, 0.0051020407
  %v2284 = vmul.f32 %v2036, 0.0051020407
  %v2285 = vmul.f32 %v2040, 0.0051020407
  %v2286 = vmul.f32 %v2044, 0.0051020407
  %v2287 = vmul.f32 %v2048, 0.0051020407
  %v2288 = vmul.f32 %v2052, 0.0051020407
  %v2289 = vmul.f32 %v2056, 0.0051020407
  %v2290 = vmul.f32 %v2060, 0.0051020407
  %v2291 = vmul.f32 %v2064, 0.0051020407
  %v2292 = vmul.f32 %v2068, 0.0051020407
  %v2293 = vmul.f32 %v2072, 0.0051020407
  %v2294 = vmul.f32 %v2076, 0.0051020407
  %v2295 = vmul.f32 %v2080, 0.0051020407
  %v2296 = vmul.f32 %v2084, 0.0051020407
  %v2297 = vmul.f32 %v2088, 0.0051020407
  %v2298 = vmul.f32 %v2092, 0.0051020407
  %v2299 = vmul.f32 %v2096, 0.0051020407
  %v2300 = vmul.f32 %v2100, 0.0051020407
  %v2301 = vmul.f32 %v2104, 0.0051020407
  %v2302 = vmul.f32 %v2108, 0.0051020407
  %v2303 = vmul.f32 %v2112, 0.0051020407
  %v2304 = vmul.f32 %v2116, 0.0051020407
  %v2305 = vmul.f32 %v2120, 0.0051020407
  %v2306 = vmul.f32 %v2124, 0.0051020407
  %v2307 = vmul.f32 %v2128, 0.0051020407
  %v2308 = vmul.f32 %v2132, 0.0051020407
  %v2309 = vmul.f32 %v2136, 0.0051020407
  %v2310 = vmul.f32 %v2140, 0.0051020407
  %v2311 = vmul.f32 %v2144, 0.0051020407
  %v2312 = vmul.f32 %v2148, 0.0051020407
  %v2313 = vmul.f32 %v2152, 0.0051020407
  %v2314 = vmul.f32 %v2156, 0.0051020407
  %v2315 = vmul.f32 %v2160, 0.0051020407
  %v2316 = vmul.f32 %v2164, 0.0051020407
  %v2317 = vmul.f32 %v2168, 0.0051020407
  %v2318 = vmul.f32 %v2172, 0.0051020407
  %v2319 = vmul.f32 %v2176, 0.0051020407
  %v2320 = vmul.f32 %v2180, 0.0051020407
  %v2321 = vmul.f32 %v2184, 0.0051020407
  %v2322 = vmul.f32 %v2188, 0.0051020407
  %v2323 = vmul.f32 %v2192, 0.0051020407
  %v2324 = vmul.f32 %v2196, 0.0051020407
  %v2325 = vadd.f32 %v2197, 1e-05
  %v2326 = vadd.f32 %v2198, 1e-05
  %v2327 = vadd.f32 %v2199, 1e-05
  %v2328 = vadd.f32 %v2200, 1e-05
  %v2329 = vadd.f32 %v2201, 1e-05
  %v2330 = vadd.f32 %v2202, 1e-05
  %v2331 = vadd.f32 %v2203, 1e-05
  %v2332 = vadd.f32 %v2204, 1e-05
  %v2333 = vadd.f32 %v2205, 1e-05
  %v2334 = vadd.f32 %v2206, 1e-05
  %v2335 = vadd.f32 %v2207, 1e-05
  %v2336 = vadd.f32 %v2208, 1e-05
  %v2337 = vadd.f32 %v2209, 1e-05
  %v2338 = vadd.f32 %v2210, 1e-05
  %v2339 = vadd.f32 %v2211, 1e-05
  %v2340 = vadd.f32 %v2212, 1e-05
  %v2341 = vadd.f32 %v2213, 1e-05
  %v2342 = vadd.f32 %v2214, 1e-05
  %v2343 = vadd.f32 %v2215, 1e-05
  %v2344 = vadd.f32 %v2216, 1e-05
  %v2345 = vadd.f32 %v2217, 1e-05
  %v2346 = vadd.f32 %v2218, 1e-05
  %v2347 = vadd.f32 %v2219, 1e-05
  %v2348 = vadd.f32 %v2220, 1e-05
  %v2349 = vadd.f32 %v2221, 1e-05
  %v2350 = vadd.f32 %v2222, 1e-05
  %v2351 = vadd.f32 %v2223, 1e-05
  %v2352 = vadd.f32 %v2224, 1e-05
  %v2353 = vadd.f32 %v2225, 1e-05
  %v2354 = vadd.f32 %v2226, 1e-05
  %v2355 = vadd.f32 %v2227, 1e-05
  %v2356 = vadd.f32 %v2228, 1e-05
  %v2357 = vadd.f32 %v2229, 1e-05
  %v2358 = vadd.f32 %v2230, 1e-05
  %v2359 = vadd.f32 %v2231, 1e-05
  %v2360 = vadd.f32 %v2232, 1e-05
  %v2361 = vadd.f32 %v2233, 1e-05
  %v2362 = vadd.f32 %v2234, 1e-05
  %v2363 = vadd.f32 %v2235, 1e-05
  %v2364 = vadd.f32 %v2236, 1e-05
  %v2365 = vadd.f32 %v2237, 1e-05
  %v2366 = vadd.f32 %v2238, 1e-05
  %v2367 = vadd.f32 %v2239, 1e-05
  %v2368 = vadd.f32 %v2240, 1e-05
  %v2369 = vadd.f32 %v2241, 1e-05
  %v2370 = vadd.f32 %v2242, 1e-05
  %v2371 = vadd.f32 %v2243, 1e-05
  %v2372 = vadd.f32 %v2244, 1e-05
  %v2373 = vadd.f32 %v2245, 1e-05
  %v2374 = vadd.f32 %v2246, 1e-05
  %v2375 = vadd.f32 %v2247, 1e-05
  %v2376 = vadd.f32 %v2248, 1e-05
  %v2377 = vadd.f32 %v2249, 1e-05
  %v2378 = vadd.f32 %v2250, 1e-05
  %v2379 = vadd.f32 %v2251, 1e-05
  %v2380 = vadd.f32 %v2252, 1e-05
  %v2381 = vadd.f32 %v2253, 1e-05
  %v2382 = vadd.f32 %v2254, 1e-05
  %v2383 = vadd.f32 %v2255, 1e-05
  %v2384 = vadd.f32 %v2256, 1e-05
  %v2385 = vadd.f32 %v2257, 1e-05
  %v2386 = vadd.f32 %v2258, 1e-05
  %v2387 = vadd.f32 %v2259, 1e-05
  %v2388 = vadd.f32 %v2260, 1e-05
  %v2389 = vadd.f32 %v2261, 1e-05
  %v2390 = vadd.f32 %v2262, 1e-05
  %v2391 = vadd.f32 %v2263, 1e-05
  %v2392 = vadd.f32 %v2264, 1e-05
  %v2393 = vadd.f32 %v2265, 1e-05
  %v2394 = vadd.f32 %v2266, 1e-05
  %v2395 = vadd.f32 %v2267, 1e-05
  %v2396 = vadd.f32 %v2268, 1e-05
  %v2397 = vadd.f32 %v2269, 1e-05
  %v2398 = vadd.f32 %v2270, 1e-05
  %v2399 = vadd.f32 %v2271, 1e-05
  %v2400 = vadd.f32 %v2272, 1e-05
  %v2401 = vadd.f32 %v2273, 1e-05
  %v2402 = vadd.f32 %v2274, 1e-05
  %v2403 = vadd.f32 %v2275, 1e-05
  %v2404 = vadd.f32 %v2276, 1e-05
  %v2405 = vadd.f32 %v2277, 1e-05
  %v2406 = vadd.f32 %v2278, 1e-05
  %v2407 = vadd.f32 %v2279, 1e-05
  %v2408 = vadd.f32 %v2280, 1e-05
  %v2409 = vadd.f32 %v2281, 1e-05
  %v2410 = vadd.f32 %v2282, 1e-05
  %v2411 = vadd.f32 %v2283, 1e-05
  %v2412 = vadd.f32 %v2284, 1e-05
  %v2413 = vadd.f32 %v2285, 1e-05
  %v2414 = vadd.f32 %v2286, 1e-05
  %v2415 = vadd.f32 %v2287, 1e-05
  %v2416 = vadd.f32 %v2288, 1e-05
  %v2417 = vadd.f32 %v2289, 1e-05
  %v2418 = vadd.f32 %v2290, 1e-05
  %v2419 = vadd.f32 %v2291, 1e-05
  %v2420 = vadd.f32 %v2292, 1e-05
  %v2421 = vadd.f32 %v2293, 1e-05
  %v2422 = vadd.f32 %v2294, 1e-05
  %v2423 = vadd.f32 %v2295, 1e-05
  %v2424 = vadd.f32 %v2296, 1e-05
  %v2425 = vadd.f32 %v2297, 1e-05
  %v2426 = vadd.f32 %v2298, 1e-05
  %v2427 = vadd.f32 %v2299, 1e-05
  %v2428 = vadd.f32 %v2300, 1e-05
  %v2429 = vadd.f32 %v2301, 1e-05
  %v2430 = vadd.f32 %v2302, 1e-05
  %v2431 = vadd.f32 %v2303, 1e-05
  %v2432 = vadd.f32 %v2304, 1e-05
  %v2433 = vadd.f32 %v2305, 1e-05
  %v2434 = vadd.f32 %v2306, 1e-05
  %v2435 = vadd.f32 %v2307, 1e-05
  %v2436 = vadd.f32 %v2308, 1e-05
  %v2437 = vadd.f32 %v2309, 1e-05
  %v2438 = vadd.f32 %v2310, 1e-05
  %v2439 = vadd.f32 %v2311, 1e-05
  %v2440 = vadd.f32 %v2312, 1e-05
  %v2441 = vadd.f32 %v2313, 1e-05
  %v2442 = vadd.f32 %v2314, 1e-05
  %v2443 = vadd.f32 %v2315, 1e-05
  %v2444 = vadd.f32 %v2316, 1e-05
  %v2445 = vadd.f32 %v2317, 1e-05
  %v2446 = vadd.f32 %v2318, 1e-05
  %v2447 = vadd.f32 %v2319, 1e-05
  %v2448 = vadd.f32 %v2320, 1e-05
  %v2449 = vadd.f32 %v2321, 1e-05
  %v2450 = vadd.f32 %v2322, 1e-05
  %v2451 = vadd.f32 %v2323, 1e-05
  %v2452 = vadd.f32 %v2324, 1e-05
  %v2453 = vrsqrt.pop %v2325
  %v2454 = vmul.f32 %v2453, %v2325
  %v2455 = vmul.f32 %v2454, %v2453
  %v2456 = vmul.f32 0.5, %v2455
  %v2457 = vsub.f32 1.5, %v2456
  %v2458 = vmul.f32 %v2453, %v2457
  %vm2459 = vweird.f32 %v2325
  %vm2460 = vweird.f32 %v2453
  %vm2461 = vmor %vm2459, %vm2460
  %v2462 = vsel %vm2461, %v2453, %v2458
  %v2463 = vrsqrt.pop %v2326
  %v2464 = vmul.f32 %v2463, %v2326
  %v2465 = vmul.f32 %v2464, %v2463
  %v2466 = vmul.f32 0.5, %v2465
  %v2467 = vsub.f32 1.5, %v2466
  %v2468 = vmul.f32 %v2463, %v2467
  %vm2469 = vweird.f32 %v2326
  %vm2470 = vweird.f32 %v2463
  %vm2471 = vmor %vm2469, %vm2470
  %v2472 = vsel %vm2471, %v2463, %v2468
  %v2473 = vrsqrt.pop %v2327
  %v2474 = vmul.f32 %v2473, %v2327
  %v2475 = vmul.f32 %v2474, %v2473
  %v2476 = vmul.f32 0.5, %v2475
  %v2477 = vsub.f32 1.5, %v2476
  %v2478 = vmul.f32 %v2473, %v2477
  %vm2479 = vweird.f32 %v2327
  %vm2480 = vweird.f32 %v2473
  %vm2481 = vmor %vm2479, %vm2480
  %v2482 = vsel %vm2481, %v2473, %v2478
  %v2483 = vrsqrt.pop %v2328
  %v2484 = vmul.f32 %v2483, %v2328
  %v2485 = vmul.f32 %v2484, %v2483
  %v2486 = vmul.f32 0.5, %v2485
  %v2487 = vsub.f32 1.5, %v2486
  %v2488 = vmul.f32 %v2483, %v2487
  %vm2489 = vweird.f32 %v2328
  %vm2490 = vweird.f32 %v2483
  %vm2491 = vmor %vm2489, %vm2490
  %v2492 = vsel %vm2491, %v2483, %v2488
  %v2493 = vrsqrt.pop %v2329
  %v2494 = vmul.f32 %v2493, %v2329
  %v2495 = vmul.f32 %v2494, %v2493
  %v2496 = vmul.f32 0.5, %v2495
  %v2497 = vsub.f32 1.5, %v2496
  %v2498 = vmul.f32 %v2493, %v2497
  %vm2499 = vweird.f32 %v2329
  %vm2500 = vweird.f32 %v2493
  %vm2501 = vmor %vm2499, %vm2500
  %v2502 = vsel %vm2501, %v2493, %v2498
  %v2503 = vrsqrt.pop %v2330
  %v2504 = vmul.f32 %v2503, %v2330
  %v2505 = vmul.f32 %v2504, %v2503
  %v2506 = vmul.f32 0.5, %v2505
  %v2507 = vsub.f32 1.5, %v2506
  %v2508 = vmul.f32 %v2503, %v2507
  %vm2509 = vweird.f32 %v2330
  %vm2510 = vweird.f32 %v2503
  %vm2511 = vmor %vm2509, %vm2510
  %v2512 = vsel %vm2511, %v2503, %v2508
  %v2513 = vrsqrt.pop %v2331
  %v2514 = vmul.f32 %v2513, %v2331
  %v2515 = vmul.f32 %v2514, %v2513
  %v2516 = vmul.f32 0.5, %v2515
  %v2517 = vsub.f32 1.5, %v2516
  %v2518 = vmul.f32 %v2513, %v2517
  %vm2519 = vweird.f32 %v2331
  %vm2520 = vweird.f32 %v2513
  %vm2521 = vmor %vm2519, %vm2520
  %v2522 = vsel %vm2521, %v2513, %v2518
  %v2523 = vrsqrt.pop %v2332
  %v2524 = vmul.f32 %v2523, %v2332
  %v2525 = vmul.f32 %v2524, %v2523
  %v2526 = vmul.f32 0.5, %v2525
  %v2527 = vsub.f32 1.5, %v2526
  %v2528 = vmul.f32 %v2523, %v2527
  %vm2529 = vweird.f32 %v2332
  %vm2530 = vweird.f32 %v2523
  %vm2531 = vmor %vm2529, %vm2530
  %v2532 = vsel %vm2531, %v2523, %v2528
  %v2533 = vrsqrt.pop %v2333
  %v2534 = vmul.f32 %v2533, %v2333
  %v2535 = vmul.f32 %v2534, %v2533
  %v2536 = vmul.f32 0.5, %v2535
  %v2537 = vsub.f32 1.5, %v2536
  %v2538 = vmul.f32 %v2533, %v2537
  %vm2539 = vweird.f32 %v2333
  %vm2540 = vweird.f32 %v2533
  %vm2541 = vmor %vm2539, %vm2540
  %v2542 = vsel %vm2541, %v2533, %v2538
  %v2543 = vrsqrt.pop %v2334
  %v2544 = vmul.f32 %v2543, %v2334
  %v2545 = vmul.f32 %v2544, %v2543
  %v2546 = vmul.f32 0.5, %v2545
  %v2547 = vsub.f32 1.5, %v2546
  %v2548 = vmul.f32 %v2543, %v2547
  %vm2549 = vweird.f32 %v2334
  %vm2550 = vweird.f32 %v2543
  %vm2551 = vmor %vm2549, %vm2550
  %v2552 = vsel %vm2551, %v2543, %v2548
  %v2553 = vrsqrt.pop %v2335
  %v2554 = vmul.f32 %v2553, %v2335
  %v2555 = vmul.f32 %v2554, %v2553
  %v2556 = vmul.f32 0.5, %v2555
  %v2557 = vsub.f32 1.5, %v2556
  %v2558 = vmul.f32 %v2553, %v2557
  %vm2559 = vweird.f32 %v2335
  %vm2560 = vweird.f32 %v2553
  %vm2561 = vmor %vm2559, %vm2560
  %v2562 = vsel %vm2561, %v2553, %v2558
  %v2563 = vrsqrt.pop %v2336
  %v2564 = vmul.f32 %v2563, %v2336
  %v2565 = vmul.f32 %v2564, %v2563
  %v2566 = vmul.f32 0.5, %v2565
  %v2567 = vsub.f32 1.5, %v2566
  %v2568 = vmul.f32 %v2563, %v2567
  %vm2569 = vweird.f32 %v2336
  %vm2570 = vweird.f32 %v2563
  %vm2571 = vmor %vm2569, %vm2570
  %v2572 = vsel %vm2571, %v2563, %v2568
  %v2573 = vrsqrt.pop %v2337
  %v2574 = vmul.f32 %v2573, %v2337
  %v2575 = vmul.f32 %v2574, %v2573
  %v2576 = vmul.f32 0.5, %v2575
  %v2577 = vsub.f32 1.5, %v2576
  %v2578 = vmul.f32 %v2573, %v2577
  %vm2579 = vweird.f32 %v2337
  %vm2580 = vweird.f32 %v2573
  %vm2581 = vmor %vm2579, %vm2580
  %v2582 = vsel %vm2581, %v2573, %v2578
  %v2583 = vrsqrt.pop %v2338
  %v2584 = vmul.f32 %v2583, %v2338
  %v2585 = vmul.f32 %v2584, %v2583
  %v2586 = vmul.f32 0.5, %v2585
  %v2587 = vsub.f32 1.5, %v2586
  %v2588 = vmul.f32 %v2583, %v2587
  %vm2589 = vweird.f32 %v2338
  %vm2590 = vweird.f32 %v2583
  %vm2591 = vmor %vm2589, %vm2590
  %v2592 = vsel %vm2591, %v2583, %v2588
  %v2593 = vrsqrt.pop %v2339
  %v2594 = vmul.f32 %v2593, %v2339
  %v2595 = vmul.f32 %v2594, %v2593
  %v2596 = vmul.f32 0.5, %v2595
  %v2597 = vsub.f32 1.5, %v2596
  %v2598 = vmul.f32 %v2593, %v2597
  %vm2599 = vweird.f32 %v2339
  %vm2600 = vweird.f32 %v2593
  %vm2601 = vmor %vm2599, %vm2600
  %v2602 = vsel %vm2601, %v2593, %v2598
  %v2603 = vrsqrt.pop %v2340
  %v2604 = vmul.f32 %v2603, %v2340
  %v2605 = vmul.f32 %v2604, %v2603
  %v2606 = vmul.f32 0.5, %v2605
  %v2607 = vsub.f32 1.5, %v2606
  %v2608 = vmul.f32 %v2603, %v2607
  %vm2609 = vweird.f32 %v2340
  %vm2610 = vweird.f32 %v2603
  %vm2611 = vmor %vm2609, %vm2610
  %v2612 = vsel %vm2611, %v2603, %v2608
  %v2613 = vrsqrt.pop %v2341
  %v2614 = vmul.f32 %v2613, %v2341
  %v2615 = vmul.f32 %v2614, %v2613
  %v2616 = vmul.f32 0.5, %v2615
  %v2617 = vsub.f32 1.5, %v2616
  %v2618 = vmul.f32 %v2613, %v2617
  %vm2619 = vweird.f32 %v2341
  %vm2620 = vweird.f32 %v2613
  %vm2621 = vmor %vm2619, %vm2620
  %v2622 = vsel %vm2621, %v2613, %v2618
  %v2623 = vrsqrt.pop %v2342
  %v2624 = vmul.f32 %v2623, %v2342
  %v2625 = vmul.f32 %v2624, %v2623
  %v2626 = vmul.f32 0.5, %v2625
  %v2627 = vsub.f32 1.5, %v2626
  %v2628 = vmul.f32 %v2623, %v2627
  %vm2629 = vweird.f32 %v2342
  %vm2630 = vweird.f32 %v2623
  %vm2631 = vmor %vm2629, %vm2630
  %v2632 = vsel %vm2631, %v2623, %v2628
  %v2633 = vrsqrt.pop %v2343
  %v2634 = vmul.f32 %v2633, %v2343
  %v2635 = vmul.f32 %v2634, %v2633
  %v2636 = vmul.f32 0.5, %v2635
  %v2637 = vsub.f32 1.5, %v2636
  %v2638 = vmul.f32 %v2633, %v2637
  %vm2639 = vweird.f32 %v2343
  %vm2640 = vweird.f32 %v2633
  %vm2641 = vmor %vm2639, %vm2640
  %v2642 = vsel %vm2641, %v2633, %v2638
  %v2643 = vrsqrt.pop %v2344
  %v2644 = vmul.f32 %v2643, %v2344
  %v2645 = vmul.f32 %v2644, %v2643
  %v2646 = vmul.f32 0.5, %v2645
  %v2647 = vsub.f32 1.5, %v2646
  %v2648 = vmul.f32 %v2643, %v2647
  %vm2649 = vweird.f32 %v2344
  %vm2650 = vweird.f32 %v2643
  %vm2651 = vmor %vm2649, %vm2650
  %v2652 = vsel %vm2651, %v2643, %v2648
  %v2653 = vrsqrt.pop %v2345
  %v2654 = vmul.f32 %v2653, %v2345
  %v2655 = vmul.f32 %v2654, %v2653
  %v2656 = vmul.f32 0.5, %v2655
  %v2657 = vsub.f32 1.5, %v2656
  %v2658 = vmul.f32 %v2653, %v2657
  %vm2659 = vweird.f32 %v2345
  %vm2660 = vweird.f32 %v2653
  %vm2661 = vmor %vm2659, %vm2660
  %v2662 = vsel %vm2661, %v2653, %v2658
  %v2663 = vrsqrt.pop %v2346
  %v2664 = vmul.f32 %v2663, %v2346
  %v2665 = vmul.f32 %v2664, %v2663
  %v2666 = vmul.f32 0.5, %v2665
  %v2667 = vsub.f32 1.5, %v2666
  %v2668 = vmul.f32 %v2663, %v2667
  %vm2669 = vweird.f32 %v2346
  %vm2670 = vweird.f32 %v2663
  %vm2671 = vmor %vm2669, %vm2670
  %v2672 = vsel %vm2671, %v2663, %v2668
  %v2673 = vrsqrt.pop %v2347
  %v2674 = vmul.f32 %v2673, %v2347
  %v2675 = vmul.f32 %v2674, %v2673
  %v2676 = vmul.f32 0.5, %v2675
  %v2677 = vsub.f32 1.5, %v2676
  %v2678 = vmul.f32 %v2673, %v2677
  %vm2679 = vweird.f32 %v2347
  %vm2680 = vweird.f32 %v2673
  %vm2681 = vmor %vm2679, %vm2680
  %v2682 = vsel %vm2681, %v2673, %v2678
  %v2683 = vrsqrt.pop %v2348
  %v2684 = vmul.f32 %v2683, %v2348
  %v2685 = vmul.f32 %v2684, %v2683
  %v2686 = vmul.f32 0.5, %v2685
  %v2687 = vsub.f32 1.5, %v2686
  %v2688 = vmul.f32 %v2683, %v2687
  %vm2689 = vweird.f32 %v2348
  %vm2690 = vweird.f32 %v2683
  %vm2691 = vmor %vm2689, %vm2690
  %v2692 = vsel %vm2691, %v2683, %v2688
  %v2693 = vrsqrt.pop %v2349
  %v2694 = vmul.f32 %v2693, %v2349
  %v2695 = vmul.f32 %v2694, %v2693
  %v2696 = vmul.f32 0.5, %v2695
  %v2697 = vsub.f32 1.5, %v2696
  %v2698 = vmul.f32 %v2693, %v2697
  %vm2699 = vweird.f32 %v2349
  %vm2700 = vweird.f32 %v2693
  %vm2701 = vmor %vm2699, %vm2700
  %v2702 = vsel %vm2701, %v2693, %v2698
  %v2703 = vrsqrt.pop %v2350
  %v2704 = vmul.f32 %v2703, %v2350
  %v2705 = vmul.f32 %v2704, %v2703
  %v2706 = vmul.f32 0.5, %v2705
  %v2707 = vsub.f32 1.5, %v2706
  %v2708 = vmul.f32 %v2703, %v2707
  %vm2709 = vweird.f32 %v2350
  %vm2710 = vweird.f32 %v2703
  %vm2711 = vmor %vm2709, %vm2710
  %v2712 = vsel %vm2711, %v2703, %v2708
  %v2713 = vrsqrt.pop %v2351
  %v2714 = vmul.f32 %v2713, %v2351
  %v2715 = vmul.f32 %v2714, %v2713
  %v2716 = vmul.f32 0.5, %v2715
  %v2717 = vsub.f32 1.5, %v2716
  %v2718 = vmul.f32 %v2713, %v2717
  %vm2719 = vweird.f32 %v2351
  %vm2720 = vweird.f32 %v2713
  %vm2721 = vmor %vm2719, %vm2720
  %v2722 = vsel %vm2721, %v2713, %v2718
  %v2723 = vrsqrt.pop %v2352
  %v2724 = vmul.f32 %v2723, %v2352
  %v2725 = vmul.f32 %v2724, %v2723
  %v2726 = vmul.f32 0.5, %v2725
  %v2727 = vsub.f32 1.5, %v2726
  %v2728 = vmul.f32 %v2723, %v2727
  %vm2729 = vweird.f32 %v2352
  %vm2730 = vweird.f32 %v2723
  %vm2731 = vmor %vm2729, %vm2730
  %v2732 = vsel %vm2731, %v2723, %v2728
  %v2733 = vrsqrt.pop %v2353
  %v2734 = vmul.f32 %v2733, %v2353
  %v2735 = vmul.f32 %v2734, %v2733
  %v2736 = vmul.f32 0.5, %v2735
  %v2737 = vsub.f32 1.5, %v2736
  %v2738 = vmul.f32 %v2733, %v2737
  %vm2739 = vweird.f32 %v2353
  %vm2740 = vweird.f32 %v2733
  %vm2741 = vmor %vm2739, %vm2740
  %v2742 = vsel %vm2741, %v2733, %v2738
  %v2743 = vrsqrt.pop %v2354
  %v2744 = vmul.f32 %v2743, %v2354
  %v2745 = vmul.f32 %v2744, %v2743
  %v2746 = vmul.f32 0.5, %v2745
  %v2747 = vsub.f32 1.5, %v2746
  %v2748 = vmul.f32 %v2743, %v2747
  %vm2749 = vweird.f32 %v2354
  %vm2750 = vweird.f32 %v2743
  %vm2751 = vmor %vm2749, %vm2750
  %v2752 = vsel %vm2751, %v2743, %v2748
  %v2753 = vrsqrt.pop %v2355
  %v2754 = vmul.f32 %v2753, %v2355
  %v2755 = vmul.f32 %v2754, %v2753
  %v2756 = vmul.f32 0.5, %v2755
  %v2757 = vsub.f32 1.5, %v2756
  %v2758 = vmul.f32 %v2753, %v2757
  %vm2759 = vweird.f32 %v2355
  %vm2760 = vweird.f32 %v2753
  %vm2761 = vmor %vm2759, %vm2760
  %v2762 = vsel %vm2761, %v2753, %v2758
  %v2763 = vrsqrt.pop %v2356
  %v2764 = vmul.f32 %v2763, %v2356
  %v2765 = vmul.f32 %v2764, %v2763
  %v2766 = vmul.f32 0.5, %v2765
  %v2767 = vsub.f32 1.5, %v2766
  %v2768 = vmul.f32 %v2763, %v2767
  %vm2769 = vweird.f32 %v2356
  %vm2770 = vweird.f32 %v2763
  %vm2771 = vmor %vm2769, %vm2770
  %v2772 = vsel %vm2771, %v2763, %v2768
  %v2773 = vrsqrt.pop %v2357
  %v2774 = vmul.f32 %v2773, %v2357
  %v2775 = vmul.f32 %v2774, %v2773
  %v2776 = vmul.f32 0.5, %v2775
  %v2777 = vsub.f32 1.5, %v2776
  %v2778 = vmul.f32 %v2773, %v2777
  %vm2779 = vweird.f32 %v2357
  %vm2780 = vweird.f32 %v2773
  %vm2781 = vmor %vm2779, %vm2780
  %v2782 = vsel %vm2781, %v2773, %v2778
  %v2783 = vrsqrt.pop %v2358
  %v2784 = vmul.f32 %v2783, %v2358
  %v2785 = vmul.f32 %v2784, %v2783
  %v2786 = vmul.f32 0.5, %v2785
  %v2787 = vsub.f32 1.5, %v2786
  %v2788 = vmul.f32 %v2783, %v2787
  %vm2789 = vweird.f32 %v2358
  %vm2790 = vweird.f32 %v2783
  %vm2791 = vmor %vm2789, %vm2790
  %v2792 = vsel %vm2791, %v2783, %v2788
  %v2793 = vrsqrt.pop %v2359
  %v2794 = vmul.f32 %v2793, %v2359
  %v2795 = vmul.f32 %v2794, %v2793
  %v2796 = vmul.f32 0.5, %v2795
  %v2797 = vsub.f32 1.5, %v2796
  %v2798 = vmul.f32 %v2793, %v2797
  %vm2799 = vweird.f32 %v2359
  %vm2800 = vweird.f32 %v2793
  %vm2801 = vmor %vm2799, %vm2800
  %v2802 = vsel %vm2801, %v2793, %v2798
  %v2803 = vrsqrt.pop %v2360
  %v2804 = vmul.f32 %v2803, %v2360
  %v2805 = vmul.f32 %v2804, %v2803
  %v2806 = vmul.f32 0.5, %v2805
  %v2807 = vsub.f32 1.5, %v2806
  %v2808 = vmul.f32 %v2803, %v2807
  %vm2809 = vweird.f32 %v2360
  %vm2810 = vweird.f32 %v2803
  %vm2811 = vmor %vm2809, %vm2810
  %v2812 = vsel %vm2811, %v2803, %v2808
  %v2813 = vrsqrt.pop %v2361
  %v2814 = vmul.f32 %v2813, %v2361
  %v2815 = vmul.f32 %v2814, %v2813
  %v2816 = vmul.f32 0.5, %v2815
  %v2817 = vsub.f32 1.5, %v2816
  %v2818 = vmul.f32 %v2813, %v2817
  %vm2819 = vweird.f32 %v2361
  %vm2820 = vweird.f32 %v2813
  %vm2821 = vmor %vm2819, %vm2820
  %v2822 = vsel %vm2821, %v2813, %v2818
  %v2823 = vrsqrt.pop %v2362
  %v2824 = vmul.f32 %v2823, %v2362
  %v2825 = vmul.f32 %v2824, %v2823
  %v2826 = vmul.f32 0.5, %v2825
  %v2827 = vsub.f32 1.5, %v2826
  %v2828 = vmul.f32 %v2823, %v2827
  %vm2829 = vweird.f32 %v2362
  %vm2830 = vweird.f32 %v2823
  %vm2831 = vmor %vm2829, %vm2830
  %v2832 = vsel %vm2831, %v2823, %v2828
  %v2833 = vrsqrt.pop %v2363
  %v2834 = vmul.f32 %v2833, %v2363
  %v2835 = vmul.f32 %v2834, %v2833
  %v2836 = vmul.f32 0.5, %v2835
  %v2837 = vsub.f32 1.5, %v2836
  %v2838 = vmul.f32 %v2833, %v2837
  %vm2839 = vweird.f32 %v2363
  %vm2840 = vweird.f32 %v2833
  %vm2841 = vmor %vm2839, %vm2840
  %v2842 = vsel %vm2841, %v2833, %v2838
  %v2843 = vrsqrt.pop %v2364
  %v2844 = vmul.f32 %v2843, %v2364
  %v2845 = vmul.f32 %v2844, %v2843
  %v2846 = vmul.f32 0.5, %v2845
  %v2847 = vsub.f32 1.5, %v2846
  %v2848 = vmul.f32 %v2843, %v2847
  %vm2849 = vweird.f32 %v2364
  %vm2850 = vweird.f32 %v2843
  %vm2851 = vmor %vm2849, %vm2850
  %v2852 = vsel %vm2851, %v2843, %v2848
  %v2853 = vrsqrt.pop %v2365
  %v2854 = vmul.f32 %v2853, %v2365
  %v2855 = vmul.f32 %v2854, %v2853
  %v2856 = vmul.f32 0.5, %v2855
  %v2857 = vsub.f32 1.5, %v2856
  %v2858 = vmul.f32 %v2853, %v2857
  %vm2859 = vweird.f32 %v2365
  %vm2860 = vweird.f32 %v2853
  %vm2861 = vmor %vm2859, %vm2860
  %v2862 = vsel %vm2861, %v2853, %v2858
  %v2863 = vrsqrt.pop %v2366
  %v2864 = vmul.f32 %v2863, %v2366
  %v2865 = vmul.f32 %v2864, %v2863
  %v2866 = vmul.f32 0.5, %v2865
  %v2867 = vsub.f32 1.5, %v2866
  %v2868 = vmul.f32 %v2863, %v2867
  %vm2869 = vweird.f32 %v2366
  %vm2870 = vweird.f32 %v2863
  %vm2871 = vmor %vm2869, %vm2870
  %v2872 = vsel %vm2871, %v2863, %v2868
  %v2873 = vrsqrt.pop %v2367
  %v2874 = vmul.f32 %v2873, %v2367
  %v2875 = vmul.f32 %v2874, %v2873
  %v2876 = vmul.f32 0.5, %v2875
  %v2877 = vsub.f32 1.5, %v2876
  %v2878 = vmul.f32 %v2873, %v2877
  %vm2879 = vweird.f32 %v2367
  %vm2880 = vweird.f32 %v2873
  %vm2881 = vmor %vm2879, %vm2880
  %v2882 = vsel %vm2881, %v2873, %v2878
  %v2883 = vrsqrt.pop %v2368
  %v2884 = vmul.f32 %v2883, %v2368
  %v2885 = vmul.f32 %v2884, %v2883
  %v2886 = vmul.f32 0.5, %v2885
  %v2887 = vsub.f32 1.5, %v2886
  %v2888 = vmul.f32 %v2883, %v2887
  %vm2889 = vweird.f32 %v2368
  %vm2890 = vweird.f32 %v2883
  %vm2891 = vmor %vm2889, %vm2890
  %v2892 = vsel %vm2891, %v2883, %v2888
  %v2893 = vrsqrt.pop %v2369
  %v2894 = vmul.f32 %v2893, %v2369
  %v2895 = vmul.f32 %v2894, %v2893
  %v2896 = vmul.f32 0.5, %v2895
  %v2897 = vsub.f32 1.5, %v2896
  %v2898 = vmul.f32 %v2893, %v2897
  %vm2899 = vweird.f32 %v2369
  %vm2900 = vweird.f32 %v2893
  %vm2901 = vmor %vm2899, %vm2900
  %v2902 = vsel %vm2901, %v2893, %v2898
  %v2903 = vrsqrt.pop %v2370
  %v2904 = vmul.f32 %v2903, %v2370
  %v2905 = vmul.f32 %v2904, %v2903
  %v2906 = vmul.f32 0.5, %v2905
  %v2907 = vsub.f32 1.5, %v2906
  %v2908 = vmul.f32 %v2903, %v2907
  %vm2909 = vweird.f32 %v2370
  %vm2910 = vweird.f32 %v2903
  %vm2911 = vmor %vm2909, %vm2910
  %v2912 = vsel %vm2911, %v2903, %v2908
  %v2913 = vrsqrt.pop %v2371
  %v2914 = vmul.f32 %v2913, %v2371
  %v2915 = vmul.f32 %v2914, %v2913
  %v2916 = vmul.f32 0.5, %v2915
  %v2917 = vsub.f32 1.5, %v2916
  %v2918 = vmul.f32 %v2913, %v2917
  %vm2919 = vweird.f32 %v2371
  %vm2920 = vweird.f32 %v2913
  %vm2921 = vmor %vm2919, %vm2920
  %v2922 = vsel %vm2921, %v2913, %v2918
  %v2923 = vrsqrt.pop %v2372
  %v2924 = vmul.f32 %v2923, %v2372
  %v2925 = vmul.f32 %v2924, %v2923
  %v2926 = vmul.f32 0.5, %v2925
  %v2927 = vsub.f32 1.5, %v2926
  %v2928 = vmul.f32 %v2923, %v2927
  %vm2929 = vweird.f32 %v2372
  %vm2930 = vweird.f32 %v2923
  %vm2931 = vmor %vm2929, %vm2930
  %v2932 = vsel %vm2931, %v2923, %v2928
  %v2933 = vrsqrt.pop %v2373
  %v2934 = vmul.f32 %v2933, %v2373
  %v2935 = vmul.f32 %v2934, %v2933
  %v2936 = vmul.f32 0.5, %v2935
  %v2937 = vsub.f32 1.5, %v2936
  %v2938 = vmul.f32 %v2933, %v2937
  %vm2939 = vweird.f32 %v2373
  %vm2940 = vweird.f32 %v2933
  %vm2941 = vmor %vm2939, %vm2940
  %v2942 = vsel %vm2941, %v2933, %v2938
  %v2943 = vrsqrt.pop %v2374
  %v2944 = vmul.f32 %v2943, %v2374
  %v2945 = vmul.f32 %v2944, %v2943
  %v2946 = vmul.f32 0.5, %v2945
  %v2947 = vsub.f32 1.5, %v2946
  %v2948 = vmul.f32 %v2943, %v2947
  %vm2949 = vweird.f32 %v2374
  %vm2950 = vweird.f32 %v2943
  %vm2951 = vmor %vm2949, %vm2950
  %v2952 = vsel %vm2951, %v2943, %v2948
  %v2953 = vrsqrt.pop %v2375
  %v2954 = vmul.f32 %v2953, %v2375
  %v2955 = vmul.f32 %v2954, %v2953
  %v2956 = vmul.f32 0.5, %v2955
  %v2957 = vsub.f32 1.5, %v2956
  %v2958 = vmul.f32 %v2953, %v2957
  %vm2959 = vweird.f32 %v2375
  %vm2960 = vweird.f32 %v2953
  %vm2961 = vmor %vm2959, %vm2960
  %v2962 = vsel %vm2961, %v2953, %v2958
  %v2963 = vrsqrt.pop %v2376
  %v2964 = vmul.f32 %v2963, %v2376
  %v2965 = vmul.f32 %v2964, %v2963
  %v2966 = vmul.f32 0.5, %v2965
  %v2967 = vsub.f32 1.5, %v2966
  %v2968 = vmul.f32 %v2963, %v2967
  %vm2969 = vweird.f32 %v2376
  %vm2970 = vweird.f32 %v2963
  %vm2971 = vmor %vm2969, %vm2970
  %v2972 = vsel %vm2971, %v2963, %v2968
  %v2973 = vrsqrt.pop %v2377
  %v2974 = vmul.f32 %v2973, %v2377
  %v2975 = vmul.f32 %v2974, %v2973
  %v2976 = vmul.f32 0.5, %v2975
  %v2977 = vsub.f32 1.5, %v2976
  %v2978 = vmul.f32 %v2973, %v2977
  %vm2979 = vweird.f32 %v2377
  %vm2980 = vweird.f32 %v2973
  %vm2981 = vmor %vm2979, %vm2980
  %v2982 = vsel %vm2981, %v2973, %v2978
  %v2983 = vrsqrt.pop %v2378
  %v2984 = vmul.f32 %v2983, %v2378
  %v2985 = vmul.f32 %v2984, %v2983
  %v2986 = vmul.f32 0.5, %v2985
  %v2987 = vsub.f32 1.5, %v2986
  %v2988 = vmul.f32 %v2983, %v2987
  %vm2989 = vweird.f32 %v2378
  %vm2990 = vweird.f32 %v2983
  %vm2991 = vmor %vm2989, %vm2990
  %v2992 = vsel %vm2991, %v2983, %v2988
  %v2993 = vrsqrt.pop %v2379
  %v2994 = vmul.f32 %v2993, %v2379
  %v2995 = vmul.f32 %v2994, %v2993
  %v2996 = vmul.f32 0.5, %v2995
  %v2997 = vsub.f32 1.5, %v2996
  %v2998 = vmul.f32 %v2993, %v2997
  %vm2999 = vweird.f32 %v2379
  %vm3000 = vweird.f32 %v2993
  %vm3001 = vmor %vm2999, %vm3000
  %v3002 = vsel %vm3001, %v2993, %v2998
  %v3003 = vrsqrt.pop %v2380
  %v3004 = vmul.f32 %v3003, %v2380
  %v3005 = vmul.f32 %v3004, %v3003
  %v3006 = vmul.f32 0.5, %v3005
  %v3007 = vsub.f32 1.5, %v3006
  %v3008 = vmul.f32 %v3003, %v3007
  %vm3009 = vweird.f32 %v2380
  %vm3010 = vweird.f32 %v3003
  %vm3011 = vmor %vm3009, %vm3010
  %v3012 = vsel %vm3011, %v3003, %v3008
  %v3013 = vrsqrt.pop %v2381
  %v3014 = vmul.f32 %v3013, %v2381
  %v3015 = vmul.f32 %v3014, %v3013
  %v3016 = vmul.f32 0.5, %v3015
  %v3017 = vsub.f32 1.5, %v3016
  %v3018 = vmul.f32 %v3013, %v3017
  %vm3019 = vweird.f32 %v2381
  %vm3020 = vweird.f32 %v3013
  %vm3021 = vmor %vm3019, %vm3020
  %v3022 = vsel %vm3021, %v3013, %v3018
  %v3023 = vrsqrt.pop %v2382
  %v3024 = vmul.f32 %v3023, %v2382
  %v3025 = vmul.f32 %v3024, %v3023
  %v3026 = vmul.f32 0.5, %v3025
  %v3027 = vsub.f32 1.5, %v3026
  %v3028 = vmul.f32 %v3023, %v3027
  %vm3029 = vweird.f32 %v2382
  %vm3030 = vweird.f32 %v3023
  %vm3031 = vmor %vm3029, %vm3030
  %v3032 = vsel %vm3031, %v3023, %v3028
  %v3033 = vrsqrt.pop %v2383
  %v3034 = vmul.f32 %v3033, %v2383
  %v3035 = vmul.f32 %v3034, %v3033
  %v3036 = vmul.f32 0.5, %v3035
  %v3037 = vsub.f32 1.5, %v3036
  %v3038 = vmul.f32 %v3033, %v3037
  %vm3039 = vweird.f32 %v2383
  %vm3040 = vweird.f32 %v3033
  %vm3041 = vmor %vm3039, %vm3040
  %v3042 = vsel %vm3041, %v3033, %v3038
  %v3043 = vrsqrt.pop %v2384
  %v3044 = vmul.f32 %v3043, %v2384
  %v3045 = vmul.f32 %v3044, %v3043
  %v3046 = vmul.f32 0.5, %v3045
  %v3047 = vsub.f32 1.5, %v3046
  %v3048 = vmul.f32 %v3043, %v3047
  %vm3049 = vweird.f32 %v2384
  %vm3050 = vweird.f32 %v3043
  %vm3051 = vmor %vm3049, %vm3050
  %v3052 = vsel %vm3051, %v3043, %v3048
  %v3053 = vrsqrt.pop %v2385
  %v3054 = vmul.f32 %v3053, %v2385
  %v3055 = vmul.f32 %v3054, %v3053
  %v3056 = vmul.f32 0.5, %v3055
  %v3057 = vsub.f32 1.5, %v3056
  %v3058 = vmul.f32 %v3053, %v3057
  %vm3059 = vweird.f32 %v2385
  %vm3060 = vweird.f32 %v3053
  %vm3061 = vmor %vm3059, %vm3060
  %v3062 = vsel %vm3061, %v3053, %v3058
  %v3063 = vrsqrt.pop %v2386
  %v3064 = vmul.f32 %v3063, %v2386
  %v3065 = vmul.f32 %v3064, %v3063
  %v3066 = vmul.f32 0.5, %v3065
  %v3067 = vsub.f32 1.5, %v3066
  %v3068 = vmul.f32 %v3063, %v3067
  %vm3069 = vweird.f32 %v2386
  %vm3070 = vweird.f32 %v3063
  %vm3071 = vmor %vm3069, %vm3070
  %v3072 = vsel %vm3071, %v3063, %v3068
  %v3073 = vrsqrt.pop %v2387
  %v3074 = vmul.f32 %v3073, %v2387
  %v3075 = vmul.f32 %v3074, %v3073
  %v3076 = vmul.f32 0.5, %v3075
  %v3077 = vsub.f32 1.5, %v3076
  %v3078 = vmul.f32 %v3073, %v3077
  %vm3079 = vweird.f32 %v2387
  %vm3080 = vweird.f32 %v3073
  %vm3081 = vmor %vm3079, %vm3080
  %v3082 = vsel %vm3081, %v3073, %v3078
  %v3083 = vrsqrt.pop %v2388
  %v3084 = vmul.f32 %v3083, %v2388
  %v3085 = vmul.f32 %v3084, %v3083
  %v3086 = vmul.f32 0.5, %v3085
  %v3087 = vsub.f32 1.5, %v3086
  %v3088 = vmul.f32 %v3083, %v3087
  %vm3089 = vweird.f32 %v2388
  %vm3090 = vweird.f32 %v3083
  %vm3091 = vmor %vm3089, %vm3090
  %v3092 = vsel %vm3091, %v3083, %v3088
  %v3093 = vrsqrt.pop %v2389
  %v3094 = vmul.f32 %v3093, %v2389
  %v3095 = vmul.f32 %v3094, %v3093
  %v3096 = vmul.f32 0.5, %v3095
  %v3097 = vsub.f32 1.5, %v3096
  %v3098 = vmul.f32 %v3093, %v3097
  %vm3099 = vweird.f32 %v2389
  %vm3100 = vweird.f32 %v3093
  %vm3101 = vmor %vm3099, %vm3100
  %v3102 = vsel %vm3101, %v3093, %v3098
  %v3103 = vrsqrt.pop %v2390
  %v3104 = vmul.f32 %v3103, %v2390
  %v3105 = vmul.f32 %v3104, %v3103
  %v3106 = vmul.f32 0.5, %v3105
  %v3107 = vsub.f32 1.5, %v3106
  %v3108 = vmul.f32 %v3103, %v3107
  %vm3109 = vweird.f32 %v2390
  %vm3110 = vweird.f32 %v3103
  %vm3111 = vmor %vm3109, %vm3110
  %v3112 = vsel %vm3111, %v3103, %v3108
  %v3113 = vrsqrt.pop %v2391
  %v3114 = vmul.f32 %v3113, %v2391
  %v3115 = vmul.f32 %v3114, %v3113
  %v3116 = vmul.f32 0.5, %v3115
  %v3117 = vsub.f32 1.5, %v3116
  %v3118 = vmul.f32 %v3113, %v3117
  %vm3119 = vweird.f32 %v2391
  %vm3120 = vweird.f32 %v3113
  %vm3121 = vmor %vm3119, %vm3120
  %v3122 = vsel %vm3121, %v3113, %v3118
  %v3123 = vrsqrt.pop %v2392
  %v3124 = vmul.f32 %v3123, %v2392
  %v3125 = vmul.f32 %v3124, %v3123
  %v3126 = vmul.f32 0.5, %v3125
  %v3127 = vsub.f32 1.5, %v3126
  %v3128 = vmul.f32 %v3123, %v3127
  %vm3129 = vweird.f32 %v2392
  %vm3130 = vweird.f32 %v3123
  %vm3131 = vmor %vm3129, %vm3130
  %v3132 = vsel %vm3131, %v3123, %v3128
  %v3133 = vrsqrt.pop %v2393
  %v3134 = vmul.f32 %v3133, %v2393
  %v3135 = vmul.f32 %v3134, %v3133
  %v3136 = vmul.f32 0.5, %v3135
  %v3137 = vsub.f32 1.5, %v3136
  %v3138 = vmul.f32 %v3133, %v3137
  %vm3139 = vweird.f32 %v2393
  %vm3140 = vweird.f32 %v3133
  %vm3141 = vmor %vm3139, %vm3140
  %v3142 = vsel %vm3141, %v3133, %v3138
  %v3143 = vrsqrt.pop %v2394
  %v3144 = vmul.f32 %v3143, %v2394
  %v3145 = vmul.f32 %v3144, %v3143
  %v3146 = vmul.f32 0.5, %v3145
  %v3147 = vsub.f32 1.5, %v3146
  %v3148 = vmul.f32 %v3143, %v3147
  %vm3149 = vweird.f32 %v2394
  %vm3150 = vweird.f32 %v3143
  %vm3151 = vmor %vm3149, %vm3150
  %v3152 = vsel %vm3151, %v3143, %v3148
  %v3153 = vrsqrt.pop %v2395
  %v3154 = vmul.f32 %v3153, %v2395
  %v3155 = vmul.f32 %v3154, %v3153
  %v3156 = vmul.f32 0.5, %v3155
  %v3157 = vsub.f32 1.5, %v3156
  %v3158 = vmul.f32 %v3153, %v3157
  %vm3159 = vweird.f32 %v2395
  %vm3160 = vweird.f32 %v3153
  %vm3161 = vmor %vm3159, %vm3160
  %v3162 = vsel %vm3161, %v3153, %v3158
  %v3163 = vrsqrt.pop %v2396
  %v3164 = vmul.f32 %v3163, %v2396
  %v3165 = vmul.f32 %v3164, %v3163
  %v3166 = vmul.f32 0.5, %v3165
  %v3167 = vsub.f32 1.5, %v3166
  %v3168 = vmul.f32 %v3163, %v3167
  %vm3169 = vweird.f32 %v2396
  %vm3170 = vweird.f32 %v3163
  %vm3171 = vmor %vm3169, %vm3170
  %v3172 = vsel %vm3171, %v3163, %v3168
  %v3173 = vrsqrt.pop %v2397
  %v3174 = vmul.f32 %v3173, %v2397
  %v3175 = vmul.f32 %v3174, %v3173
  %v3176 = vmul.f32 0.5, %v3175
  %v3177 = vsub.f32 1.5, %v3176
  %v3178 = vmul.f32 %v3173, %v3177
  %vm3179 = vweird.f32 %v2397
  %vm3180 = vweird.f32 %v3173
  %vm3181 = vmor %vm3179, %vm3180
  %v3182 = vsel %vm3181, %v3173, %v3178
  %v3183 = vrsqrt.pop %v2398
  %v3184 = vmul.f32 %v3183, %v2398
  %v3185 = vmul.f32 %v3184, %v3183
  %v3186 = vmul.f32 0.5, %v3185
  %v3187 = vsub.f32 1.5, %v3186
  %v3188 = vmul.f32 %v3183, %v3187
  %vm3189 = vweird.f32 %v2398
  %vm3190 = vweird.f32 %v3183
  %vm3191 = vmor %vm3189, %vm3190
  %v3192 = vsel %vm3191, %v3183, %v3188
  %v3193 = vrsqrt.pop %v2399
  %v3194 = vmul.f32 %v3193, %v2399
  %v3195 = vmul.f32 %v3194, %v3193
  %v3196 = vmul.f32 0.5, %v3195
  %v3197 = vsub.f32 1.5, %v3196
  %v3198 = vmul.f32 %v3193, %v3197
  %vm3199 = vweird.f32 %v2399
  %vm3200 = vweird.f32 %v3193
  %vm3201 = vmor %vm3199, %vm3200
  %v3202 = vsel %vm3201, %v3193, %v3198
  %v3203 = vrsqrt.pop %v2400
  %v3204 = vmul.f32 %v3203, %v2400
  %v3205 = vmul.f32 %v3204, %v3203
  %v3206 = vmul.f32 0.5, %v3205
  %v3207 = vsub.f32 1.5, %v3206
  %v3208 = vmul.f32 %v3203, %v3207
  %vm3209 = vweird.f32 %v2400
  %vm3210 = vweird.f32 %v3203
  %vm3211 = vmor %vm3209, %vm3210
  %v3212 = vsel %vm3211, %v3203, %v3208
  %v3213 = vrsqrt.pop %v2401
  %v3214 = vmul.f32 %v3213, %v2401
  %v3215 = vmul.f32 %v3214, %v3213
  %v3216 = vmul.f32 0.5, %v3215
  %v3217 = vsub.f32 1.5, %v3216
  %v3218 = vmul.f32 %v3213, %v3217
  %vm3219 = vweird.f32 %v2401
  %vm3220 = vweird.f32 %v3213
  %vm3221 = vmor %vm3219, %vm3220
  %v3222 = vsel %vm3221, %v3213, %v3218
  %v3223 = vrsqrt.pop %v2402
  %v3224 = vmul.f32 %v3223, %v2402
  %v3225 = vmul.f32 %v3224, %v3223
  %v3226 = vmul.f32 0.5, %v3225
  %v3227 = vsub.f32 1.5, %v3226
  %v3228 = vmul.f32 %v3223, %v3227
  %vm3229 = vweird.f32 %v2402
  %vm3230 = vweird.f32 %v3223
  %vm3231 = vmor %vm3229, %vm3230
  %v3232 = vsel %vm3231, %v3223, %v3228
  %v3233 = vrsqrt.pop %v2403
  %v3234 = vmul.f32 %v3233, %v2403
  %v3235 = vmul.f32 %v3234, %v3233
  %v3236 = vmul.f32 0.5, %v3235
  %v3237 = vsub.f32 1.5, %v3236
  %v3238 = vmul.f32 %v3233, %v3237
  %vm3239 = vweird.f32 %v2403
  %vm3240 = vweird.f32 %v3233
  %vm3241 = vmor %vm3239, %vm3240
  %v3242 = vsel %vm3241, %v3233, %v3238
  %v3243 = vrsqrt.pop %v2404
  %v3244 = vmul.f32 %v3243, %v2404
  %v3245 = vmul.f32 %v3244, %v3243
  %v3246 = vmul.f32 0.5, %v3245
  %v3247 = vsub.f32 1.5, %v3246
  %v3248 = vmul.f32 %v3243, %v3247
  %vm3249 = vweird.f32 %v2404
  %vm3250 = vweird.f32 %v3243
  %vm3251 = vmor %vm3249, %vm3250
  %v3252 = vsel %vm3251, %v3243, %v3248
  %v3253 = vrsqrt.pop %v2405
  %v3254 = vmul.f32 %v3253, %v2405
  %v3255 = vmul.f32 %v3254, %v3253
  %v3256 = vmul.f32 0.5, %v3255
  %v3257 = vsub.f32 1.5, %v3256
  %v3258 = vmul.f32 %v3253, %v3257
  %vm3259 = vweird.f32 %v2405
  %vm3260 = vweird.f32 %v3253
  %vm3261 = vmor %vm3259, %vm3260
  %v3262 = vsel %vm3261, %v3253, %v3258
  %v3263 = vrsqrt.pop %v2406
  %v3264 = vmul.f32 %v3263, %v2406
  %v3265 = vmul.f32 %v3264, %v3263
  %v3266 = vmul.f32 0.5, %v3265
  %v3267 = vsub.f32 1.5, %v3266
  %v3268 = vmul.f32 %v3263, %v3267
  %vm3269 = vweird.f32 %v2406
  %vm3270 = vweird.f32 %v3263
  %vm3271 = vmor %vm3269, %vm3270
  %v3272 = vsel %vm3271, %v3263, %v3268
  %v3273 = vrsqrt.pop %v2407
  %v3274 = vmul.f32 %v3273, %v2407
  %v3275 = vmul.f32 %v3274, %v3273
  %v3276 = vmul.f32 0.5, %v3275
  %v3277 = vsub.f32 1.5, %v3276
  %v3278 = vmul.f32 %v3273, %v3277
  %vm3279 = vweird.f32 %v2407
  %vm3280 = vweird.f32 %v3273
  %vm3281 = vmor %vm3279, %vm3280
  %v3282 = vsel %vm3281, %v3273, %v3278
  %v3283 = vrsqrt.pop %v2408
  %v3284 = vmul.f32 %v3283, %v2408
  %v3285 = vmul.f32 %v3284, %v3283
  %v3286 = vmul.f32 0.5, %v3285
  %v3287 = vsub.f32 1.5, %v3286
  %v3288 = vmul.f32 %v3283, %v3287
  %vm3289 = vweird.f32 %v2408
  %vm3290 = vweird.f32 %v3283
  %vm3291 = vmor %vm3289, %vm3290
  %v3292 = vsel %vm3291, %v3283, %v3288
  %v3293 = vrsqrt.pop %v2409
  %v3294 = vmul.f32 %v3293, %v2409
  %v3295 = vmul.f32 %v3294, %v3293
  %v3296 = vmul.f32 0.5, %v3295
  %v3297 = vsub.f32 1.5, %v3296
  %v3298 = vmul.f32 %v3293, %v3297
  %vm3299 = vweird.f32 %v2409
  %vm3300 = vweird.f32 %v3293
  %vm3301 = vmor %vm3299, %vm3300
  %v3302 = vsel %vm3301, %v3293, %v3298
  %v3303 = vrsqrt.pop %v2410
  %v3304 = vmul.f32 %v3303, %v2410
  %v3305 = vmul.f32 %v3304, %v3303
  %v3306 = vmul.f32 0.5, %v3305
  %v3307 = vsub.f32 1.5, %v3306
  %v3308 = vmul.f32 %v3303, %v3307
  %vm3309 = vweird.f32 %v2410
  %vm3310 = vweird.f32 %v3303
  %vm3311 = vmor %vm3309, %vm3310
  %v3312 = vsel %vm3311, %v3303, %v3308
  %v3313 = vrsqrt.pop %v2411
  %v3314 = vmul.f32 %v3313, %v2411
  %v3315 = vmul.f32 %v3314, %v3313
  %v3316 = vmul.f32 0.5, %v3315
  %v3317 = vsub.f32 1.5, %v3316
  %v3318 = vmul.f32 %v3313, %v3317
  %vm3319 = vweird.f32 %v2411
  %vm3320 = vweird.f32 %v3313
  %vm3321 = vmor %vm3319, %vm3320
  %v3322 = vsel %vm3321, %v3313, %v3318
  %v3323 = vrsqrt.pop %v2412
  %v3324 = vmul.f32 %v3323, %v2412
  %v3325 = vmul.f32 %v3324, %v3323
  %v3326 = vmul.f32 0.5, %v3325
  %v3327 = vsub.f32 1.5, %v3326
  %v3328 = vmul.f32 %v3323, %v3327
  %vm3329 = vweird.f32 %v2412
  %vm3330 = vweird.f32 %v3323
  %vm3331 = vmor %vm3329, %vm3330
  %v3332 = vsel %vm3331, %v3323, %v3328
  %v3333 = vrsqrt.pop %v2413
  %v3334 = vmul.f32 %v3333, %v2413
  %v3335 = vmul.f32 %v3334, %v3333
  %v3336 = vmul.f32 0.5, %v3335
  %v3337 = vsub.f32 1.5, %v3336
  %v3338 = vmul.f32 %v3333, %v3337
  %vm3339 = vweird.f32 %v2413
  %vm3340 = vweird.f32 %v3333
  %vm3341 = vmor %vm3339, %vm3340
  %v3342 = vsel %vm3341, %v3333, %v3338
  %v3343 = vrsqrt.pop %v2414
  %v3344 = vmul.f32 %v3343, %v2414
  %v3345 = vmul.f32 %v3344, %v3343
  %v3346 = vmul.f32 0.5, %v3345
  %v3347 = vsub.f32 1.5, %v3346
  %v3348 = vmul.f32 %v3343, %v3347
  %vm3349 = vweird.f32 %v2414
  %vm3350 = vweird.f32 %v3343
  %vm3351 = vmor %vm3349, %vm3350
  %v3352 = vsel %vm3351, %v3343, %v3348
  %v3353 = vrsqrt.pop %v2415
  %v3354 = vmul.f32 %v3353, %v2415
  %v3355 = vmul.f32 %v3354, %v3353
  %v3356 = vmul.f32 0.5, %v3355
  %v3357 = vsub.f32 1.5, %v3356
  %v3358 = vmul.f32 %v3353, %v3357
  %vm3359 = vweird.f32 %v2415
  %vm3360 = vweird.f32 %v3353
  %vm3361 = vmor %vm3359, %vm3360
  %v3362 = vsel %vm3361, %v3353, %v3358
  %v3363 = vrsqrt.pop %v2416
  %v3364 = vmul.f32 %v3363, %v2416
  %v3365 = vmul.f32 %v3364, %v3363
  %v3366 = vmul.f32 0.5, %v3365
  %v3367 = vsub.f32 1.5, %v3366
  %v3368 = vmul.f32 %v3363, %v3367
  %vm3369 = vweird.f32 %v2416
  %vm3370 = vweird.f32 %v3363
  %vm3371 = vmor %vm3369, %vm3370
  %v3372 = vsel %vm3371, %v3363, %v3368
  %v3373 = vrsqrt.pop %v2417
  %v3374 = vmul.f32 %v3373, %v2417
  %v3375 = vmul.f32 %v3374, %v3373
  %v3376 = vmul.f32 0.5, %v3375
  %v3377 = vsub.f32 1.5, %v3376
  %v3378 = vmul.f32 %v3373, %v3377
  %vm3379 = vweird.f32 %v2417
  %vm3380 = vweird.f32 %v3373
  %vm3381 = vmor %vm3379, %vm3380
  %v3382 = vsel %vm3381, %v3373, %v3378
  %v3383 = vrsqrt.pop %v2418
  %v3384 = vmul.f32 %v3383, %v2418
  %v3385 = vmul.f32 %v3384, %v3383
  %v3386 = vmul.f32 0.5, %v3385
  %v3387 = vsub.f32 1.5, %v3386
  %v3388 = vmul.f32 %v3383, %v3387
  %vm3389 = vweird.f32 %v2418
  %vm3390 = vweird.f32 %v3383
  %vm3391 = vmor %vm3389, %vm3390
  %v3392 = vsel %vm3391, %v3383, %v3388
  %v3393 = vrsqrt.pop %v2419
  %v3394 = vmul.f32 %v3393, %v2419
  %v3395 = vmul.f32 %v3394, %v3393
  %v3396 = vmul.f32 0.5, %v3395
  %v3397 = vsub.f32 1.5, %v3396
  %v3398 = vmul.f32 %v3393, %v3397
  %vm3399 = vweird.f32 %v2419
  %vm3400 = vweird.f32 %v3393
  %vm3401 = vmor %vm3399, %vm3400
  %v3402 = vsel %vm3401, %v3393, %v3398
  %v3403 = vrsqrt.pop %v2420
  %v3404 = vmul.f32 %v3403, %v2420
  %v3405 = vmul.f32 %v3404, %v3403
  %v3406 = vmul.f32 0.5, %v3405
  %v3407 = vsub.f32 1.5, %v3406
  %v3408 = vmul.f32 %v3403, %v3407
  %vm3409 = vweird.f32 %v2420
  %vm3410 = vweird.f32 %v3403
  %vm3411 = vmor %vm3409, %vm3410
  %v3412 = vsel %vm3411, %v3403, %v3408
  %v3413 = vrsqrt.pop %v2421
  %v3414 = vmul.f32 %v3413, %v2421
  %v3415 = vmul.f32 %v3414, %v3413
  %v3416 = vmul.f32 0.5, %v3415
  %v3417 = vsub.f32 1.5, %v3416
  %v3418 = vmul.f32 %v3413, %v3417
  %vm3419 = vweird.f32 %v2421
  %vm3420 = vweird.f32 %v3413
  %vm3421 = vmor %vm3419, %vm3420
  %v3422 = vsel %vm3421, %v3413, %v3418
  %v3423 = vrsqrt.pop %v2422
  %v3424 = vmul.f32 %v3423, %v2422
  %v3425 = vmul.f32 %v3424, %v3423
  %v3426 = vmul.f32 0.5, %v3425
  %v3427 = vsub.f32 1.5, %v3426
  %v3428 = vmul.f32 %v3423, %v3427
  %vm3429 = vweird.f32 %v2422
  %vm3430 = vweird.f32 %v3423
  %vm3431 = vmor %vm3429, %vm3430
  %v3432 = vsel %vm3431, %v3423, %v3428
  %v3433 = vrsqrt.pop %v2423
  %v3434 = vmul.f32 %v3433, %v2423
  %v3435 = vmul.f32 %v3434, %v3433
  %v3436 = vmul.f32 0.5, %v3435
  %v3437 = vsub.f32 1.5, %v3436
  %v3438 = vmul.f32 %v3433, %v3437
  %vm3439 = vweird.f32 %v2423
  %vm3440 = vweird.f32 %v3433
  %vm3441 = vmor %vm3439, %vm3440
  %v3442 = vsel %vm3441, %v3433, %v3438
  %v3443 = vrsqrt.pop %v2424
  %v3444 = vmul.f32 %v3443, %v2424
  %v3445 = vmul.f32 %v3444, %v3443
  %v3446 = vmul.f32 0.5, %v3445
  %v3447 = vsub.f32 1.5, %v3446
  %v3448 = vmul.f32 %v3443, %v3447
  %vm3449 = vweird.f32 %v2424
  %vm3450 = vweird.f32 %v3443
  %vm3451 = vmor %vm3449, %vm3450
  %v3452 = vsel %vm3451, %v3443, %v3448
  %v3453 = vrsqrt.pop %v2425
  %v3454 = vmul.f32 %v3453, %v2425
  %v3455 = vmul.f32 %v3454, %v3453
  %v3456 = vmul.f32 0.5, %v3455
  %v3457 = vsub.f32 1.5, %v3456
  %v3458 = vmul.f32 %v3453, %v3457
  %vm3459 = vweird.f32 %v2425
  %vm3460 = vweird.f32 %v3453
  %vm3461 = vmor %vm3459, %vm3460
  %v3462 = vsel %vm3461, %v3453, %v3458
  %v3463 = vrsqrt.pop %v2426
  %v3464 = vmul.f32 %v3463, %v2426
  %v3465 = vmul.f32 %v3464, %v3463
  %v3466 = vmul.f32 0.5, %v3465
  %v3467 = vsub.f32 1.5, %v3466
  %v3468 = vmul.f32 %v3463, %v3467
  %vm3469 = vweird.f32 %v2426
  %vm3470 = vweird.f32 %v3463
  %vm3471 = vmor %vm3469, %vm3470
  %v3472 = vsel %vm3471, %v3463, %v3468
  %v3473 = vrsqrt.pop %v2427
  %v3474 = vmul.f32 %v3473, %v2427
  %v3475 = vmul.f32 %v3474, %v3473
  %v3476 = vmul.f32 0.5, %v3475
  %v3477 = vsub.f32 1.5, %v3476
  %v3478 = vmul.f32 %v3473, %v3477
  %vm3479 = vweird.f32 %v2427
  %vm3480 = vweird.f32 %v3473
  %vm3481 = vmor %vm3479, %vm3480
  %v3482 = vsel %vm3481, %v3473, %v3478
  %v3483 = vrsqrt.pop %v2428
  %v3484 = vmul.f32 %v3483, %v2428
  %v3485 = vmul.f32 %v3484, %v3483
  %v3486 = vmul.f32 0.5, %v3485
  %v3487 = vsub.f32 1.5, %v3486
  %v3488 = vmul.f32 %v3483, %v3487
  %vm3489 = vweird.f32 %v2428
  %vm3490 = vweird.f32 %v3483
  %vm3491 = vmor %vm3489, %vm3490
  %v3492 = vsel %vm3491, %v3483, %v3488
  %v3493 = vrsqrt.pop %v2429
  %v3494 = vmul.f32 %v3493, %v2429
  %v3495 = vmul.f32 %v3494, %v3493
  %v3496 = vmul.f32 0.5, %v3495
  %v3497 = vsub.f32 1.5, %v3496
  %v3498 = vmul.f32 %v3493, %v3497
  %vm3499 = vweird.f32 %v2429
  %vm3500 = vweird.f32 %v3493
  %vm3501 = vmor %vm3499, %vm3500
  %v3502 = vsel %vm3501, %v3493, %v3498
  %v3503 = vrsqrt.pop %v2430
  %v3504 = vmul.f32 %v3503, %v2430
  %v3505 = vmul.f32 %v3504, %v3503
  %v3506 = vmul.f32 0.5, %v3505
  %v3507 = vsub.f32 1.5, %v3506
  %v3508 = vmul.f32 %v3503, %v3507
  %vm3509 = vweird.f32 %v2430
  %vm3510 = vweird.f32 %v3503
  %vm3511 = vmor %vm3509, %vm3510
  %v3512 = vsel %vm3511, %v3503, %v3508
  %v3513 = vrsqrt.pop %v2431
  %v3514 = vmul.f32 %v3513, %v2431
  %v3515 = vmul.f32 %v3514, %v3513
  %v3516 = vmul.f32 0.5, %v3515
  %v3517 = vsub.f32 1.5, %v3516
  %v3518 = vmul.f32 %v3513, %v3517
  %vm3519 = vweird.f32 %v2431
  %vm3520 = vweird.f32 %v3513
  %vm3521 = vmor %vm3519, %vm3520
  %v3522 = vsel %vm3521, %v3513, %v3518
  %v3523 = vrsqrt.pop %v2432
  %v3524 = vmul.f32 %v3523, %v2432
  %v3525 = vmul.f32 %v3524, %v3523
  %v3526 = vmul.f32 0.5, %v3525
  %v3527 = vsub.f32 1.5, %v3526
  %v3528 = vmul.f32 %v3523, %v3527
  %vm3529 = vweird.f32 %v2432
  %vm3530 = vweird.f32 %v3523
  %vm3531 = vmor %vm3529, %vm3530
  %v3532 = vsel %vm3531, %v3523, %v3528
  %v3533 = vrsqrt.pop %v2433
  %v3534 = vmul.f32 %v3533, %v2433
  %v3535 = vmul.f32 %v3534, %v3533
  %v3536 = vmul.f32 0.5, %v3535
  %v3537 = vsub.f32 1.5, %v3536
  %v3538 = vmul.f32 %v3533, %v3537
  %vm3539 = vweird.f32 %v2433
  %vm3540 = vweird.f32 %v3533
  %vm3541 = vmor %vm3539, %vm3540
  %v3542 = vsel %vm3541, %v3533, %v3538
  %v3543 = vrsqrt.pop %v2434
  %v3544 = vmul.f32 %v3543, %v2434
  %v3545 = vmul.f32 %v3544, %v3543
  %v3546 = vmul.f32 0.5, %v3545
  %v3547 = vsub.f32 1.5, %v3546
  %v3548 = vmul.f32 %v3543, %v3547
  %vm3549 = vweird.f32 %v2434
  %vm3550 = vweird.f32 %v3543
  %vm3551 = vmor %vm3549, %vm3550
  %v3552 = vsel %vm3551, %v3543, %v3548
  %v3553 = vrsqrt.pop %v2435
  %v3554 = vmul.f32 %v3553, %v2435
  %v3555 = vmul.f32 %v3554, %v3553
  %v3556 = vmul.f32 0.5, %v3555
  %v3557 = vsub.f32 1.5, %v3556
  %v3558 = vmul.f32 %v3553, %v3557
  %vm3559 = vweird.f32 %v2435
  %vm3560 = vweird.f32 %v3553
  %vm3561 = vmor %vm3559, %vm3560
  %v3562 = vsel %vm3561, %v3553, %v3558
  %v3563 = vrsqrt.pop %v2436
  %v3564 = vmul.f32 %v3563, %v2436
  %v3565 = vmul.f32 %v3564, %v3563
  %v3566 = vmul.f32 0.5, %v3565
  %v3567 = vsub.f32 1.5, %v3566
  %v3568 = vmul.f32 %v3563, %v3567
  %vm3569 = vweird.f32 %v2436
  %vm3570 = vweird.f32 %v3563
  %vm3571 = vmor %vm3569, %vm3570
  %v3572 = vsel %vm3571, %v3563, %v3568
  %v3573 = vrsqrt.pop %v2437
  %v3574 = vmul.f32 %v3573, %v2437
  %v3575 = vmul.f32 %v3574, %v3573
  %v3576 = vmul.f32 0.5, %v3575
  %v3577 = vsub.f32 1.5, %v3576
  %v3578 = vmul.f32 %v3573, %v3577
  %vm3579 = vweird.f32 %v2437
  %vm3580 = vweird.f32 %v3573
  %vm3581 = vmor %vm3579, %vm3580
  %v3582 = vsel %vm3581, %v3573, %v3578
  %v3583 = vrsqrt.pop %v2438
  %v3584 = vmul.f32 %v3583, %v2438
  %v3585 = vmul.f32 %v3584, %v3583
  %v3586 = vmul.f32 0.5, %v3585
  %v3587 = vsub.f32 1.5, %v3586
  %v3588 = vmul.f32 %v3583, %v3587
  %vm3589 = vweird.f32 %v2438
  %vm3590 = vweird.f32 %v3583
  %vm3591 = vmor %vm3589, %vm3590
  %v3592 = vsel %vm3591, %v3583, %v3588
  %v3593 = vrsqrt.pop %v2439
  %v3594 = vmul.f32 %v3593, %v2439
  %v3595 = vmul.f32 %v3594, %v3593
  %v3596 = vmul.f32 0.5, %v3595
  %v3597 = vsub.f32 1.5, %v3596
  %v3598 = vmul.f32 %v3593, %v3597
  %vm3599 = vweird.f32 %v2439
  %vm3600 = vweird.f32 %v3593
  %vm3601 = vmor %vm3599, %vm3600
  %v3602 = vsel %vm3601, %v3593, %v3598
  %v3603 = vrsqrt.pop %v2440
  %v3604 = vmul.f32 %v3603, %v2440
  %v3605 = vmul.f32 %v3604, %v3603
  %v3606 = vmul.f32 0.5, %v3605
  %v3607 = vsub.f32 1.5, %v3606
  %v3608 = vmul.f32 %v3603, %v3607
  %vm3609 = vweird.f32 %v2440
  %vm3610 = vweird.f32 %v3603
  %vm3611 = vmor %vm3609, %vm3610
  %v3612 = vsel %vm3611, %v3603, %v3608
  %v3613 = vrsqrt.pop %v2441
  %v3614 = vmul.f32 %v3613, %v2441
  %v3615 = vmul.f32 %v3614, %v3613
  %v3616 = vmul.f32 0.5, %v3615
  %v3617 = vsub.f32 1.5, %v3616
  %v3618 = vmul.f32 %v3613, %v3617
  %vm3619 = vweird.f32 %v2441
  %vm3620 = vweird.f32 %v3613
  %vm3621 = vmor %vm3619, %vm3620
  %v3622 = vsel %vm3621, %v3613, %v3618
  %v3623 = vrsqrt.pop %v2442
  %v3624 = vmul.f32 %v3623, %v2442
  %v3625 = vmul.f32 %v3624, %v3623
  %v3626 = vmul.f32 0.5, %v3625
  %v3627 = vsub.f32 1.5, %v3626
  %v3628 = vmul.f32 %v3623, %v3627
  %vm3629 = vweird.f32 %v2442
  %vm3630 = vweird.f32 %v3623
  %vm3631 = vmor %vm3629, %vm3630
  %v3632 = vsel %vm3631, %v3623, %v3628
  %v3633 = vrsqrt.pop %v2443
  %v3634 = vmul.f32 %v3633, %v2443
  %v3635 = vmul.f32 %v3634, %v3633
  %v3636 = vmul.f32 0.5, %v3635
  %v3637 = vsub.f32 1.5, %v3636
  %v3638 = vmul.f32 %v3633, %v3637
  %vm3639 = vweird.f32 %v2443
  %vm3640 = vweird.f32 %v3633
  %vm3641 = vmor %vm3639, %vm3640
  %v3642 = vsel %vm3641, %v3633, %v3638
  %v3643 = vrsqrt.pop %v2444
  %v3644 = vmul.f32 %v3643, %v2444
  %v3645 = vmul.f32 %v3644, %v3643
  %v3646 = vmul.f32 0.5, %v3645
  %v3647 = vsub.f32 1.5, %v3646
  %v3648 = vmul.f32 %v3643, %v3647
  %vm3649 = vweird.f32 %v2444
  %vm3650 = vweird.f32 %v3643
  %vm3651 = vmor %vm3649, %vm3650
  %v3652 = vsel %vm3651, %v3643, %v3648
  %v3653 = vrsqrt.pop %v2445
  %v3654 = vmul.f32 %v3653, %v2445
  %v3655 = vmul.f32 %v3654, %v3653
  %v3656 = vmul.f32 0.5, %v3655
  %v3657 = vsub.f32 1.5, %v3656
  %v3658 = vmul.f32 %v3653, %v3657
  %vm3659 = vweird.f32 %v2445
  %vm3660 = vweird.f32 %v3653
  %vm3661 = vmor %vm3659, %vm3660
  %v3662 = vsel %vm3661, %v3653, %v3658
  %v3663 = vrsqrt.pop %v2446
  %v3664 = vmul.f32 %v3663, %v2446
  %v3665 = vmul.f32 %v3664, %v3663
  %v3666 = vmul.f32 0.5, %v3665
  %v3667 = vsub.f32 1.5, %v3666
  %v3668 = vmul.f32 %v3663, %v3667
  %vm3669 = vweird.f32 %v2446
  %vm3670 = vweird.f32 %v3663
  %vm3671 = vmor %vm3669, %vm3670
  %v3672 = vsel %vm3671, %v3663, %v3668
  %v3673 = vrsqrt.pop %v2447
  %v3674 = vmul.f32 %v3673, %v2447
  %v3675 = vmul.f32 %v3674, %v3673
  %v3676 = vmul.f32 0.5, %v3675
  %v3677 = vsub.f32 1.5, %v3676
  %v3678 = vmul.f32 %v3673, %v3677
  %vm3679 = vweird.f32 %v2447
  %vm3680 = vweird.f32 %v3673
  %vm3681 = vmor %vm3679, %vm3680
  %v3682 = vsel %vm3681, %v3673, %v3678
  %v3683 = vrsqrt.pop %v2448
  %v3684 = vmul.f32 %v3683, %v2448
  %v3685 = vmul.f32 %v3684, %v3683
  %v3686 = vmul.f32 0.5, %v3685
  %v3687 = vsub.f32 1.5, %v3686
  %v3688 = vmul.f32 %v3683, %v3687
  %vm3689 = vweird.f32 %v2448
  %vm3690 = vweird.f32 %v3683
  %vm3691 = vmor %vm3689, %vm3690
  %v3692 = vsel %vm3691, %v3683, %v3688
  %v3693 = vrsqrt.pop %v2449
  %v3694 = vmul.f32 %v3693, %v2449
  %v3695 = vmul.f32 %v3694, %v3693
  %v3696 = vmul.f32 0.5, %v3695
  %v3697 = vsub.f32 1.5, %v3696
  %v3698 = vmul.f32 %v3693, %v3697
  %vm3699 = vweird.f32 %v2449
  %vm3700 = vweird.f32 %v3693
  %vm3701 = vmor %vm3699, %vm3700
  %v3702 = vsel %vm3701, %v3693, %v3698
  %v3703 = vrsqrt.pop %v2450
  %v3704 = vmul.f32 %v3703, %v2450
  %v3705 = vmul.f32 %v3704, %v3703
  %v3706 = vmul.f32 0.5, %v3705
  %v3707 = vsub.f32 1.5, %v3706
  %v3708 = vmul.f32 %v3703, %v3707
  %vm3709 = vweird.f32 %v2450
  %vm3710 = vweird.f32 %v3703
  %vm3711 = vmor %vm3709, %vm3710
  %v3712 = vsel %vm3711, %v3703, %v3708
  %v3713 = vrsqrt.pop %v2451
  %v3714 = vmul.f32 %v3713, %v2451
  %v3715 = vmul.f32 %v3714, %v3713
  %v3716 = vmul.f32 0.5, %v3715
  %v3717 = vsub.f32 1.5, %v3716
  %v3718 = vmul.f32 %v3713, %v3717
  %vm3719 = vweird.f32 %v2451
  %vm3720 = vweird.f32 %v3713
  %vm3721 = vmor %vm3719, %vm3720
  %v3722 = vsel %vm3721, %v3713, %v3718
  %v3723 = vrsqrt.pop %v2452
  %v3724 = vmul.f32 %v3723, %v2452
  %v3725 = vmul.f32 %v3724, %v3723
  %v3726 = vmul.f32 0.5, %v3725
  %v3727 = vsub.f32 1.5, %v3726
  %v3728 = vmul.f32 %v3723, %v3727
  %vm3729 = vweird.f32 %v2452
  %vm3730 = vweird.f32 %v3723
  %vm3731 = vmor %vm3729, %vm3730
  %v3732 = vsel %vm3731, %v3723, %v3728
  %v3733 = vmul.f32 %v2462, %v275
  %v3734 = vmul.f32 %v2472, %v276
  %v3735 = vmul.f32 %v2482, %v277
  %v3736 = vmul.f32 %v2492, %v278
  %v3737 = vmul.f32 %v2502, %v279
  %v3738 = vmul.f32 %v2512, %v280
  %v3739 = vmul.f32 %v2522, %v281
  %v3740 = vmul.f32 %v2532, %v282
  %v3741 = vmul.f32 %v2542, %v283
  %v3742 = vmul.f32 %v2552, %v284
  %v3743 = vmul.f32 %v2562, %v285
  %v3744 = vmul.f32 %v2572, %v286
  %v3745 = vmul.f32 %v2582, %v287
  %v3746 = vmul.f32 %v2592, %v288
  %v3747 = vmul.f32 %v2602, %v289
  %v3748 = vmul.f32 %v2612, %v290
  %v3749 = vmul.f32 %v2622, %v291
  %v3750 = vmul.f32 %v2632, %v292
  %v3751 = vmul.f32 %v2642, %v293
  %v3752 = vmul.f32 %v2652, %v294
  %v3753 = vmul.f32 %v2662, %v295
  %v3754 = vmul.f32 %v2672, %v296
  %v3755 = vmul.f32 %v2682, %v297
  %v3756 = vmul.f32 %v2692, %v298
  %v3757 = vmul.f32 %v2702, %v299
  %v3758 = vmul.f32 %v2712, %v300
  %v3759 = vmul.f32 %v2722, %v301
  %v3760 = vmul.f32 %v2732, %v302
  %v3761 = vmul.f32 %v2742, %v303
  %v3762 = vmul.f32 %v2752, %v304
  %v3763 = vmul.f32 %v2762, %v305
  %v3764 = vmul.f32 %v2772, %v306
  %v3765 = vmul.f32 %v2782, %v307
  %v3766 = vmul.f32 %v2792, %v308
  %v3767 = vmul.f32 %v2802, %v309
  %v3768 = vmul.f32 %v2812, %v310
  %v3769 = vmul.f32 %v2822, %v311
  %v3770 = vmul.f32 %v2832, %v312
  %v3771 = vmul.f32 %v2842, %v313
  %v3772 = vmul.f32 %v2852, %v314
  %v3773 = vmul.f32 %v2862, %v315
  %v3774 = vmul.f32 %v2872, %v316
  %v3775 = vmul.f32 %v2882, %v317
  %v3776 = vmul.f32 %v2892, %v318
  %v3777 = vmul.f32 %v2902, %v319
  %v3778 = vmul.f32 %v2912, %v320
  %v3779 = vmul.f32 %v2922, %v321
  %v3780 = vmul.f32 %v2932, %v322
  %v3781 = vmul.f32 %v2942, %v323
  %v3782 = vmul.f32 %v2952, %v324
  %v3783 = vmul.f32 %v2962, %v325
  %v3784 = vmul.f32 %v2972, %v326
  %v3785 = vmul.f32 %v2982, %v327
  %v3786 = vmul.f32 %v2992, %v328
  %v3787 = vmul.f32 %v3002, %v329
  %v3788 = vmul.f32 %v3012, %v330
  %v3789 = vmul.f32 %v3022, %v331
  %v3790 = vmul.f32 %v3032, %v332
  %v3791 = vmul.f32 %v3042, %v333
  %v3792 = vmul.f32 %v3052, %v334
  %v3793 = vmul.f32 %v3062, %v335
  %v3794 = vmul.f32 %v3072, %v336
  %v3795 = vmul.f32 %v3082, %v337
  %v3796 = vmul.f32 %v3092, %v338
  %v3797 = vmul.f32 %v3102, %v339
  %v3798 = vmul.f32 %v3112, %v340
  %v3799 = vmul.f32 %v3122, %v341
  %v3800 = vmul.f32 %v3132, %v342
  %v3801 = vmul.f32 %v3142, %v343
  %v3802 = vmul.f32 %v3152, %v344
  %v3803 = vmul.f32 %v3162, %v345
  %v3804 = vmul.f32 %v3172, %v346
  %v3805 = vmul.f32 %v3182, %v347
  %v3806 = vmul.f32 %v3192, %v348
  %v3807 = vmul.f32 %v3202, %v349
  %v3808 = vmul.f32 %v3212, %v350
  %v3809 = vmul.f32 %v3222, %v351
  %v3810 = vmul.f32 %v3232, %v352
  %v3811 = vmul.f32 %v3242, %v353
  %v3812 = vmul.f32 %v3252, %v354
  %v3813 = vmul.f32 %v3262, %v355
  %v3814 = vmul.f32 %v3272, %v356
  %v3815 = vmul.f32 %v3282, %v357
  %v3816 = vmul.f32 %v3292, %v358
  %v3817 = vmul.f32 %v3302, %v359
  %v3818 = vmul.f32 %v3312, %v360
  %v3819 = vmul.f32 %v3322, %v361
  %v3820 = vmul.f32 %v3332, %v362
  %v3821 = vmul.f32 %v3342, %v363
  %v3822 = vmul.f32 %v3352, %v364
  %v3823 = vmul.f32 %v3362, %v365
  %v3824 = vmul.f32 %v3372, %v366
  %v3825 = vmul.f32 %v3382, %v367
  %v3826 = vmul.f32 %v3392, %v368
  %v3827 = vmul.f32 %v3402, %v369
  %v3828 = vmul.f32 %v3412, %v370
  %v3829 = vmul.f32 %v3422, %v371
  %v3830 = vmul.f32 %v3432, %v372
  %v3831 = vmul.f32 %v3442, %v373
  %v3832 = vmul.f32 %v3452, %v374
  %v3833 = vmul.f32 %v3462, %v375
  %v3834 = vmul.f32 %v3472, %v376
  %v3835 = vmul.f32 %v3482, %v377
  %v3836 = vmul.f32 %v3492, %v378
  %v3837 = vmul.f32 %v3502, %v379
  %v3838 = vmul.f32 %v3512, %v380
  %v3839 = vmul.f32 %v3522, %v381
  %v3840 = vmul.f32 %v3532, %v382
  %v3841 = vmul.f32 %v3542, %v383
  %v3842 = vmul.f32 %v3552, %v384
  %v3843 = vmul.f32 %v3562, %v385
  %v3844 = vmul.f32 %v3572, %v386
  %v3845 = vmul.f32 %v3582, %v387
  %v3846 = vmul.f32 %v3592, %v388
  %v3847 = vmul.f32 %v3602, %v389
  %v3848 = vmul.f32 %v3612, %v390
  %v3849 = vmul.f32 %v3622, %v391
  %v3850 = vmul.f32 %v3632, %v392
  %v3851 = vmul.f32 %v3642, %v393
  %v3852 = vmul.f32 %v3652, %v394
  %v3853 = vmul.f32 %v3662, %v395
  %v3854 = vmul.f32 %v3672, %v396
  %v3855 = vmul.f32 %v3682, %v397
  %v3856 = vmul.f32 %v3692, %v398
  %v3857 = vmul.f32 %v3702, %v399
  %v3858 = vmul.f32 %v3712, %v400
  %v3859 = vmul.f32 %v3722, %v401
  %v3860 = vmul.f32 %v3732, %v402
  %v3861 = vmul.f32 %v1045, %v3733
  %v3862 = vmul.f32 %v1046, %v3734
  %v3863 = vmul.f32 %v1047, %v3735
  %v3864 = vmul.f32 %v1048, %v3736
  %v3865 = vmul.f32 %v1049, %v3737
  %v3866 = vmul.f32 %v1050, %v3738
  %v3867 = vmul.f32 %v1051, %v3739
  %v3868 = vmul.f32 %v1052, %v3740
  %v3869 = vmul.f32 %v1053, %v3741
  %v3870 = vmul.f32 %v1054, %v3742
  %v3871 = vmul.f32 %v1055, %v3743
  %v3872 = vmul.f32 %v1056, %v3744
  %v3873 = vmul.f32 %v1057, %v3745
  %v3874 = vmul.f32 %v1058, %v3746
  %v3875 = vmul.f32 %v1059, %v3747
  %v3876 = vmul.f32 %v1060, %v3748
  %v3877 = vmul.f32 %v1061, %v3749
  %v3878 = vmul.f32 %v1062, %v3750
  %v3879 = vmul.f32 %v1063, %v3751
  %v3880 = vmul.f32 %v1064, %v3752
  %v3881 = vmul.f32 %v1065, %v3753
  %v3882 = vmul.f32 %v1066, %v3754
  %v3883 = vmul.f32 %v1067, %v3755
  %v3884 = vmul.f32 %v1068, %v3756
  %v3885 = vmul.f32 %v1069, %v3757
  %v3886 = vmul.f32 %v1070, %v3758
  %v3887 = vmul.f32 %v1071, %v3759
  %v3888 = vmul.f32 %v1072, %v3760
  %v3889 = vmul.f32 %v1073, %v3761
  %v3890 = vmul.f32 %v1074, %v3762
  %v3891 = vmul.f32 %v1075, %v3763
  %v3892 = vmul.f32 %v1076, %v3764
  %v3893 = vmul.f32 %v1077, %v3765
  %v3894 = vmul.f32 %v1078, %v3766
  %v3895 = vmul.f32 %v1079, %v3767
  %v3896 = vmul.f32 %v1080, %v3768
  %v3897 = vmul.f32 %v1081, %v3769
  %v3898 = vmul.f32 %v1082, %v3770
  %v3899 = vmul.f32 %v1083, %v3771
  %v3900 = vmul.f32 %v1084, %v3772
  %v3901 = vmul.f32 %v1085, %v3773
  %v3902 = vmul.f32 %v1086, %v3774
  %v3903 = vmul.f32 %v1087, %v3775
  %v3904 = vmul.f32 %v1088, %v3776
  %v3905 = vmul.f32 %v1089, %v3777
  %v3906 = vmul.f32 %v1090, %v3778
  %v3907 = vmul.f32 %v1091, %v3779
  %v3908 = vmul.f32 %v1092, %v3780
  %v3909 = vmul.f32 %v1093, %v3781
  %v3910 = vmul.f32 %v1094, %v3782
  %v3911 = vmul.f32 %v1095, %v3783
  %v3912 = vmul.f32 %v1096, %v3784
  %v3913 = vmul.f32 %v1097, %v3785
  %v3914 = vmul.f32 %v1098, %v3786
  %v3915 = vmul.f32 %v1099, %v3787
  %v3916 = vmul.f32 %v1100, %v3788
  %v3917 = vmul.f32 %v1101, %v3789
  %v3918 = vmul.f32 %v1102, %v3790
  %v3919 = vmul.f32 %v1103, %v3791
  %v3920 = vmul.f32 %v1104, %v3792
  %v3921 = vmul.f32 %v1105, %v3793
  %v3922 = vmul.f32 %v1106, %v3794
  %v3923 = vmul.f32 %v1107, %v3795
  %v3924 = vmul.f32 %v1108, %v3796
  %v3925 = vmul.f32 %v1109, %v3797
  %v3926 = vmul.f32 %v1110, %v3798
  %v3927 = vmul.f32 %v1111, %v3799
  %v3928 = vmul.f32 %v1112, %v3800
  %v3929 = vmul.f32 %v1113, %v3801
  %v3930 = vmul.f32 %v1114, %v3802
  %v3931 = vmul.f32 %v1115, %v3803
  %v3932 = vmul.f32 %v1116, %v3804
  %v3933 = vmul.f32 %v1117, %v3805
  %v3934 = vmul.f32 %v1118, %v3806
  %v3935 = vmul.f32 %v1119, %v3807
  %v3936 = vmul.f32 %v1120, %v3808
  %v3937 = vmul.f32 %v1121, %v3809
  %v3938 = vmul.f32 %v1122, %v3810
  %v3939 = vmul.f32 %v1123, %v3811
  %v3940 = vmul.f32 %v1124, %v3812
  %v3941 = vmul.f32 %v1125, %v3813
  %v3942 = vmul.f32 %v1126, %v3814
  %v3943 = vmul.f32 %v1127, %v3815
  %v3944 = vmul.f32 %v1128, %v3816
  %v3945 = vmul.f32 %v1129, %v3817
  %v3946 = vmul.f32 %v1130, %v3818
  %v3947 = vmul.f32 %v1131, %v3819
  %v3948 = vmul.f32 %v1132, %v3820
  %v3949 = vmul.f32 %v1133, %v3821
  %v3950 = vmul.f32 %v1134, %v3822
  %v3951 = vmul.f32 %v1135, %v3823
  %v3952 = vmul.f32 %v1136, %v3824
  %v3953 = vmul.f32 %v1137, %v3825
  %v3954 = vmul.f32 %v1138, %v3826
  %v3955 = vmul.f32 %v1139, %v3827
  %v3956 = vmul.f32 %v1140, %v3828
  %v3957 = vmul.f32 %v1141, %v3829
  %v3958 = vmul.f32 %v1142, %v3830
  %v3959 = vmul.f32 %v1143, %v3831
  %v3960 = vmul.f32 %v1144, %v3832
  %v3961 = vmul.f32 %v1145, %v3833
  %v3962 = vmul.f32 %v1146, %v3834
  %v3963 = vmul.f32 %v1147, %v3835
  %v3964 = vmul.f32 %v1148, %v3836
  %v3965 = vmul.f32 %v1149, %v3837
  %v3966 = vmul.f32 %v1150, %v3838
  %v3967 = vmul.f32 %v1151, %v3839
  %v3968 = vmul.f32 %v1152, %v3840
  %v3969 = vmul.f32 %v1153, %v3841
  %v3970 = vmul.f32 %v1154, %v3842
  %v3971 = vmul.f32 %v1155, %v3843
  %v3972 = vmul.f32 %v1156, %v3844
  %v3973 = vmul.f32 %v1157, %v3845
  %v3974 = vmul.f32 %v1158, %v3846
  %v3975 = vmul.f32 %v1159, %v3847
  %v3976 = vmul.f32 %v1160, %v3848
  %v3977 = vmul.f32 %v1161, %v3849
  %v3978 = vmul.f32 %v1162, %v3850
  %v3979 = vmul.f32 %v1163, %v3851
  %v3980 = vmul.f32 %v1164, %v3852
  %v3981 = vmul.f32 %v1165, %v3853
  %v3982 = vmul.f32 %v1166, %v3854
  %v3983 = vmul.f32 %v1167, %v3855
  %v3984 = vmul.f32 %v1168, %v3856
  %v3985 = vmul.f32 %v1169, %v3857
  %v3986 = vmul.f32 %v1170, %v3858
  %v3987 = vmul.f32 %v1171, %v3859
  %v3988 = vmul.f32 %v1172, %v3860
  %v3989 = vsub.f32 %v404, %v3861
  %v3990 = vsub.f32 %v405, %v3862
  %v3991 = vsub.f32 %v406, %v3863
  %v3992 = vsub.f32 %v407, %v3864
  %v3993 = vsub.f32 %v408, %v3865
  %v3994 = vsub.f32 %v409, %v3866
  %v3995 = vsub.f32 %v410, %v3867
  %v3996 = vsub.f32 %v411, %v3868
  %v3997 = vsub.f32 %v412, %v3869
  %v3998 = vsub.f32 %v413, %v3870
  %v3999 = vsub.f32 %v414, %v3871
  %v4000 = vsub.f32 %v415, %v3872
  %v4001 = vsub.f32 %v416, %v3873
  %v4002 = vsub.f32 %v417, %v3874
  %v4003 = vsub.f32 %v418, %v3875
  %v4004 = vsub.f32 %v419, %v3876
  %v4005 = vsub.f32 %v420, %v3877
  %v4006 = vsub.f32 %v421, %v3878
  %v4007 = vsub.f32 %v422, %v3879
  %v4008 = vsub.f32 %v423, %v3880
  %v4009 = vsub.f32 %v424, %v3881
  %v4010 = vsub.f32 %v425, %v3882
  %v4011 = vsub.f32 %v426, %v3883
  %v4012 = vsub.f32 %v427, %v3884
  %v4013 = vsub.f32 %v428, %v3885
  %v4014 = vsub.f32 %v429, %v3886
  %v4015 = vsub.f32 %v430, %v3887
  %v4016 = vsub.f32 %v431, %v3888
  %v4017 = vsub.f32 %v432, %v3889
  %v4018 = vsub.f32 %v433, %v3890
  %v4019 = vsub.f32 %v434, %v3891
  %v4020 = vsub.f32 %v435, %v3892
  %v4021 = vsub.f32 %v436, %v3893
  %v4022 = vsub.f32 %v437, %v3894
  %v4023 = vsub.f32 %v438, %v3895
  %v4024 = vsub.f32 %v439, %v3896
  %v4025 = vsub.f32 %v440, %v3897
  %v4026 = vsub.f32 %v441, %v3898
  %v4027 = vsub.f32 %v442, %v3899
  %v4028 = vsub.f32 %v443, %v3900
  %v4029 = vsub.f32 %v444, %v3901
  %v4030 = vsub.f32 %v445, %v3902
  %v4031 = vsub.f32 %v446, %v3903
  %v4032 = vsub.f32 %v447, %v3904
  %v4033 = vsub.f32 %v448, %v3905
  %v4034 = vsub.f32 %v449, %v3906
  %v4035 = vsub.f32 %v450, %v3907
  %v4036 = vsub.f32 %v451, %v3908
  %v4037 = vsub.f32 %v452, %v3909
  %v4038 = vsub.f32 %v453, %v3910
  %v4039 = vsub.f32 %v454, %v3911
  %v4040 = vsub.f32 %v455, %v3912
  %v4041 = vsub.f32 %v456, %v3913
  %v4042 = vsub.f32 %v457, %v3914
  %v4043 = vsub.f32 %v458, %v3915
  %v4044 = vsub.f32 %v459, %v3916
  %v4045 = vsub.f32 %v460, %v3917
  %v4046 = vsub.f32 %v461, %v3918
  %v4047 = vsub.f32 %v462, %v3919
  %v4048 = vsub.f32 %v463, %v3920
  %v4049 = vsub.f32 %v464, %v3921
  %v4050 = vsub.f32 %v465, %v3922
  %v4051 = vsub.f32 %v466, %v3923
  %v4052 = vsub.f32 %v467, %v3924
  %v4053 = vsub.f32 %v468, %v3925
  %v4054 = vsub.f32 %v469, %v3926
  %v4055 = vsub.f32 %v470, %v3927
  %v4056 = vsub.f32 %v471, %v3928
  %v4057 = vsub.f32 %v472, %v3929
  %v4058 = vsub.f32 %v473, %v3930
  %v4059 = vsub.f32 %v474, %v3931
  %v4060 = vsub.f32 %v475, %v3932
  %v4061 = vsub.f32 %v476, %v3933
  %v4062 = vsub.f32 %v477, %v3934
  %v4063 = vsub.f32 %v478, %v3935
  %v4064 = vsub.f32 %v479, %v3936
  %v4065 = vsub.f32 %v480, %v3937
  %v4066 = vsub.f32 %v481, %v3938
  %v4067 = vsub.f32 %v482, %v3939
  %v4068 = vsub.f32 %v483, %v3940
  %v4069 = vsub.f32 %v484, %v3941
  %v4070 = vsub.f32 %v485, %v3942
  %v4071 = vsub.f32 %v486, %v3943
  %v4072 = vsub.f32 %v487, %v3944
  %v4073 = vsub.f32 %v488, %v3945
  %v4074 = vsub.f32 %v489, %v3946
  %v4075 = vsub.f32 %v490, %v3947
  %v4076 = vsub.f32 %v491, %v3948
  %v4077 = vsub.f32 %v492, %v3949
  %v4078 = vsub.f32 %v493, %v3950
  %v4079 = vsub.f32 %v494, %v3951
  %v4080 = vsub.f32 %v495, %v3952
  %v4081 = vsub.f32 %v496, %v3953
  %v4082 = vsub.f32 %v497, %v3954
  %v4083 = vsub.f32 %v498, %v3955
  %v4084 = vsub.f32 %v499, %v3956
  %v4085 = vsub.f32 %v500, %v3957
  %v4086 = vsub.f32 %v501, %v3958
  %v4087 = vsub.f32 %v502, %v3959
  %v4088 = vsub.f32 %v503, %v3960
  %v4089 = vsub.f32 %v504, %v3961
  %v4090 = vsub.f32 %v505, %v3962
  %v4091 = vsub.f32 %v506, %v3963
  %v4092 = vsub.f32 %v507, %v3964
  %v4093 = vsub.f32 %v508, %v3965
  %v4094 = vsub.f32 %v509, %v3966
  %v4095 = vsub.f32 %v510, %v3967
  %v4096 = vsub.f32 %v511, %v3968
  %v4097 = vsub.f32 %v512, %v3969
  %v4098 = vsub.f32 %v513, %v3970
  %v4099 = vsub.f32 %v514, %v3971
  %v4100 = vsub.f32 %v515, %v3972
  %v4101 = vsub.f32 %v516, %v3973
  %v4102 = vsub.f32 %v517, %v3974
  %v4103 = vsub.f32 %v518, %v3975
  %v4104 = vsub.f32 %v519, %v3976
  %v4105 = vsub.f32 %v520, %v3977
  %v4106 = vsub.f32 %v521, %v3978
  %v4107 = vsub.f32 %v522, %v3979
  %v4108 = vsub.f32 %v523, %v3980
  %v4109 = vsub.f32 %v524, %v3981
  %v4110 = vsub.f32 %v525, %v3982
  %v4111 = vsub.f32 %v526, %v3983
  %v4112 = vsub.f32 %v527, %v3984
  %v4113 = vsub.f32 %v528, %v3985
  %v4114 = vsub.f32 %v529, %v3986
  %v4115 = vsub.f32 %v530, %v3987
  %v4116 = vsub.f32 %v531, %v3988
  %4118 = vset.pattern.permute.xlu0 0
  %4119 = vperm.xlu0 %4118, %v3733
  %v4120 = vpop.permute.xlu0 %4119
  %4123 = vset.pattern.permute.xlu0 0
  %4124 = vperm.xlu0 %4123, %v3734
  %v4125 = vpop.permute.xlu0 %4124
  %4128 = vset.pattern.permute.xlu0 0
  %4129 = vperm.xlu0 %4128, %v3735
  %v4130 = vpop.permute.xlu0 %4129
  %4133 = vset.pattern.permute.xlu0 0
  %4134 = vperm.xlu0 %4133, %v3736
  %v4135 = vpop.permute.xlu0 %4134
  %4138 = vset.pattern.permute.xlu0 0
  %4139 = vperm.xlu0 %4138, %v3737
  %v4140 = vpop.permute.xlu0 %4139
  %4143 = vset.pattern.permute.xlu0 0
  %4144 = vperm.xlu0 %4143, %v3738
  %v4145 = vpop.permute.xlu0 %4144
  %4148 = vset.pattern.permute.xlu0 0
  %4149 = vperm.xlu0 %4148, %v3739
  %v4150 = vpop.permute.xlu0 %4149
  %4153 = vset.pattern.permute.xlu0 0
  %4154 = vperm.xlu0 %4153, %v3740
  %v4155 = vpop.permute.xlu0 %4154
  %4158 = vset.pattern.permute.xlu0 0
  %4159 = vperm.xlu0 %4158, %v3741
  %v4160 = vpop.permute.xlu0 %4159
  %4163 = vset.pattern.permute.xlu0 0
  %4164 = vperm.xlu0 %4163, %v3742
  %v4165 = vpop.permute.xlu0 %4164
  %4168 = vset.pattern.permute.xlu0 0
  %4169 = vperm.xlu0 %4168, %v3743
  %v4170 = vpop.permute.xlu0 %4169
  %4173 = vset.pattern.permute.xlu0 0
  %4174 = vperm.xlu0 %4173, %v3744
  %v4175 = vpop.permute.xlu0 %4174
  %4178 = vset.pattern.permute.xlu0 0
  %4179 = vperm.xlu0 %4178, %v3745
  %v4180 = vpop.permute.xlu0 %4179
  %4183 = vset.pattern.permute.xlu0 0
  %4184 = vperm.xlu0 %4183, %v3746
  %v4185 = vpop.permute.xlu0 %4184
  %4188 = vset.pattern.permute.xlu0 0
  %4189 = vperm.xlu0 %4188, %v3747
  %v4190 = vpop.permute.xlu0 %4189
  %4193 = vset.pattern.permute.xlu0 0
  %4194 = vperm.xlu0 %4193, %v3748
  %v4195 = vpop.permute.xlu0 %4194
  %4198 = vset.pattern.permute.xlu0 0
  %4199 = vperm.xlu0 %4198, %v3749
  %v4200 = vpop.permute.xlu0 %4199
  %4203 = vset.pattern.permute.xlu0 0
  %4204 = vperm.xlu0 %4203, %v3750
  %v4205 = vpop.permute.xlu0 %4204
  %4208 = vset.pattern.permute.xlu0 0
  %4209 = vperm.xlu0 %4208, %v3751
  %v4210 = vpop.permute.xlu0 %4209
  %4213 = vset.pattern.permute.xlu0 0
  %4214 = vperm.xlu0 %4213, %v3752
  %v4215 = vpop.permute.xlu0 %4214
  %4218 = vset.pattern.permute.xlu0 0
  %4219 = vperm.xlu0 %4218, %v3753
  %v4220 = vpop.permute.xlu0 %4219
  %4223 = vset.pattern.permute.xlu0 0
  %4224 = vperm.xlu0 %4223, %v3754
  %v4225 = vpop.permute.xlu0 %4224
  %4228 = vset.pattern.permute.xlu0 0
  %4229 = vperm.xlu0 %4228, %v3755
  %v4230 = vpop.permute.xlu0 %4229
  %4233 = vset.pattern.permute.xlu0 0
  %4234 = vperm.xlu0 %4233, %v3756
  %v4235 = vpop.permute.xlu0 %4234
  %4238 = vset.pattern.permute.xlu0 0
  %4239 = vperm.xlu0 %4238, %v3757
  %v4240 = vpop.permute.xlu0 %4239
  %4243 = vset.pattern.permute.xlu0 0
  %4244 = vperm.xlu0 %4243, %v3758
  %v4245 = vpop.permute.xlu0 %4244
  %4248 = vset.pattern.permute.xlu0 0
  %4249 = vperm.xlu0 %4248, %v3759
  %v4250 = vpop.permute.xlu0 %4249
  %4253 = vset.pattern.permute.xlu0 0
  %4254 = vperm.xlu0 %4253, %v3760
  %v4255 = vpop.permute.xlu0 %4254
  %4258 = vset.pattern.permute.xlu0 0
  %4259 = vperm.xlu0 %4258, %v3761
  %v4260 = vpop.permute.xlu0 %4259
  %4263 = vset.pattern.permute.xlu0 0
  %4264 = vperm.xlu0 %4263, %v3762
  %v4265 = vpop.permute.xlu0 %4264
  %4268 = vset.pattern.permute.xlu0 0
  %4269 = vperm.xlu0 %4268, %v3763
  %v4270 = vpop.permute.xlu0 %4269
  %4273 = vset.pattern.permute.xlu0 0
  %4274 = vperm.xlu0 %4273, %v3764
  %v4275 = vpop.permute.xlu0 %4274
  %4278 = vset.pattern.permute.xlu0 0
  %4279 = vperm.xlu0 %4278, %v3765
  %v4280 = vpop.permute.xlu0 %4279
  %4283 = vset.pattern.permute.xlu0 0
  %4284 = vperm.xlu0 %4283, %v3766
  %v4285 = vpop.permute.xlu0 %4284
  %4288 = vset.pattern.permute.xlu0 0
  %4289 = vperm.xlu0 %4288, %v3767
  %v4290 = vpop.permute.xlu0 %4289
  %4293 = vset.pattern.permute.xlu0 0
  %4294 = vperm.xlu0 %4293, %v3768
  %v4295 = vpop.permute.xlu0 %4294
  %4298 = vset.pattern.permute.xlu0 0
  %4299 = vperm.xlu0 %4298, %v3769
  %v4300 = vpop.permute.xlu0 %4299
  %4303 = vset.pattern.permute.xlu0 0
  %4304 = vperm.xlu0 %4303, %v3770
  %v4305 = vpop.permute.xlu0 %4304
  %4308 = vset.pattern.permute.xlu0 0
  %4309 = vperm.xlu0 %4308, %v3771
  %v4310 = vpop.permute.xlu0 %4309
  %4313 = vset.pattern.permute.xlu0 0
  %4314 = vperm.xlu0 %4313, %v3772
  %v4315 = vpop.permute.xlu0 %4314
  %4318 = vset.pattern.permute.xlu0 0
  %4319 = vperm.xlu0 %4318, %v3773
  %v4320 = vpop.permute.xlu0 %4319
  %4323 = vset.pattern.permute.xlu0 0
  %4324 = vperm.xlu0 %4323, %v3774
  %v4325 = vpop.permute.xlu0 %4324
  %4328 = vset.pattern.permute.xlu0 0
  %4329 = vperm.xlu0 %4328, %v3775
  %v4330 = vpop.permute.xlu0 %4329
  %4333 = vset.pattern.permute.xlu0 0
  %4334 = vperm.xlu0 %4333, %v3776
  %v4335 = vpop.permute.xlu0 %4334
  %4338 = vset.pattern.permute.xlu0 0
  %4339 = vperm.xlu0 %4338, %v3777
  %v4340 = vpop.permute.xlu0 %4339
  %4343 = vset.pattern.permute.xlu0 0
  %4344 = vperm.xlu0 %4343, %v3778
  %v4345 = vpop.permute.xlu0 %4344
  %4348 = vset.pattern.permute.xlu0 0
  %4349 = vperm.xlu0 %4348, %v3779
  %v4350 = vpop.permute.xlu0 %4349
  %4353 = vset.pattern.permute.xlu0 0
  %4354 = vperm.xlu0 %4353, %v3780
  %v4355 = vpop.permute.xlu0 %4354
  %4358 = vset.pattern.permute.xlu0 0
  %4359 = vperm.xlu0 %4358, %v3781
  %v4360 = vpop.permute.xlu0 %4359
  %4363 = vset.pattern.permute.xlu0 0
  %4364 = vperm.xlu0 %4363, %v3782
  %v4365 = vpop.permute.xlu0 %4364
  %4368 = vset.pattern.permute.xlu0 0
  %4369 = vperm.xlu0 %4368, %v3783
  %v4370 = vpop.permute.xlu0 %4369
  %4373 = vset.pattern.permute.xlu0 0
  %4374 = vperm.xlu0 %4373, %v3784
  %v4375 = vpop.permute.xlu0 %4374
  %4378 = vset.pattern.permute.xlu0 0
  %4379 = vperm.xlu0 %4378, %v3785
  %v4380 = vpop.permute.xlu0 %4379
  %4383 = vset.pattern.permute.xlu0 0
  %4384 = vperm.xlu0 %4383, %v3786
  %v4385 = vpop.permute.xlu0 %4384
  %4388 = vset.pattern.permute.xlu0 0
  %4389 = vperm.xlu0 %4388, %v3787
  %v4390 = vpop.permute.xlu0 %4389
  %4393 = vset.pattern.permute.xlu0 0
  %4394 = vperm.xlu0 %4393, %v3788
  %v4395 = vpop.permute.xlu0 %4394
  %4398 = vset.pattern.permute.xlu0 0
  %4399 = vperm.xlu0 %4398, %v3789
  %v4400 = vpop.permute.xlu0 %4399
  %4403 = vset.pattern.permute.xlu0 0
  %4404 = vperm.xlu0 %4403, %v3790
  %v4405 = vpop.permute.xlu0 %4404
  %4408 = vset.pattern.permute.xlu0 0
  %4409 = vperm.xlu0 %4408, %v3791
  %v4410 = vpop.permute.xlu0 %4409
  %4413 = vset.pattern.permute.xlu0 0
  %4414 = vperm.xlu0 %4413, %v3792
  %v4415 = vpop.permute.xlu0 %4414
  %4418 = vset.pattern.permute.xlu0 0
  %4419 = vperm.xlu0 %4418, %v3793
  %v4420 = vpop.permute.xlu0 %4419
  %4423 = vset.pattern.permute.xlu0 0
  %4424 = vperm.xlu0 %4423, %v3794
  %v4425 = vpop.permute.xlu0 %4424
  %4428 = vset.pattern.permute.xlu0 0
  %4429 = vperm.xlu0 %4428, %v3795
  %v4430 = vpop.permute.xlu0 %4429
  %4433 = vset.pattern.permute.xlu0 0
  %4434 = vperm.xlu0 %4433, %v3796
  %v4435 = vpop.permute.xlu0 %4434
  %4438 = vset.pattern.permute.xlu0 0
  %4439 = vperm.xlu0 %4438, %v3797
  %v4440 = vpop.permute.xlu0 %4439
  %4443 = vset.pattern.permute.xlu0 0
  %4444 = vperm.xlu0 %4443, %v3798
  %v4445 = vpop.permute.xlu0 %4444
  %4448 = vset.pattern.permute.xlu0 0
  %4449 = vperm.xlu0 %4448, %v3799
  %v4450 = vpop.permute.xlu0 %4449
  %4453 = vset.pattern.permute.xlu0 0
  %4454 = vperm.xlu0 %4453, %v3800
  %v4455 = vpop.permute.xlu0 %4454
  %4458 = vset.pattern.permute.xlu0 0
  %4459 = vperm.xlu0 %4458, %v3801
  %v4460 = vpop.permute.xlu0 %4459
  %4463 = vset.pattern.permute.xlu0 0
  %4464 = vperm.xlu0 %4463, %v3802
  %v4465 = vpop.permute.xlu0 %4464
  %4468 = vset.pattern.permute.xlu0 0
  %4469 = vperm.xlu0 %4468, %v3803
  %v4470 = vpop.permute.xlu0 %4469
  %4473 = vset.pattern.permute.xlu0 0
  %4474 = vperm.xlu0 %4473, %v3804
  %v4475 = vpop.permute.xlu0 %4474
  %4478 = vset.pattern.permute.xlu0 0
  %4479 = vperm.xlu0 %4478, %v3805
  %v4480 = vpop.permute.xlu0 %4479
  %4483 = vset.pattern.permute.xlu0 0
  %4484 = vperm.xlu0 %4483, %v3806
  %v4485 = vpop.permute.xlu0 %4484
  %4488 = vset.pattern.permute.xlu0 0
  %4489 = vperm.xlu0 %4488, %v3807
  %v4490 = vpop.permute.xlu0 %4489
  %4493 = vset.pattern.permute.xlu0 0
  %4494 = vperm.xlu0 %4493, %v3808
  %v4495 = vpop.permute.xlu0 %4494
  %4498 = vset.pattern.permute.xlu0 0
  %4499 = vperm.xlu0 %4498, %v3809
  %v4500 = vpop.permute.xlu0 %4499
  %4503 = vset.pattern.permute.xlu0 0
  %4504 = vperm.xlu0 %4503, %v3810
  %v4505 = vpop.permute.xlu0 %4504
  %4508 = vset.pattern.permute.xlu0 0
  %4509 = vperm.xlu0 %4508, %v3811
  %v4510 = vpop.permute.xlu0 %4509
  %4513 = vset.pattern.permute.xlu0 0
  %4514 = vperm.xlu0 %4513, %v3812
  %v4515 = vpop.permute.xlu0 %4514
  %4518 = vset.pattern.permute.xlu0 0
  %4519 = vperm.xlu0 %4518, %v3813
  %v4520 = vpop.permute.xlu0 %4519
  %4523 = vset.pattern.permute.xlu0 0
  %4524 = vperm.xlu0 %4523, %v3814
  %v4525 = vpop.permute.xlu0 %4524
  %4528 = vset.pattern.permute.xlu0 0
  %4529 = vperm.xlu0 %4528, %v3815
  %v4530 = vpop.permute.xlu0 %4529
  %4533 = vset.pattern.permute.xlu0 0
  %4534 = vperm.xlu0 %4533, %v3816
  %v4535 = vpop.permute.xlu0 %4534
  %4538 = vset.pattern.permute.xlu0 0
  %4539 = vperm.xlu0 %4538, %v3817
  %v4540 = vpop.permute.xlu0 %4539
  %4543 = vset.pattern.permute.xlu0 0
  %4544 = vperm.xlu0 %4543, %v3818
  %v4545 = vpop.permute.xlu0 %4544
  %4548 = vset.pattern.permute.xlu0 0
  %4549 = vperm.xlu0 %4548, %v3819
  %v4550 = vpop.permute.xlu0 %4549
  %4553 = vset.pattern.permute.xlu0 0
  %4554 = vperm.xlu0 %4553, %v3820
  %v4555 = vpop.permute.xlu0 %4554
  %4558 = vset.pattern.permute.xlu0 0
  %4559 = vperm.xlu0 %4558, %v3821
  %v4560 = vpop.permute.xlu0 %4559
  %4563 = vset.pattern.permute.xlu0 0
  %4564 = vperm.xlu0 %4563, %v3822
  %v4565 = vpop.permute.xlu0 %4564
  %4568 = vset.pattern.permute.xlu0 0
  %4569 = vperm.xlu0 %4568, %v3823
  %v4570 = vpop.permute.xlu0 %4569
  %4573 = vset.pattern.permute.xlu0 0
  %4574 = vperm.xlu0 %4573, %v3824
  %v4575 = vpop.permute.xlu0 %4574
  %4578 = vset.pattern.permute.xlu0 0
  %4579 = vperm.xlu0 %4578, %v3825
  %v4580 = vpop.permute.xlu0 %4579
  %4583 = vset.pattern.permute.xlu0 0
  %4584 = vperm.xlu0 %4583, %v3826
  %v4585 = vpop.permute.xlu0 %4584
  %4588 = vset.pattern.permute.xlu0 0
  %4589 = vperm.xlu0 %4588, %v3827
  %v4590 = vpop.permute.xlu0 %4589
  %4593 = vset.pattern.permute.xlu0 0
  %4594 = vperm.xlu0 %4593, %v3828
  %v4595 = vpop.permute.xlu0 %4594
  %4598 = vset.pattern.permute.xlu0 0
  %4599 = vperm.xlu0 %4598, %v3829
  %v4600 = vpop.permute.xlu0 %4599
  %4603 = vset.pattern.permute.xlu0 0
  %4604 = vperm.xlu0 %4603, %v3830
  %v4605 = vpop.permute.xlu0 %4604
  %4608 = vset.pattern.permute.xlu0 0
  %4609 = vperm.xlu0 %4608, %v3831
  %v4610 = vpop.permute.xlu0 %4609
  %4613 = vset.pattern.permute.xlu0 0
  %4614 = vperm.xlu0 %4613, %v3832
  %v4615 = vpop.permute.xlu0 %4614
  %4618 = vset.pattern.permute.xlu0 0
  %4619 = vperm.xlu0 %4618, %v3833
  %v4620 = vpop.permute.xlu0 %4619
  %4623 = vset.pattern.permute.xlu0 0
  %4624 = vperm.xlu0 %4623, %v3834
  %v4625 = vpop.permute.xlu0 %4624
  %4628 = vset.pattern.permute.xlu0 0
  %4629 = vperm.xlu0 %4628, %v3835
  %v4630 = vpop.permute.xlu0 %4629
  %4633 = vset.pattern.permute.xlu0 0
  %4634 = vperm.xlu0 %4633, %v3836
  %v4635 = vpop.permute.xlu0 %4634
  %4638 = vset.pattern.permute.xlu0 0
  %4639 = vperm.xlu0 %4638, %v3837
  %v4640 = vpop.permute.xlu0 %4639
  %4643 = vset.pattern.permute.xlu0 0
  %4644 = vperm.xlu0 %4643, %v3838
  %v4645 = vpop.permute.xlu0 %4644
  %4648 = vset.pattern.permute.xlu0 0
  %4649 = vperm.xlu0 %4648, %v3839
  %v4650 = vpop.permute.xlu0 %4649
  %4653 = vset.pattern.permute.xlu0 0
  %4654 = vperm.xlu0 %4653, %v3840
  %v4655 = vpop.permute.xlu0 %4654
  %4658 = vset.pattern.permute.xlu0 0
  %4659 = vperm.xlu0 %4658, %v3841
  %v4660 = vpop.permute.xlu0 %4659
  %4663 = vset.pattern.permute.xlu0 0
  %4664 = vperm.xlu0 %4663, %v3842
  %v4665 = vpop.permute.xlu0 %4664
  %4668 = vset.pattern.permute.xlu0 0
  %4669 = vperm.xlu0 %4668, %v3843
  %v4670 = vpop.permute.xlu0 %4669
  %4673 = vset.pattern.permute.xlu0 0
  %4674 = vperm.xlu0 %4673, %v3844
  %v4675 = vpop.permute.xlu0 %4674
  %4678 = vset.pattern.permute.xlu0 0
  %4679 = vperm.xlu0 %4678, %v3845
  %v4680 = vpop.permute.xlu0 %4679
  %4683 = vset.pattern.permute.xlu0 0
  %4684 = vperm.xlu0 %4683, %v3846
  %v4685 = vpop.permute.xlu0 %4684
  %4688 = vset.pattern.permute.xlu0 0
  %4689 = vperm.xlu0 %4688, %v3847
  %v4690 = vpop.permute.xlu0 %4689
  %4693 = vset.pattern.permute.xlu0 0
  %4694 = vperm.xlu0 %4693, %v3848
  %v4695 = vpop.permute.xlu0 %4694
  %4698 = vset.pattern.permute.xlu0 0
  %4699 = vperm.xlu0 %4698, %v3849
  %v4700 = vpop.permute.xlu0 %4699
  %4703 = vset.pattern.permute.xlu0 0
  %4704 = vperm.xlu0 %4703, %v3850
  %v4705 = vpop.permute.xlu0 %4704
  %4708 = vset.pattern.permute.xlu0 0
  %4709 = vperm.xlu0 %4708, %v3851
  %v4710 = vpop.permute.xlu0 %4709
  %4713 = vset.pattern.permute.xlu0 0
  %4714 = vperm.xlu0 %4713, %v3852
  %v4715 = vpop.permute.xlu0 %4714
  %4718 = vset.pattern.permute.xlu0 0
  %4719 = vperm.xlu0 %4718, %v3853
  %v4720 = vpop.permute.xlu0 %4719
  %4723 = vset.pattern.permute.xlu0 0
  %4724 = vperm.xlu0 %4723, %v3854
  %v4725 = vpop.permute.xlu0 %4724
  %4728 = vset.pattern.permute.xlu0 0
  %4729 = vperm.xlu0 %4728, %v3855
  %v4730 = vpop.permute.xlu0 %4729
  %4733 = vset.pattern.permute.xlu0 0
  %4734 = vperm.xlu0 %4733, %v3856
  %v4735 = vpop.permute.xlu0 %4734
  %4738 = vset.pattern.permute.xlu0 0
  %4739 = vperm.xlu0 %4738, %v3857
  %v4740 = vpop.permute.xlu0 %4739
  %4743 = vset.pattern.permute.xlu0 0
  %4744 = vperm.xlu0 %4743, %v3858
  %v4745 = vpop.permute.xlu0 %4744
  %4748 = vset.pattern.permute.xlu0 0
  %4749 = vperm.xlu0 %4748, %v3859
  %v4750 = vpop.permute.xlu0 %4749
  %4753 = vset.pattern.permute.xlu0 0
  %4754 = vperm.xlu0 %4753, %v3860
  %v4755 = vpop.permute.xlu0 %4754
  %v4757 = vmul.f32 %v17, %v4120
  %v4758 = vmul.f32 %v18, %v4120
  %v4759 = vmul.f32 %v19, %v4125
  %v4760 = vmul.f32 %v20, %v4125
  %v4761 = vmul.f32 %v21, %v4130
  %v4762 = vmul.f32 %v22, %v4130
  %v4763 = vmul.f32 %v23, %v4135
  %v4764 = vmul.f32 %v24, %v4135
  %v4765 = vmul.f32 %v25, %v4140
  %v4766 = vmul.f32 %v26, %v4140
  %v4767 = vmul.f32 %v27, %v4145
  %v4768 = vmul.f32 %v28, %v4145
  %v4769 = vmul.f32 %v29, %v4150
  %v4770 = vmul.f32 %v30, %v4150
  %v4771 = vmul.f32 %v31, %v4155
  %v4772 = vmul.f32 %v32, %v4155
  %v4773 = vmul.f32 %v33, %v4160
  %v4774 = vmul.f32 %v34, %v4160
  %v4775 = vmul.f32 %v35, %v4165
  %v4776 = vmul.f32 %v36, %v4165
  %v4777 = vmul.f32 %v37, %v4170
  %v4778 = vmul.f32 %v38, %v4170
  %v4779 = vmul.f32 %v39, %v4175
  %v4780 = vmul.f32 %v40, %v4175
  %v4781 = vmul.f32 %v41, %v4180
  %v4782 = vmul.f32 %v42, %v4180
  %v4783 = vmul.f32 %v43, %v4185
  %v4784 = vmul.f32 %v44, %v4185
  %v4785 = vmul.f32 %v45, %v4190
  %v4786 = vmul.f32 %v46, %v4190
  %v4787 = vmul.f32 %v47, %v4195
  %v4788 = vmul.f32 %v48, %v4195
  %v4789 = vmul.f32 %v49, %v4200
  %v4790 = vmul.f32 %v50, %v4200
  %v4791 = vmul.f32 %v51, %v4205
  %v4792 = vmul.f32 %v52, %v4205
  %v4793 = vmul.f32 %v53, %v4210
  %v4794 = vmul.f32 %v54, %v4210
  %v4795 = vmul.f32 %v55, %v4215
  %v4796 = vmul.f32 %v56, %v4215
  %v4797 = vmul.f32 %v57, %v4220
  %v4798 = vmul.f32 %v58, %v4220
  %v4799 = vmul.f32 %v59, %v4225
  %v4800 = vmul.f32 %v60, %v4225
  %v4801 = vmul.f32 %v61, %v4230
  %v4802 = vmul.f32 %v62, %v4230
  %v4803 = vmul.f32 %v63, %v4235
  %v4804 = vmul.f32 %v64, %v4235
  %v4805 = vmul.f32 %v65, %v4240
  %v4806 = vmul.f32 %v66, %v4240
  %v4807 = vmul.f32 %v67, %v4245
  %v4808 = vmul.f32 %v68, %v4245
  %v4809 = vmul.f32 %v69, %v4250
  %v4810 = vmul.f32 %v70, %v4250
  %v4811 = vmul.f32 %v71, %v4255
  %v4812 = vmul.f32 %v72, %v4255
  %v4813 = vmul.f32 %v73, %v4260
  %v4814 = vmul.f32 %v74, %v4260
  %v4815 = vmul.f32 %v75, %v4265
  %v4816 = vmul.f32 %v76, %v4265
  %v4817 = vmul.f32 %v77, %v4270
  %v4818 = vmul.f32 %v78, %v4270
  %v4819 = vmul.f32 %v79, %v4275
  %v4820 = vmul.f32 %v80, %v4275
  %v4821 = vmul.f32 %v81, %v4280
  %v4822 = vmul.f32 %v82, %v4280
  %v4823 = vmul.f32 %v83, %v4285
  %v4824 = vmul.f32 %v84, %v4285
  %v4825 = vmul.f32 %v85, %v4290
  %v4826 = vmul.f32 %v86, %v4290
  %v4827 = vmul.f32 %v87, %v4295
  %v4828 = vmul.f32 %v88, %v4295
  %v4829 = vmul.f32 %v89, %v4300
  %v4830 = vmul.f32 %v90, %v4300
  %v4831 = vmul.f32 %v91, %v4305
  %v4832 = vmul.f32 %v92, %v4305
  %v4833 = vmul.f32 %v93, %v4310
  %v4834 = vmul.f32 %v94, %v4310
  %v4835 = vmul.f32 %v95, %v4315
  %v4836 = vmul.f32 %v96, %v4315
  %v4837 = vmul.f32 %v97, %v4320
  %v4838 = vmul.f32 %v98, %v4320
  %v4839 = vmul.f32 %v99, %v4325
  %v4840 = vmul.f32 %v100, %v4325
  %v4841 = vmul.f32 %v101, %v4330
  %v4842 = vmul.f32 %v102, %v4330
  %v4843 = vmul.f32 %v103, %v4335
  %v4844 = vmul.f32 %v104, %v4335
  %v4845 = vmul.f32 %v105, %v4340
  %v4846 = vmul.f32 %v106, %v4340
  %v4847 = vmul.f32 %v107, %v4345
  %v4848 = vmul.f32 %v108, %v4345
  %v4849 = vmul.f32 %v109, %v4350
  %v4850 = vmul.f32 %v110, %v4350
  %v4851 = vmul.f32 %v111, %v4355
  %v4852 = vmul.f32 %v112, %v4355
  %v4853 = vmul.f32 %v113, %v4360
  %v4854 = vmul.f32 %v114, %v4360
  %v4855 = vmul.f32 %v115, %v4365
  %v4856 = vmul.f32 %v116, %v4365
  %v4857 = vmul.f32 %v117, %v4370
  %v4858 = vmul.f32 %v118, %v4370
  %v4859 = vmul.f32 %v119, %v4375
  %v4860 = vmul.f32 %v120, %v4375
  %v4861 = vmul.f32 %v121, %v4380
  %v4862 = vmul.f32 %v122, %v4380
  %v4863 = vmul.f32 %v123, %v4385
  %v4864 = vmul.f32 %v124, %v4385
  %v4865 = vmul.f32 %v125, %v4390
  %v4866 = vmul.f32 %v126, %v4390
  %v4867 = vmul.f32 %v127, %v4395
  %v4868 = vmul.f32 %v128, %v4395
  %v4869 = vmul.f32 %v129, %v4400
  %v4870 = vmul.f32 %v130, %v4400
  %v4871 = vmul.f32 %v131, %v4405
  %v4872 = vmul.f32 %v132, %v4405
  %v4873 = vmul.f32 %v133, %v4410
  %v4874 = vmul.f32 %v134, %v4410
  %v4875 = vmul.f32 %v135, %v4415
  %v4876 = vmul.f32 %v136, %v4415
  %v4877 = vmul.f32 %v137, %v4420
  %v4878 = vmul.f32 %v138, %v4420
  %v4879 = vmul.f32 %v139, %v4425
  %v4880 = vmul.f32 %v140, %v4425
  %v4881 = vmul.f32 %v141, %v4430
  %v4882 = vmul.f32 %v142, %v4430
  %v4883 = vmul.f32 %v143, %v4435
  %v4884 = vmul.f32 %v144, %v4435
  %v4885 = vmul.f32 %v145, %v4440
  %v4886 = vmul.f32 %v146, %v4440
  %v4887 = vmul.f32 %v147, %v4445
  %v4888 = vmul.f32 %v148, %v4445
  %v4889 = vmul.f32 %v149, %v4450
  %v4890 = vmul.f32 %v150, %v4450
  %v4891 = vmul.f32 %v151, %v4455
  %v4892 = vmul.f32 %v152, %v4455
  %v4893 = vmul.f32 %v153, %v4460
  %v4894 = vmul.f32 %v154, %v4460
  %v4895 = vmul.f32 %v155, %v4465
  %v4896 = vmul.f32 %v156, %v4465
  %v4897 = vmul.f32 %v157, %v4470
  %v4898 = vmul.f32 %v158, %v4470
  %v4899 = vmul.f32 %v159, %v4475
  %v4900 = vmul.f32 %v160, %v4475
  %v4901 = vmul.f32 %v161, %v4480
  %v4902 = vmul.f32 %v162, %v4480
  %v4903 = vmul.f32 %v163, %v4485
  %v4904 = vmul.f32 %v164, %v4485
  %v4905 = vmul.f32 %v165, %v4490
  %v4906 = vmul.f32 %v166, %v4490
  %v4907 = vmul.f32 %v167, %v4495
  %v4908 = vmul.f32 %v168, %v4495
  %v4909 = vmul.f32 %v169, %v4500
  %v4910 = vmul.f32 %v170, %v4500
  %v4911 = vmul.f32 %v171, %v4505
  %v4912 = vmul.f32 %v172, %v4505
  %v4913 = vmul.f32 %v173, %v4510
  %v4914 = vmul.f32 %v174, %v4510
  %v4915 = vmul.f32 %v175, %v4515
  %v4916 = vmul.f32 %v176, %v4515
  %v4917 = vmul.f32 %v177, %v4520
  %v4918 = vmul.f32 %v178, %v4520
  %v4919 = vmul.f32 %v179, %v4525
  %v4920 = vmul.f32 %v180, %v4525
  %v4921 = vmul.f32 %v181, %v4530
  %v4922 = vmul.f32 %v182, %v4530
  %v4923 = vmul.f32 %v183, %v4535
  %v4924 = vmul.f32 %v184, %v4535
  %v4925 = vmul.f32 %v185, %v4540
  %v4926 = vmul.f32 %v186, %v4540
  %v4927 = vmul.f32 %v187, %v4545
  %v4928 = vmul.f32 %v188, %v4545
  %v4929 = vmul.f32 %v189, %v4550
  %v4930 = vmul.f32 %v190, %v4550
  %v4931 = vmul.f32 %v191, %v4555
  %v4932 = vmul.f32 %v192, %v4555
  %v4933 = vmul.f32 %v193, %v4560
  %v4934 = vmul.f32 %v194, %v4560
  %v4935 = vmul.f32 %v195, %v4565
  %v4936 = vmul.f32 %v196, %v4565
  %v4937 = vmul.f32 %v197, %v4570
  %v4938 = vmul.f32 %v198, %v4570
  %v4939 = vmul.f32 %v199, %v4575
  %v4940 = vmul.f32 %v200, %v4575
  %v4941 = vmul.f32 %v201, %v4580
  %v4942 = vmul.f32 %v202, %v4580
  %v4943 = vmul.f32 %v203, %v4585
  %v4944 = vmul.f32 %v204, %v4585
  %v4945 = vmul.f32 %v205, %v4590
  %v4946 = vmul.f32 %v206, %v4590
  %v4947 = vmul.f32 %v207, %v4595
  %v4948 = vmul.f32 %v208, %v4595
  %v4949 = vmul.f32 %v209, %v4600
  %v4950 = vmul.f32 %v210, %v4600
  %v4951 = vmul.f32 %v211, %v4605
  %v4952 = vmul.f32 %v212, %v4605
  %v4953 = vmul.f32 %v213, %v4610
  %v4954 = vmul.f32 %v214, %v4610
  %v4955 = vmul.f32 %v215, %v4615
  %v4956 = vmul.f32 %v216, %v4615
  %v4957 = vmul.f32 %v217, %v4620
  %v4958 = vmul.f32 %v218, %v4620
  %v4959 = vmul.f32 %v219, %v4625
  %v4960 = vmul.f32 %v220, %v4625
  %v4961 = vmul.f32 %v221, %v4630
  %v4962 = vmul.f32 %v222, %v4630
  %v4963 = vmul.f32 %v223, %v4635
  %v4964 = vmul.f32 %v224, %v4635
  %v4965 = vmul.f32 %v225, %v4640
  %v4966 = vmul.f32 %v226, %v4640
  %v4967 = vmul.f32 %v227, %v4645
  %v4968 = vmul.f32 %v228, %v4645
  %v4969 = vmul.f32 %v229, %v4650
  %v4970 = vmul.f32 %v230, %v4650
  %v4971 = vmul.f32 %v231, %v4655
  %v4972 = vmul.f32 %v232, %v4655
  %v4973 = vmul.f32 %v233, %v4660
  %v4974 = vmul.f32 %v234, %v4660
  %v4975 = vmul.f32 %v235, %v4665
  %v4976 = vmul.f32 %v236, %v4665
  %v4977 = vmul.f32 %v237, %v4670
  %v4978 = vmul.f32 %v238, %v4670
  %v4979 = vmul.f32 %v239, %v4675
  %v4980 = vmul.f32 %v240, %v4675
  %v4981 = vmul.f32 %v241, %v4680
  %v4982 = vmul.f32 %v242, %v4680
  %v4983 = vmul.f32 %v243, %v4685
  %v4984 = vmul.f32 %v244, %v4685
  %v4985 = vmul.f32 %v245, %v4690
  %v4986 = vmul.f32 %v246, %v4690
  %v4987 = vmul.f32 %v247, %v4695
  %v4988 = vmul.f32 %v248, %v4695
  %v4989 = vmul.f32 %v249, %v4700
  %v4990 = vmul.f32 %v250, %v4700
  %v4991 = vmul.f32 %v251, %v4705
  %v4992 = vmul.f32 %v252, %v4705
  %v4993 = vmul.f32 %v253, %v4710
  %v4994 = vmul.f32 %v254, %v4710
  %v4995 = vmul.f32 %v255, %v4715
  %v4996 = vmul.f32 %v256, %v4715
  %v4997 = vmul.f32 %v257, %v4720
  %v4998 = vmul.f32 %v258, %v4720
  %v4999 = vmul.f32 %v259, %v4725
  %v5000 = vmul.f32 %v260, %v4725
  %v5001 = vmul.f32 %v261, %v4730
  %v5002 = vmul.f32 %v262, %v4730
  %v5003 = vmul.f32 %v263, %v4735
  %v5004 = vmul.f32 %v264, %v4735
  %v5005 = vmul.f32 %v265, %v4740
  %v5006 = vmul.f32 %v266, %v4740
  %v5007 = vmul.f32 %v267, %v4745
  %v5008 = vmul.f32 %v268, %v4745
  %v5009 = vmul.f32 %v269, %v4750
  %v5010 = vmul.f32 %v270, %v4750
  %v5011 = vmul.f32 %v271, %v4755
  %v5012 = vmul.f32 %v272, %v4755
  %5014 = vset.pattern.permute.xlu0 0
  %5015 = vperm.xlu0 %5014, %v3989
  %v5016 = vpop.permute.xlu0 %5015
  %5019 = vset.pattern.permute.xlu0 0
  %5020 = vperm.xlu0 %5019, %v3990
  %v5021 = vpop.permute.xlu0 %5020
  %5024 = vset.pattern.permute.xlu0 0
  %5025 = vperm.xlu0 %5024, %v3991
  %v5026 = vpop.permute.xlu0 %5025
  %5029 = vset.pattern.permute.xlu0 0
  %5030 = vperm.xlu0 %5029, %v3992
  %v5031 = vpop.permute.xlu0 %5030
  %5034 = vset.pattern.permute.xlu0 0
  %5035 = vperm.xlu0 %5034, %v3993
  %v5036 = vpop.permute.xlu0 %5035
  %5039 = vset.pattern.permute.xlu0 0
  %5040 = vperm.xlu0 %5039, %v3994
  %v5041 = vpop.permute.xlu0 %5040
  %5044 = vset.pattern.permute.xlu0 0
  %5045 = vperm.xlu0 %5044, %v3995
  %v5046 = vpop.permute.xlu0 %5045
  %5049 = vset.pattern.permute.xlu0 0
  %5050 = vperm.xlu0 %5049, %v3996
  %v5051 = vpop.permute.xlu0 %5050
  %5054 = vset.pattern.permute.xlu0 0
  %5055 = vperm.xlu0 %5054, %v3997
  %v5056 = vpop.permute.xlu0 %5055
  %5059 = vset.pattern.permute.xlu0 0
  %5060 = vperm.xlu0 %5059, %v3998
  %v5061 = vpop.permute.xlu0 %5060
  %5064 = vset.pattern.permute.xlu0 0
  %5065 = vperm.xlu0 %5064, %v3999
  %v5066 = vpop.permute.xlu0 %5065
  %5069 = vset.pattern.permute.xlu0 0
  %5070 = vperm.xlu0 %5069, %v4000
  %v5071 = vpop.permute.xlu0 %5070
  %5074 = vset.pattern.permute.xlu0 0
  %5075 = vperm.xlu0 %5074, %v4001
  %v5076 = vpop.permute.xlu0 %5075
  %5079 = vset.pattern.permute.xlu0 0
  %5080 = vperm.xlu0 %5079, %v4002
  %v5081 = vpop.permute.xlu0 %5080
  %5084 = vset.pattern.permute.xlu0 0
  %5085 = vperm.xlu0 %5084, %v4003
  %v5086 = vpop.permute.xlu0 %5085
  %5089 = vset.pattern.permute.xlu0 0
  %5090 = vperm.xlu0 %5089, %v4004
  %v5091 = vpop.permute.xlu0 %5090
  %5094 = vset.pattern.permute.xlu0 0
  %5095 = vperm.xlu0 %5094, %v4005
  %v5096 = vpop.permute.xlu0 %5095
  %5099 = vset.pattern.permute.xlu0 0
  %5100 = vperm.xlu0 %5099, %v4006
  %v5101 = vpop.permute.xlu0 %5100
  %5104 = vset.pattern.permute.xlu0 0
  %5105 = vperm.xlu0 %5104, %v4007
  %v5106 = vpop.permute.xlu0 %5105
  %5109 = vset.pattern.permute.xlu0 0
  %5110 = vperm.xlu0 %5109, %v4008
  %v5111 = vpop.permute.xlu0 %5110
  %5114 = vset.pattern.permute.xlu0 0
  %5115 = vperm.xlu0 %5114, %v4009
  %v5116 = vpop.permute.xlu0 %5115
  %5119 = vset.pattern.permute.xlu0 0
  %5120 = vperm.xlu0 %5119, %v4010
  %v5121 = vpop.permute.xlu0 %5120
  %5124 = vset.pattern.permute.xlu0 0
  %5125 = vperm.xlu0 %5124, %v4011
  %v5126 = vpop.permute.xlu0 %5125
  %5129 = vset.pattern.permute.xlu0 0
  %5130 = vperm.xlu0 %5129, %v4012
  %v5131 = vpop.permute.xlu0 %5130
  %5134 = vset.pattern.permute.xlu0 0
  %5135 = vperm.xlu0 %5134, %v4013
  %v5136 = vpop.permute.xlu0 %5135
  %5139 = vset.pattern.permute.xlu0 0
  %5140 = vperm.xlu0 %5139, %v4014
  %v5141 = vpop.permute.xlu0 %5140
  %5144 = vset.pattern.permute.xlu0 0
  %5145 = vperm.xlu0 %5144, %v4015
  %v5146 = vpop.permute.xlu0 %5145
  %5149 = vset.pattern.permute.xlu0 0
  %5150 = vperm.xlu0 %5149, %v4016
  %v5151 = vpop.permute.xlu0 %5150
  %5154 = vset.pattern.permute.xlu0 0
  %5155 = vperm.xlu0 %5154, %v4017
  %v5156 = vpop.permute.xlu0 %5155
  %5159 = vset.pattern.permute.xlu0 0
  %5160 = vperm.xlu0 %5159, %v4018
  %v5161 = vpop.permute.xlu0 %5160
  %5164 = vset.pattern.permute.xlu0 0
  %5165 = vperm.xlu0 %5164, %v4019
  %v5166 = vpop.permute.xlu0 %5165
  %5169 = vset.pattern.permute.xlu0 0
  %5170 = vperm.xlu0 %5169, %v4020
  %v5171 = vpop.permute.xlu0 %5170
  %5174 = vset.pattern.permute.xlu0 0
  %5175 = vperm.xlu0 %5174, %v4021
  %v5176 = vpop.permute.xlu0 %5175
  %5179 = vset.pattern.permute.xlu0 0
  %5180 = vperm.xlu0 %5179, %v4022
  %v5181 = vpop.permute.xlu0 %5180
  %5184 = vset.pattern.permute.xlu0 0
  %5185 = vperm.xlu0 %5184, %v4023
  %v5186 = vpop.permute.xlu0 %5185
  %5189 = vset.pattern.permute.xlu0 0
  %5190 = vperm.xlu0 %5189, %v4024
  %v5191 = vpop.permute.xlu0 %5190
  %5194 = vset.pattern.permute.xlu0 0
  %5195 = vperm.xlu0 %5194, %v4025
  %v5196 = vpop.permute.xlu0 %5195
  %5199 = vset.pattern.permute.xlu0 0
  %5200 = vperm.xlu0 %5199, %v4026
  %v5201 = vpop.permute.xlu0 %5200
  %5204 = vset.pattern.permute.xlu0 0
  %5205 = vperm.xlu0 %5204, %v4027
  %v5206 = vpop.permute.xlu0 %5205
  %5209 = vset.pattern.permute.xlu0 0
  %5210 = vperm.xlu0 %5209, %v4028
  %v5211 = vpop.permute.xlu0 %5210
  %5214 = vset.pattern.permute.xlu0 0
  %5215 = vperm.xlu0 %5214, %v4029
  %v5216 = vpop.permute.xlu0 %5215
  %5219 = vset.pattern.permute.xlu0 0
  %5220 = vperm.xlu0 %5219, %v4030
  %v5221 = vpop.permute.xlu0 %5220
  %5224 = vset.pattern.permute.xlu0 0
  %5225 = vperm.xlu0 %5224, %v4031
  %v5226 = vpop.permute.xlu0 %5225
  %5229 = vset.pattern.permute.xlu0 0
  %5230 = vperm.xlu0 %5229, %v4032
  %v5231 = vpop.permute.xlu0 %5230
  %5234 = vset.pattern.permute.xlu0 0
  %5235 = vperm.xlu0 %5234, %v4033
  %v5236 = vpop.permute.xlu0 %5235
  %5239 = vset.pattern.permute.xlu0 0
  %5240 = vperm.xlu0 %5239, %v4034
  %v5241 = vpop.permute.xlu0 %5240
  %5244 = vset.pattern.permute.xlu0 0
  %5245 = vperm.xlu0 %5244, %v4035
  %v5246 = vpop.permute.xlu0 %5245
  %5249 = vset.pattern.permute.xlu0 0
  %5250 = vperm.xlu0 %5249, %v4036
  %v5251 = vpop.permute.xlu0 %5250
  %5254 = vset.pattern.permute.xlu0 0
  %5255 = vperm.xlu0 %5254, %v4037
  %v5256 = vpop.permute.xlu0 %5255
  %5259 = vset.pattern.permute.xlu0 0
  %5260 = vperm.xlu0 %5259, %v4038
  %v5261 = vpop.permute.xlu0 %5260
  %5264 = vset.pattern.permute.xlu0 0
  %5265 = vperm.xlu0 %5264, %v4039
  %v5266 = vpop.permute.xlu0 %5265
  %5269 = vset.pattern.permute.xlu0 0
  %5270 = vperm.xlu0 %5269, %v4040
  %v5271 = vpop.permute.xlu0 %5270
  %5274 = vset.pattern.permute.xlu0 0
  %5275 = vperm.xlu0 %5274, %v4041
  %v5276 = vpop.permute.xlu0 %5275
  %5279 = vset.pattern.permute.xlu0 0
  %5280 = vperm.xlu0 %5279, %v4042
  %v5281 = vpop.permute.xlu0 %5280
  %5284 = vset.pattern.permute.xlu0 0
  %5285 = vperm.xlu0 %5284, %v4043
  %v5286 = vpop.permute.xlu0 %5285
  %5289 = vset.pattern.permute.xlu0 0
  %5290 = vperm.xlu0 %5289, %v4044
  %v5291 = vpop.permute.xlu0 %5290
  %5294 = vset.pattern.permute.xlu0 0
  %5295 = vperm.xlu0 %5294, %v4045
  %v5296 = vpop.permute.xlu0 %5295
  %5299 = vset.pattern.permute.xlu0 0
  %5300 = vperm.xlu0 %5299, %v4046
  %v5301 = vpop.permute.xlu0 %5300
  %5304 = vset.pattern.permute.xlu0 0
  %5305 = vperm.xlu0 %5304, %v4047
  %v5306 = vpop.permute.xlu0 %5305
  %5309 = vset.pattern.permute.xlu0 0
  %5310 = vperm.xlu0 %5309, %v4048
  %v5311 = vpop.permute.xlu0 %5310
  %5314 = vset.pattern.permute.xlu0 0
  %5315 = vperm.xlu0 %5314, %v4049
  %v5316 = vpop.permute.xlu0 %5315
  %5319 = vset.pattern.permute.xlu0 0
  %5320 = vperm.xlu0 %5319, %v4050
  %v5321 = vpop.permute.xlu0 %5320
  %5324 = vset.pattern.permute.xlu0 0
  %5325 = vperm.xlu0 %5324, %v4051
  %v5326 = vpop.permute.xlu0 %5325
  %5329 = vset.pattern.permute.xlu0 0
  %5330 = vperm.xlu0 %5329, %v4052
  %v5331 = vpop.permute.xlu0 %5330
  %5334 = vset.pattern.permute.xlu0 0
  %5335 = vperm.xlu0 %5334, %v4053
  %v5336 = vpop.permute.xlu0 %5335
  %5339 = vset.pattern.permute.xlu0 0
  %5340 = vperm.xlu0 %5339, %v4054
  %v5341 = vpop.permute.xlu0 %5340
  %5344 = vset.pattern.permute.xlu0 0
  %5345 = vperm.xlu0 %5344, %v4055
  %v5346 = vpop.permute.xlu0 %5345
  %5349 = vset.pattern.permute.xlu0 0
  %5350 = vperm.xlu0 %5349, %v4056
  %v5351 = vpop.permute.xlu0 %5350
  %5354 = vset.pattern.permute.xlu0 0
  %5355 = vperm.xlu0 %5354, %v4057
  %v5356 = vpop.permute.xlu0 %5355
  %5359 = vset.pattern.permute.xlu0 0
  %5360 = vperm.xlu0 %5359, %v4058
  %v5361 = vpop.permute.xlu0 %5360
  %5364 = vset.pattern.permute.xlu0 0
  %5365 = vperm.xlu0 %5364, %v4059
  %v5366 = vpop.permute.xlu0 %5365
  %5369 = vset.pattern.permute.xlu0 0
  %5370 = vperm.xlu0 %5369, %v4060
  %v5371 = vpop.permute.xlu0 %5370
  %5374 = vset.pattern.permute.xlu0 0
  %5375 = vperm.xlu0 %5374, %v4061
  %v5376 = vpop.permute.xlu0 %5375
  %5379 = vset.pattern.permute.xlu0 0
  %5380 = vperm.xlu0 %5379, %v4062
  %v5381 = vpop.permute.xlu0 %5380
  %5384 = vset.pattern.permute.xlu0 0
  %5385 = vperm.xlu0 %5384, %v4063
  %v5386 = vpop.permute.xlu0 %5385
  %5389 = vset.pattern.permute.xlu0 0
  %5390 = vperm.xlu0 %5389, %v4064
  %v5391 = vpop.permute.xlu0 %5390
  %5394 = vset.pattern.permute.xlu0 0
  %5395 = vperm.xlu0 %5394, %v4065
  %v5396 = vpop.permute.xlu0 %5395
  %5399 = vset.pattern.permute.xlu0 0
  %5400 = vperm.xlu0 %5399, %v4066
  %v5401 = vpop.permute.xlu0 %5400
  %5404 = vset.pattern.permute.xlu0 0
  %5405 = vperm.xlu0 %5404, %v4067
  %v5406 = vpop.permute.xlu0 %5405
  %5409 = vset.pattern.permute.xlu0 0
  %5410 = vperm.xlu0 %5409, %v4068
  %v5411 = vpop.permute.xlu0 %5410
  %5414 = vset.pattern.permute.xlu0 0
  %5415 = vperm.xlu0 %5414, %v4069
  %v5416 = vpop.permute.xlu0 %5415
  %5419 = vset.pattern.permute.xlu0 0
  %5420 = vperm.xlu0 %5419, %v4070
  %v5421 = vpop.permute.xlu0 %5420
  %5424 = vset.pattern.permute.xlu0 0
  %5425 = vperm.xlu0 %5424, %v4071
  %v5426 = vpop.permute.xlu0 %5425
  %5429 = vset.pattern.permute.xlu0 0
  %5430 = vperm.xlu0 %5429, %v4072
  %v5431 = vpop.permute.xlu0 %5430
  %5434 = vset.pattern.permute.xlu0 0
  %5435 = vperm.xlu0 %5434, %v4073
  %v5436 = vpop.permute.xlu0 %5435
  %5439 = vset.pattern.permute.xlu0 0
  %5440 = vperm.xlu0 %5439, %v4074
  %v5441 = vpop.permute.xlu0 %5440
  %5444 = vset.pattern.permute.xlu0 0
  %5445 = vperm.xlu0 %5444, %v4075
  %v5446 = vpop.permute.xlu0 %5445
  %5449 = vset.pattern.permute.xlu0 0
  %5450 = vperm.xlu0 %5449, %v4076
  %v5451 = vpop.permute.xlu0 %5450
  %5454 = vset.pattern.permute.xlu0 0
  %5455 = vperm.xlu0 %5454, %v4077
  %v5456 = vpop.permute.xlu0 %5455
  %5459 = vset.pattern.permute.xlu0 0
  %5460 = vperm.xlu0 %5459, %v4078
  %v5461 = vpop.permute.xlu0 %5460
  %5464 = vset.pattern.permute.xlu0 0
  %5465 = vperm.xlu0 %5464, %v4079
  %v5466 = vpop.permute.xlu0 %5465
  %5469 = vset.pattern.permute.xlu0 0
  %5470 = vperm.xlu0 %5469, %v4080
  %v5471 = vpop.permute.xlu0 %5470
  %5474 = vset.pattern.permute.xlu0 0
  %5475 = vperm.xlu0 %5474, %v4081
  %v5476 = vpop.permute.xlu0 %5475
  %5479 = vset.pattern.permute.xlu0 0
  %5480 = vperm.xlu0 %5479, %v4082
  %v5481 = vpop.permute.xlu0 %5480
  %5484 = vset.pattern.permute.xlu0 0
  %5485 = vperm.xlu0 %5484, %v4083
  %v5486 = vpop.permute.xlu0 %5485
  %5489 = vset.pattern.permute.xlu0 0
  %5490 = vperm.xlu0 %5489, %v4084
  %v5491 = vpop.permute.xlu0 %5490
  %5494 = vset.pattern.permute.xlu0 0
  %5495 = vperm.xlu0 %5494, %v4085
  %v5496 = vpop.permute.xlu0 %5495
  %5499 = vset.pattern.permute.xlu0 0
  %5500 = vperm.xlu0 %5499, %v4086
  %v5501 = vpop.permute.xlu0 %5500
  %5504 = vset.pattern.permute.xlu0 0
  %5505 = vperm.xlu0 %5504, %v4087
  %v5506 = vpop.permute.xlu0 %5505
  %5509 = vset.pattern.permute.xlu0 0
  %5510 = vperm.xlu0 %5509, %v4088
  %v5511 = vpop.permute.xlu0 %5510
  %5514 = vset.pattern.permute.xlu0 0
  %5515 = vperm.xlu0 %5514, %v4089
  %v5516 = vpop.permute.xlu0 %5515
  %5519 = vset.pattern.permute.xlu0 0
  %5520 = vperm.xlu0 %5519, %v4090
  %v5521 = vpop.permute.xlu0 %5520
  %5524 = vset.pattern.permute.xlu0 0
  %5525 = vperm.xlu0 %5524, %v4091
  %v5526 = vpop.permute.xlu0 %5525
  %5529 = vset.pattern.permute.xlu0 0
  %5530 = vperm.xlu0 %5529, %v4092
  %v5531 = vpop.permute.xlu0 %5530
  %5534 = vset.pattern.permute.xlu0 0
  %5535 = vperm.xlu0 %5534, %v4093
  %v5536 = vpop.permute.xlu0 %5535
  %5539 = vset.pattern.permute.xlu0 0
  %5540 = vperm.xlu0 %5539, %v4094
  %v5541 = vpop.permute.xlu0 %5540
  %5544 = vset.pattern.permute.xlu0 0
  %5545 = vperm.xlu0 %5544, %v4095
  %v5546 = vpop.permute.xlu0 %5545
  %5549 = vset.pattern.permute.xlu0 0
  %5550 = vperm.xlu0 %5549, %v4096
  %v5551 = vpop.permute.xlu0 %5550
  %5554 = vset.pattern.permute.xlu0 0
  %5555 = vperm.xlu0 %5554, %v4097
  %v5556 = vpop.permute.xlu0 %5555
  %5559 = vset.pattern.permute.xlu0 0
  %5560 = vperm.xlu0 %5559, %v4098
  %v5561 = vpop.permute.xlu0 %5560
  %5564 = vset.pattern.permute.xlu0 0
  %5565 = vperm.xlu0 %5564, %v4099
  %v5566 = vpop.permute.xlu0 %5565
  %5569 = vset.pattern.permute.xlu0 0
  %5570 = vperm.xlu0 %5569, %v4100
  %v5571 = vpop.permute.xlu0 %5570
  %5574 = vset.pattern.permute.xlu0 0
  %5575 = vperm.xlu0 %5574, %v4101
  %v5576 = vpop.permute.xlu0 %5575
  %5579 = vset.pattern.permute.xlu0 0
  %5580 = vperm.xlu0 %5579, %v4102
  %v5581 = vpop.permute.xlu0 %5580
  %5584 = vset.pattern.permute.xlu0 0
  %5585 = vperm.xlu0 %5584, %v4103
  %v5586 = vpop.permute.xlu0 %5585
  %5589 = vset.pattern.permute.xlu0 0
  %5590 = vperm.xlu0 %5589, %v4104
  %v5591 = vpop.permute.xlu0 %5590
  %5594 = vset.pattern.permute.xlu0 0
  %5595 = vperm.xlu0 %5594, %v4105
  %v5596 = vpop.permute.xlu0 %5595
  %5599 = vset.pattern.permute.xlu0 0
  %5600 = vperm.xlu0 %5599, %v4106
  %v5601 = vpop.permute.xlu0 %5600
  %5604 = vset.pattern.permute.xlu0 0
  %5605 = vperm.xlu0 %5604, %v4107
  %v5606 = vpop.permute.xlu0 %5605
  %5609 = vset.pattern.permute.xlu0 0
  %5610 = vperm.xlu0 %5609, %v4108
  %v5611 = vpop.permute.xlu0 %5610
  %5614 = vset.pattern.permute.xlu0 0
  %5615 = vperm.xlu0 %5614, %v4109
  %v5616 = vpop.permute.xlu0 %5615
  %5619 = vset.pattern.permute.xlu0 0
  %5620 = vperm.xlu0 %5619, %v4110
  %v5621 = vpop.permute.xlu0 %5620
  %5624 = vset.pattern.permute.xlu0 0
  %5625 = vperm.xlu0 %5624, %v4111
  %v5626 = vpop.permute.xlu0 %5625
  %5629 = vset.pattern.permute.xlu0 0
  %5630 = vperm.xlu0 %5629, %v4112
  %v5631 = vpop.permute.xlu0 %5630
  %5634 = vset.pattern.permute.xlu0 0
  %5635 = vperm.xlu0 %5634, %v4113
  %v5636 = vpop.permute.xlu0 %5635
  %5639 = vset.pattern.permute.xlu0 0
  %5640 = vperm.xlu0 %5639, %v4114
  %v5641 = vpop.permute.xlu0 %5640
  %5644 = vset.pattern.permute.xlu0 0
  %5645 = vperm.xlu0 %5644, %v4115
  %v5646 = vpop.permute.xlu0 %5645
  %5649 = vset.pattern.permute.xlu0 0
  %5650 = vperm.xlu0 %5649, %v4116
  %v5651 = vpop.permute.xlu0 %5650
  %v5653 = vadd.f32 %v4757, %v5016
  %v5654 = vadd.f32 %v4758, %v5016
  %v5655 = vadd.f32 %v4759, %v5021
  %v5656 = vadd.f32 %v4760, %v5021
  %v5657 = vadd.f32 %v4761, %v5026
  %v5658 = vadd.f32 %v4762, %v5026
  %v5659 = vadd.f32 %v4763, %v5031
  %v5660 = vadd.f32 %v4764, %v5031
  %v5661 = vadd.f32 %v4765, %v5036
  %v5662 = vadd.f32 %v4766, %v5036
  %v5663 = vadd.f32 %v4767, %v5041
  %v5664 = vadd.f32 %v4768, %v5041
  %v5665 = vadd.f32 %v4769, %v5046
  %v5666 = vadd.f32 %v4770, %v5046
  %v5667 = vadd.f32 %v4771, %v5051
  %v5668 = vadd.f32 %v4772, %v5051
  %v5669 = vadd.f32 %v4773, %v5056
  %v5670 = vadd.f32 %v4774, %v5056
  %v5671 = vadd.f32 %v4775, %v5061
  %v5672 = vadd.f32 %v4776, %v5061
  %v5673 = vadd.f32 %v4777, %v5066
  %v5674 = vadd.f32 %v4778, %v5066
  %v5675 = vadd.f32 %v4779, %v5071
  %v5676 = vadd.f32 %v4780, %v5071
  %v5677 = vadd.f32 %v4781, %v5076
  %v5678 = vadd.f32 %v4782, %v5076
  %v5679 = vadd.f32 %v4783, %v5081
  %v5680 = vadd.f32 %v4784, %v5081
  %v5681 = vadd.f32 %v4785, %v5086
  %v5682 = vadd.f32 %v4786, %v5086
  %v5683 = vadd.f32 %v4787, %v5091
  %v5684 = vadd.f32 %v4788, %v5091
  %v5685 = vadd.f32 %v4789, %v5096
  %v5686 = vadd.f32 %v4790, %v5096
  %v5687 = vadd.f32 %v4791, %v5101
  %v5688 = vadd.f32 %v4792, %v5101
  %v5689 = vadd.f32 %v4793, %v5106
  %v5690 = vadd.f32 %v4794, %v5106
  %v5691 = vadd.f32 %v4795, %v5111
  %v5692 = vadd.f32 %v4796, %v5111
  %v5693 = vadd.f32 %v4797, %v5116
  %v5694 = vadd.f32 %v4798, %v5116
  %v5695 = vadd.f32 %v4799, %v5121
  %v5696 = vadd.f32 %v4800, %v5121
  %v5697 = vadd.f32 %v4801, %v5126
  %v5698 = vadd.f32 %v4802, %v5126
  %v5699 = vadd.f32 %v4803, %v5131
  %v5700 = vadd.f32 %v4804, %v5131
  %v5701 = vadd.f32 %v4805, %v5136
  %v5702 = vadd.f32 %v4806, %v5136
  %v5703 = vadd.f32 %v4807, %v5141
  %v5704 = vadd.f32 %v4808, %v5141
  %v5705 = vadd.f32 %v4809, %v5146
  %v5706 = vadd.f32 %v4810, %v5146
  %v5707 = vadd.f32 %v4811, %v5151
  %v5708 = vadd.f32 %v4812, %v5151
  %v5709 = vadd.f32 %v4813, %v5156
  %v5710 = vadd.f32 %v4814, %v5156
  %v5711 = vadd.f32 %v4815, %v5161
  %v5712 = vadd.f32 %v4816, %v5161
  %v5713 = vadd.f32 %v4817, %v5166
  %v5714 = vadd.f32 %v4818, %v5166
  %v5715 = vadd.f32 %v4819, %v5171
  %v5716 = vadd.f32 %v4820, %v5171
  %v5717 = vadd.f32 %v4821, %v5176
  %v5718 = vadd.f32 %v4822, %v5176
  %v5719 = vadd.f32 %v4823, %v5181
  %v5720 = vadd.f32 %v4824, %v5181
  %v5721 = vadd.f32 %v4825, %v5186
  %v5722 = vadd.f32 %v4826, %v5186
  %v5723 = vadd.f32 %v4827, %v5191
  %v5724 = vadd.f32 %v4828, %v5191
  %v5725 = vadd.f32 %v4829, %v5196
  %v5726 = vadd.f32 %v4830, %v5196
  %v5727 = vadd.f32 %v4831, %v5201
  %v5728 = vadd.f32 %v4832, %v5201
  %v5729 = vadd.f32 %v4833, %v5206
  %v5730 = vadd.f32 %v4834, %v5206
  %v5731 = vadd.f32 %v4835, %v5211
  %v5732 = vadd.f32 %v4836, %v5211
  %v5733 = vadd.f32 %v4837, %v5216
  %v5734 = vadd.f32 %v4838, %v5216
  %v5735 = vadd.f32 %v4839, %v5221
  %v5736 = vadd.f32 %v4840, %v5221
  %v5737 = vadd.f32 %v4841, %v5226
  %v5738 = vadd.f32 %v4842, %v5226
  %v5739 = vadd.f32 %v4843, %v5231
  %v5740 = vadd.f32 %v4844, %v5231
  %v5741 = vadd.f32 %v4845, %v5236
  %v5742 = vadd.f32 %v4846, %v5236
  %v5743 = vadd.f32 %v4847, %v5241
  %v5744 = vadd.f32 %v4848, %v5241
  %v5745 = vadd.f32 %v4849, %v5246
  %v5746 = vadd.f32 %v4850, %v5246
  %v5747 = vadd.f32 %v4851, %v5251
  %v5748 = vadd.f32 %v4852, %v5251
  %v5749 = vadd.f32 %v4853, %v5256
  %v5750 = vadd.f32 %v4854, %v5256
  %v5751 = vadd.f32 %v4855, %v5261
  %v5752 = vadd.f32 %v4856, %v5261
  %v5753 = vadd.f32 %v4857, %v5266
  %v5754 = vadd.f32 %v4858, %v5266
  %v5755 = vadd.f32 %v4859, %v5271
  %v5756 = vadd.f32 %v4860, %v5271
  %v5757 = vadd.f32 %v4861, %v5276
  %v5758 = vadd.f32 %v4862, %v5276
  %v5759 = vadd.f32 %v4863, %v5281
  %v5760 = vadd.f32 %v4864, %v5281
  %v5761 = vadd.f32 %v4865, %v5286
  %v5762 = vadd.f32 %v4866, %v5286
  %v5763 = vadd.f32 %v4867, %v5291
  %v5764 = vadd.f32 %v4868, %v5291
  %v5765 = vadd.f32 %v4869, %v5296
  %v5766 = vadd.f32 %v4870, %v5296
  %v5767 = vadd.f32 %v4871, %v5301
  %v5768 = vadd.f32 %v4872, %v5301
  %v5769 = vadd.f32 %v4873, %v5306
  %v5770 = vadd.f32 %v4874, %v5306
  %v5771 = vadd.f32 %v4875, %v5311
  %v5772 = vadd.f32 %v4876, %v5311
  %v5773 = vadd.f32 %v4877, %v5316
  %v5774 = vadd.f32 %v4878, %v5316
  %v5775 = vadd.f32 %v4879, %v5321
  %v5776 = vadd.f32 %v4880, %v5321
  %v5777 = vadd.f32 %v4881, %v5326
  %v5778 = vadd.f32 %v4882, %v5326
  %v5779 = vadd.f32 %v4883, %v5331
  %v5780 = vadd.f32 %v4884, %v5331
  %v5781 = vadd.f32 %v4885, %v5336
  %v5782 = vadd.f32 %v4886, %v5336
  %v5783 = vadd.f32 %v4887, %v5341
  %v5784 = vadd.f32 %v4888, %v5341
  %v5785 = vadd.f32 %v4889, %v5346
  %v5786 = vadd.f32 %v4890, %v5346
  %v5787 = vadd.f32 %v4891, %v5351
  %v5788 = vadd.f32 %v4892, %v5351
  %v5789 = vadd.f32 %v4893, %v5356
  %v5790 = vadd.f32 %v4894, %v5356
  %v5791 = vadd.f32 %v4895, %v5361
  %v5792 = vadd.f32 %v4896, %v5361
  %v5793 = vadd.f32 %v4897, %v5366
  %v5794 = vadd.f32 %v4898, %v5366
  %v5795 = vadd.f32 %v4899, %v5371
  %v5796 = vadd.f32 %v4900, %v5371
  %v5797 = vadd.f32 %v4901, %v5376
  %v5798 = vadd.f32 %v4902, %v5376
  %v5799 = vadd.f32 %v4903, %v5381
  %v5800 = vadd.f32 %v4904, %v5381
  %v5801 = vadd.f32 %v4905, %v5386
  %v5802 = vadd.f32 %v4906, %v5386
  %v5803 = vadd.f32 %v4907, %v5391
  %v5804 = vadd.f32 %v4908, %v5391
  %v5805 = vadd.f32 %v4909, %v5396
  %v5806 = vadd.f32 %v4910, %v5396
  %v5807 = vadd.f32 %v4911, %v5401
  %v5808 = vadd.f32 %v4912, %v5401
  %v5809 = vadd.f32 %v4913, %v5406
  %v5810 = vadd.f32 %v4914, %v5406
  %v5811 = vadd.f32 %v4915, %v5411
  %v5812 = vadd.f32 %v4916, %v5411
  %v5813 = vadd.f32 %v4917, %v5416
  %v5814 = vadd.f32 %v4918, %v5416
  %v5815 = vadd.f32 %v4919, %v5421
  %v5816 = vadd.f32 %v4920, %v5421
  %v5817 = vadd.f32 %v4921, %v5426
  %v5818 = vadd.f32 %v4922, %v5426
  %v5819 = vadd.f32 %v4923, %v5431
  %v5820 = vadd.f32 %v4924, %v5431
  %v5821 = vadd.f32 %v4925, %v5436
  %v5822 = vadd.f32 %v4926, %v5436
  %v5823 = vadd.f32 %v4927, %v5441
  %v5824 = vadd.f32 %v4928, %v5441
  %v5825 = vadd.f32 %v4929, %v5446
  %v5826 = vadd.f32 %v4930, %v5446
  %v5827 = vadd.f32 %v4931, %v5451
  %v5828 = vadd.f32 %v4932, %v5451
  %v5829 = vadd.f32 %v4933, %v5456
  %v5830 = vadd.f32 %v4934, %v5456
  %v5831 = vadd.f32 %v4935, %v5461
  %v5832 = vadd.f32 %v4936, %v5461
  %v5833 = vadd.f32 %v4937, %v5466
  %v5834 = vadd.f32 %v4938, %v5466
  %v5835 = vadd.f32 %v4939, %v5471
  %v5836 = vadd.f32 %v4940, %v5471
  %v5837 = vadd.f32 %v4941, %v5476
  %v5838 = vadd.f32 %v4942, %v5476
  %v5839 = vadd.f32 %v4943, %v5481
  %v5840 = vadd.f32 %v4944, %v5481
  %v5841 = vadd.f32 %v4945, %v5486
  %v5842 = vadd.f32 %v4946, %v5486
  %v5843 = vadd.f32 %v4947, %v5491
  %v5844 = vadd.f32 %v4948, %v5491
  %v5845 = vadd.f32 %v4949, %v5496
  %v5846 = vadd.f32 %v4950, %v5496
  %v5847 = vadd.f32 %v4951, %v5501
  %v5848 = vadd.f32 %v4952, %v5501
  %v5849 = vadd.f32 %v4953, %v5506
  %v5850 = vadd.f32 %v4954, %v5506
  %v5851 = vadd.f32 %v4955, %v5511
  %v5852 = vadd.f32 %v4956, %v5511
  %v5853 = vadd.f32 %v4957, %v5516
  %v5854 = vadd.f32 %v4958, %v5516
  %v5855 = vadd.f32 %v4959, %v5521
  %v5856 = vadd.f32 %v4960, %v5521
  %v5857 = vadd.f32 %v4961, %v5526
  %v5858 = vadd.f32 %v4962, %v5526
  %v5859 = vadd.f32 %v4963, %v5531
  %v5860 = vadd.f32 %v4964, %v5531
  %v5861 = vadd.f32 %v4965, %v5536
  %v5862 = vadd.f32 %v4966, %v5536
  %v5863 = vadd.f32 %v4967, %v5541
  %v5864 = vadd.f32 %v4968, %v5541
  %v5865 = vadd.f32 %v4969, %v5546
  %v5866 = vadd.f32 %v4970, %v5546
  %v5867 = vadd.f32 %v4971, %v5551
  %v5868 = vadd.f32 %v4972, %v5551
  %v5869 = vadd.f32 %v4973, %v5556
  %v5870 = vadd.f32 %v4974, %v5556
  %v5871 = vadd.f32 %v4975, %v5561
  %v5872 = vadd.f32 %v4976, %v5561
  %v5873 = vadd.f32 %v4977, %v5566
  %v5874 = vadd.f32 %v4978, %v5566
  %v5875 = vadd.f32 %v4979, %v5571
  %v5876 = vadd.f32 %v4980, %v5571
  %v5877 = vadd.f32 %v4981, %v5576
  %v5878 = vadd.f32 %v4982, %v5576
  %v5879 = vadd.f32 %v4983, %v5581
  %v5880 = vadd.f32 %v4984, %v5581
  %v5881 = vadd.f32 %v4985, %v5586
  %v5882 = vadd.f32 %v4986, %v5586
  %v5883 = vadd.f32 %v4987, %v5591
  %v5884 = vadd.f32 %v4988, %v5591
  %v5885 = vadd.f32 %v4989, %v5596
  %v5886 = vadd.f32 %v4990, %v5596
  %v5887 = vadd.f32 %v4991, %v5601
  %v5888 = vadd.f32 %v4992, %v5601
  %v5889 = vadd.f32 %v4993, %v5606
  %v5890 = vadd.f32 %v4994, %v5606
  %v5891 = vadd.f32 %v4995, %v5611
  %v5892 = vadd.f32 %v4996, %v5611
  %v5893 = vadd.f32 %v4997, %v5616
  %v5894 = vadd.f32 %v4998, %v5616
  %v5895 = vadd.f32 %v4999, %v5621
  %v5896 = vadd.f32 %v5000, %v5621
  %v5897 = vadd.f32 %v5001, %v5626
  %v5898 = vadd.f32 %v5002, %v5626
  %v5899 = vadd.f32 %v5003, %v5631
  %v5900 = vadd.f32 %v5004, %v5631
  %v5901 = vadd.f32 %v5005, %v5636
  %v5902 = vadd.f32 %v5006, %v5636
  %v5903 = vadd.f32 %v5007, %v5641
  %v5904 = vadd.f32 %v5008, %v5641
  %v5905 = vadd.f32 %v5009, %v5646
  %v5906 = vadd.f32 %v5010, %v5646
  %v5907 = vadd.f32 %v5011, %v5651
  %v5908 = vadd.f32 %v5012, %v5651
  %v5909 = vld [vmem:[%s1] sm:$0xff]
  %v5910 = vld [vmem:[%s1 + $0x8] sm:$0xff]
  %v5911 = vld [vmem:[%s1 + $0x10] sm:$0xff]
  %v5912 = vld [vmem:[%s1 + $0x18] sm:$0xff]
  %v5913 = vld [vmem:[%s1 + $0x20] sm:$0xff]
  %v5914 = vld [vmem:[%s1 + $0x28] sm:$0xff]
  %v5915 = vld [vmem:[%s1 + $0x30] sm:$0xff]
  %v5916 = vld [vmem:[%s1 + $0x38] sm:$0xff]
  %v5917 = vld [vmem:[%s1 + $0x40] sm:$0xff]
  %v5918 = vld [vmem:[%s1 + $0x48] sm:$0xff]
  %v5919 = vld [vmem:[%s1 + $0x50] sm:$0xff]
  %v5920 = vld [vmem:[%s1 + $0x58] sm:$0xff]
  %v5921 = vld [vmem:[%s1 + $0x60] sm:$0xff]
  %v5922 = vld [vmem:[%s1 + $0x68] sm:$0xff]
  %v5923 = vld [vmem:[%s1 + $0x70] sm:$0xff]
  %v5924 = vld [vmem:[%s1 + $0x78] sm:$0xff]
  %v5925 = vld [vmem:[%s1 + $0x80] sm:$0xff]
  %v5926 = vld [vmem:[%s1 + $0x88] sm:$0xff]
  %v5927 = vld [vmem:[%s1 + $0x90] sm:$0xff]
  %v5928 = vld [vmem:[%s1 + $0x98] sm:$0xff]
  %v5929 = vld [vmem:[%s1 + $0xa0] sm:$0xff]
  %v5930 = vld [vmem:[%s1 + $0xa8] sm:$0xff]
  %v5931 = vld [vmem:[%s1 + $0xb0] sm:$0xff]
  %v5932 = vld [vmem:[%s1 + $0xb8] sm:$0xff]
  %v5933 = vld [vmem:[%s1 + $0xc0] sm:$0xff]
  %v5934 = vld [vmem:[%s1 + $0xc8] sm:$0xff]
  %v5935 = vld [vmem:[%s1 + $0xd0] sm:$0xff]
  %v5936 = vld [vmem:[%s1 + $0xd8] sm:$0xff]
  %v5937 = vld [vmem:[%s1 + $0xe0] sm:$0xff]
  %v5938 = vld [vmem:[%s1 + $0xe8] sm:$0xff]
  %v5939 = vld [vmem:[%s1 + $0xf0] sm:$0xff]
  %v5940 = vld [vmem:[%s1 + $0xf8] sm:$0xff]
  %v5941 = vld [vmem:[%s1 + $0x100] sm:$0xff]
  %v5942 = vld [vmem:[%s1 + $0x108] sm:$0xff]
  %v5943 = vld [vmem:[%s1 + $0x110] sm:$0xff]
  %v5944 = vld [vmem:[%s1 + $0x118] sm:$0xff]
  %v5945 = vld [vmem:[%s1 + $0x120] sm:$0xff]
  %v5946 = vld [vmem:[%s1 + $0x128] sm:$0xff]
  %v5947 = vld [vmem:[%s1 + $0x130] sm:$0xff]
  %v5948 = vld [vmem:[%s1 + $0x138] sm:$0xff]
  %v5949 = vld [vmem:[%s1 + $0x140] sm:$0xff]
  %v5950 = vld [vmem:[%s1 + $0x148] sm:$0xff]
  %v5951 = vld [vmem:[%s1 + $0x150] sm:$0xff]
  %v5952 = vld [vmem:[%s1 + $0x158] sm:$0xff]
  %v5953 = vld [vmem:[%s1 + $0x160] sm:$0xff]
  %v5954 = vld [vmem:[%s1 + $0x168] sm:$0xff]
  %v5955 = vld [vmem:[%s1 + $0x170] sm:$0xff]
  %v5956 = vld [vmem:[%s1 + $0x178] sm:$0xff]
  %v5957 = vld [vmem:[%s1 + $0x180] sm:$0xff]
  %v5958 = vld [vmem:[%s1 + $0x188] sm:$0xff]
  %v5959 = vld [vmem:[%s1 + $0x190] sm:$0xff]
  %v5960 = vld [vmem:[%s1 + $0x198] sm:$0xff]
  %v5961 = vld [vmem:[%s1 + $0x1a0] sm:$0xff]
  %v5962 = vld [vmem:[%s1 + $0x1a8] sm:$0xff]
  %v5963 = vld [vmem:[%s1 + $0x1b0] sm:$0xff]
  %v5964 = vld [vmem:[%s1 + $0x1b8] sm:$0xff]
  %v5965 = vld [vmem:[%s1 + $0x1c0] sm:$0xff]
  %v5966 = vld [vmem:[%s1 + $0x1c8] sm:$0xff]
  %v5967 = vld [vmem:[%s1 + $0x1d0] sm:$0xff]
  %v5968 = vld [vmem:[%s1 + $0x1d8] sm:$0xff]
  %v5969 = vld [vmem:[%s1 + $0x1e0] sm:$0xff]
  %v5970 = vld [vmem:[%s1 + $0x1e8] sm:$0xff]
  %v5971 = vld [vmem:[%s1 + $0x1f0] sm:$0xff]
  %v5972 = vld [vmem:[%s1 + $0x1f8] sm:$0xff]
  %v5973 = vld [vmem:[%s1 + $0x200] sm:$0xff]
  %v5974 = vld [vmem:[%s1 + $0x208] sm:$0xff]
  %v5975 = vld [vmem:[%s1 + $0x210] sm:$0xff]
  %v5976 = vld [vmem:[%s1 + $0x218] sm:$0xff]
  %v5977 = vld [vmem:[%s1 + $0x220] sm:$0xff]
  %v5978 = vld [vmem:[%s1 + $0x228] sm:$0xff]
  %v5979 = vld [vmem:[%s1 + $0x230] sm:$0xff]
  %v5980 = vld [vmem:[%s1 + $0x238] sm:$0xff]
  %v5981 = vld [vmem:[%s1 + $0x240] sm:$0xff]
  %v5982 = vld [vmem:[%s1 + $0x248] sm:$0xff]
  %v5983 = vld [vmem:[%s1 + $0x250] sm:$0xff]
  %v5984 = vld [vmem:[%s1 + $0x258] sm:$0xff]
  %v5985 = vld [vmem:[%s1 + $0x260] sm:$0xff]
  %v5986 = vld [vmem:[%s1 + $0x268] sm:$0xff]
  %v5987 = vld [vmem:[%s1 + $0x270] sm:$0xff]
  %v5988 = vld [vmem:[%s1 + $0x278] sm:$0xff]
  %v5989 = vld [vmem:[%s1 + $0x280] sm:$0xff]
  %v5990 = vld [vmem:[%s1 + $0x288] sm:$0xff]
  %v5991 = vld [vmem:[%s1 + $0x290] sm:$0xff]
  %v5992 = vld [vmem:[%s1 + $0x298] sm:$0xff]
  %v5993 = vld [vmem:[%s1 + $0x2a0] sm:$0xff]
  %v5994 = vld [vmem:[%s1 + $0x2a8] sm:$0xff]
  %v5995 = vld [vmem:[%s1 + $0x2b0] sm:$0xff]
  %v5996 = vld [vmem:[%s1 + $0x2b8] sm:$0xff]
  %v5997 = vld [vmem:[%s1 + $0x2c0] sm:$0xff]
  %v5998 = vld [vmem:[%s1 + $0x2c8] sm:$0xff]
  %v5999 = vld [vmem:[%s1 + $0x2d0] sm:$0xff]
  %v6000 = vld [vmem:[%s1 + $0x2d8] sm:$0xff]
  %v6001 = vld [vmem:[%s1 + $0x2e0] sm:$0xff]
  %v6002 = vld [vmem:[%s1 + $0x2e8] sm:$0xff]
  %v6003 = vld [vmem:[%s1 + $0x2f0] sm:$0xff]
  %v6004 = vld [vmem:[%s1 + $0x2f8] sm:$0xff]
  %v6005 = vld [vmem:[%s1 + $0x300] sm:$0xff]
  %v6006 = vld [vmem:[%s1 + $0x308] sm:$0xff]
  %v6007 = vld [vmem:[%s1 + $0x310] sm:$0xff]
  %v6008 = vld [vmem:[%s1 + $0x318] sm:$0xff]
  %v6009 = vld [vmem:[%s1 + $0x320] sm:$0xff]
  %v6010 = vld [vmem:[%s1 + $0x328] sm:$0xff]
  %v6011 = vld [vmem:[%s1 + $0x330] sm:$0xff]
  %v6012 = vld [vmem:[%s1 + $0x338] sm:$0xff]
  %v6013 = vld [vmem:[%s1 + $0x340] sm:$0xff]
  %v6014 = vld [vmem:[%s1 + $0x348] sm:$0xff]
  %v6015 = vld [vmem:[%s1 + $0x350] sm:$0xff]
  %v6016 = vld [vmem:[%s1 + $0x358] sm:$0xff]
  %v6017 = vld [vmem:[%s1 + $0x360] sm:$0xff]
  %v6018 = vld [vmem:[%s1 + $0x368] sm:$0xff]
  %v6019 = vld [vmem:[%s1 + $0x370] sm:$0xff]
  %v6020 = vld [vmem:[%s1 + $0x378] sm:$0xff]
  %v6021 = vld [vmem:[%s1 + $0x380] sm:$0xff]
  %v6022 = vld [vmem:[%s1 + $0x388] sm:$0xff]
  %v6023 = vld [vmem:[%s1 + $0x390] sm:$0xff]
  %v6024 = vld [vmem:[%s1 + $0x398] sm:$0xff]
  %v6025 = vld [vmem:[%s1 + $0x3a0] sm:$0xff]
  %v6026 = vld [vmem:[%s1 + $0x3a8] sm:$0xff]
  %v6027 = vld [vmem:[%s1 + $0x3b0] sm:$0xff]
  %v6028 = vld [vmem:[%s1 + $0x3b8] sm:$0xff]
  %v6029 = vld [vmem:[%s1 + $0x3c0] sm:$0xff]
  %v6030 = vld [vmem:[%s1 + $0x3c8] sm:$0xff]
  %v6031 = vld [vmem:[%s1 + $0x3d0] sm:$0xff]
  %v6032 = vld [vmem:[%s1 + $0x3d8] sm:$0xff]
  %v6033 = vld [vmem:[%s1 + $0x3e0] sm:$0xff]
  %v6034 = vld [vmem:[%s1 + $0x3e8] sm:$0xff]
  %v6035 = vld [vmem:[%s1 + $0x3f0] sm:$0xff]
  %v6036 = vld [vmem:[%s1 + $0x3f8] sm:$0xff]
  %v6037 = vld [vmem:[%s1 + $0x400] sm:$0xff]
  %v6038 = vld [vmem:[%s1 + $0x408] sm:$0xff]
  %v6039 = vld [vmem:[%s1 + $0x410] sm:$0xff]
  %v6040 = vld [vmem:[%s1 + $0x418] sm:$0xff]
  %v6041 = vld [vmem:[%s1 + $0x420] sm:$0xff]
  %v6042 = vld [vmem:[%s1 + $0x428] sm:$0xff]
  %v6043 = vld [vmem:[%s1 + $0x430] sm:$0xff]
  %v6044 = vld [vmem:[%s1 + $0x438] sm:$0xff]
  %v6045 = vld [vmem:[%s1 + $0x440] sm:$0xff]
  %v6046 = vld [vmem:[%s1 + $0x448] sm:$0xff]
  %v6047 = vld [vmem:[%s1 + $0x450] sm:$0xff]
  %v6048 = vld [vmem:[%s1 + $0x458] sm:$0xff]
  %v6049 = vld [vmem:[%s1 + $0x460] sm:$0xff]
  %v6050 = vld [vmem:[%s1 + $0x468] sm:$0xff]
  %v6051 = vld [vmem:[%s1 + $0x470] sm:$0xff]
  %v6052 = vld [vmem:[%s1 + $0x478] sm:$0xff]
  %v6053 = vld [vmem:[%s1 + $0x480] sm:$0xff]
  %v6054 = vld [vmem:[%s1 + $0x488] sm:$0xff]
  %v6055 = vld [vmem:[%s1 + $0x490] sm:$0xff]
  %v6056 = vld [vmem:[%s1 + $0x498] sm:$0xff]
  %v6057 = vld [vmem:[%s1 + $0x4a0] sm:$0xff]
  %v6058 = vld [vmem:[%s1 + $0x4a8] sm:$0xff]
  %v6059 = vld [vmem:[%s1 + $0x4b0] sm:$0xff]
  %v6060 = vld [vmem:[%s1 + $0x4b8] sm:$0xff]
  %v6061 = vld [vmem:[%s1 + $0x4c0] sm:$0xff]
  %v6062 = vld [vmem:[%s1 + $0x4c8] sm:$0xff]
  %v6063 = vld [vmem:[%s1 + $0x4d0] sm:$0xff]
  %v6064 = vld [vmem:[%s1 + $0x4d8] sm:$0xff]
  %v6065 = vld [vmem:[%s1 + $0x4e0] sm:$0xff]
  %v6066 = vld [vmem:[%s1 + $0x4e8] sm:$0xff]
  %v6067 = vld [vmem:[%s1 + $0x4f0] sm:$0xff]
  %v6068 = vld [vmem:[%s1 + $0x4f8] sm:$0xff]
  %v6069 = vld [vmem:[%s1 + $0x500] sm:$0xff]
  %v6070 = vld [vmem:[%s1 + $0x508] sm:$0xff]
  %v6071 = vld [vmem:[%s1 + $0x510] sm:$0xff]
  %v6072 = vld [vmem:[%s1 + $0x518] sm:$0xff]
  %v6073 = vld [vmem:[%s1 + $0x520] sm:$0xff]
  %v6074 = vld [vmem:[%s1 + $0x528] sm:$0xff]
  %v6075 = vld [vmem:[%s1 + $0x530] sm:$0xff]
  %v6076 = vld [vmem:[%s1 + $0x538] sm:$0xff]
  %v6077 = vld [vmem:[%s1 + $0x540] sm:$0xff]
  %v6078 = vld [vmem:[%s1 + $0x548] sm:$0xff]
  %v6079 = vld [vmem:[%s1 + $0x550] sm:$0xff]
  %v6080 = vld [vmem:[%s1 + $0x558] sm:$0xff]
  %v6081 = vld [vmem:[%s1 + $0x560] sm:$0xff]
  %v6082 = vld [vmem:[%s1 + $0x568] sm:$0xff]
  %v6083 = vld [vmem:[%s1 + $0x570] sm:$0xff]
  %v6084 = vld [vmem:[%s1 + $0x578] sm:$0xff]
  %v6085 = vld [vmem:[%s1 + $0x580] sm:$0xff]
  %v6086 = vld [vmem:[%s1 + $0x588] sm:$0xff]
  %v6087 = vld [vmem:[%s1 + $0x590] sm:$0xff]
  %v6088 = vld [vmem:[%s1 + $0x598] sm:$0xff]
  %v6089 = vld [vmem:[%s1 + $0x5a0] sm:$0xff]
  %v6090 = vld [vmem:[%s1 + $0x5a8] sm:$0xff]
  %v6091 = vld [vmem:[%s1 + $0x5b0] sm:$0xff]
  %v6092 = vld [vmem:[%s1 + $0x5b8] sm:$0xff]
  %v6093 = vld [vmem:[%s1 + $0x5c0] sm:$0xff]
  %v6094 = vld [vmem:[%s1 + $0x5c8] sm:$0xff]
  %v6095 = vld [vmem:[%s1 + $0x5d0] sm:$0xff]
  %v6096 = vld [vmem:[%s1 + $0x5d8] sm:$0xff]
  %v6097 = vld [vmem:[%s1 + $0x5e0] sm:$0xff]
  %v6098 = vld [vmem:[%s1 + $0x5e8] sm:$0xff]
  %v6099 = vld [vmem:[%s1 + $0x5f0] sm:$0xff]
  %v6100 = vld [vmem:[%s1 + $0x5f8] sm:$0xff]
  %v6101 = vld [vmem:[%s1 + $0x600] sm:$0xff]
  %v6102 = vld [vmem:[%s1 + $0x608] sm:$0xff]
  %v6103 = vld [vmem:[%s1 + $0x610] sm:$0xff]
  %v6104 = vld [vmem:[%s1 + $0x618] sm:$0xff]
  %v6105 = vld [vmem:[%s1 + $0x620] sm:$0xff]
  %v6106 = vld [vmem:[%s1 + $0x628] sm:$0xff]
  %v6107 = vld [vmem:[%s1 + $0x630] sm:$0xff]
  %v6108 = vld [vmem:[%s1 + $0x638] sm:$0xff]
  %v6109 = vld [vmem:[%s1 + $0x640] sm:$0xff]
  %v6110 = vld [vmem:[%s1 + $0x648] sm:$0xff]
  %v6111 = vld [vmem:[%s1 + $0x650] sm:$0xff]
  %v6112 = vld [vmem:[%s1 + $0x658] sm:$0xff]
  %v6113 = vld [vmem:[%s1 + $0x660] sm:$0xff]
  %v6114 = vld [vmem:[%s1 + $0x668] sm:$0xff]
  %v6115 = vld [vmem:[%s1 + $0x670] sm:$0xff]
  %v6116 = vld [vmem:[%s1 + $0x678] sm:$0xff]
  %v6117 = vld [vmem:[%s1 + $0x680] sm:$0xff]
  %v6118 = vld [vmem:[%s1 + $0x688] sm:$0xff]
  %v6119 = vld [vmem:[%s1 + $0x690] sm:$0xff]
  %v6120 = vld [vmem:[%s1 + $0x698] sm:$0xff]
  %v6121 = vld [vmem:[%s1 + $0x6a0] sm:$0xff]
  %v6122 = vld [vmem:[%s1 + $0x6a8] sm:$0xff]
  %v6123 = vld [vmem:[%s1 + $0x6b0] sm:$0xff]
  %v6124 = vld [vmem:[%s1 + $0x6b8] sm:$0xff]
  %v6125 = vld [vmem:[%s1 + $0x6c0] sm:$0xff]
  %v6126 = vld [vmem:[%s1 + $0x6c8] sm:$0xff]
  %v6127 = vld [vmem:[%s1 + $0x6d0] sm:$0xff]
  %v6128 = vld [vmem:[%s1 + $0x6d8] sm:$0xff]
  %v6129 = vld [vmem:[%s1 + $0x6e0] sm:$0xff]
  %v6130 = vld [vmem:[%s1 + $0x6e8] sm:$0xff]
  %v6131 = vld [vmem:[%s1 + $0x6f0] sm:$0xff]
  %v6132 = vld [vmem:[%s1 + $0x6f8] sm:$0xff]
  %v6133 = vld [vmem:[%s1 + $0x700] sm:$0xff]
  %v6134 = vld [vmem:[%s1 + $0x708] sm:$0xff]
  %v6135 = vld [vmem:[%s1 + $0x710] sm:$0xff]
  %v6136 = vld [vmem:[%s1 + $0x718] sm:$0xff]
  %v6137 = vld [vmem:[%s1 + $0x720] sm:$0xff]
  %v6138 = vld [vmem:[%s1 + $0x728] sm:$0xff]
  %v6139 = vld [vmem:[%s1 + $0x730] sm:$0xff]
  %v6140 = vld [vmem:[%s1 + $0x738] sm:$0xff]
  %v6141 = vld [vmem:[%s1 + $0x740] sm:$0xff]
  %v6142 = vld [vmem:[%s1 + $0x748] sm:$0xff]
  %v6143 = vld [vmem:[%s1 + $0x750] sm:$0xff]
  %v6144 = vld [vmem:[%s1 + $0x758] sm:$0xff]
  %v6145 = vld [vmem:[%s1 + $0x760] sm:$0xff]
  %v6146 = vld [vmem:[%s1 + $0x768] sm:$0xff]
  %v6147 = vld [vmem:[%s1 + $0x770] sm:$0xff]
  %v6148 = vld [vmem:[%s1 + $0x778] sm:$0xff]
  %v6149 = vld [vmem:[%s1 + $0x780] sm:$0xff]
  %v6150 = vld [vmem:[%s1 + $0x788] sm:$0xff]
  %v6151 = vld [vmem:[%s1 + $0x790] sm:$0xff]
  %v6152 = vld [vmem:[%s1 + $0x798] sm:$0xff]
  %v6153 = vld [vmem:[%s1 + $0x7a0] sm:$0xff]
  %v6154 = vld [vmem:[%s1 + $0x7a8] sm:$0xff]
  %v6155 = vld [vmem:[%s1 + $0x7b0] sm:$0xff]
  %v6156 = vld [vmem:[%s1 + $0x7b8] sm:$0xff]
  %v6157 = vld [vmem:[%s1 + $0x7c0] sm:$0xff]
  %v6158 = vld [vmem:[%s1 + $0x7c8] sm:$0xff]
  %v6159 = vld [vmem:[%s1 + $0x7d0] sm:$0xff]
  %v6160 = vld [vmem:[%s1 + $0x7d8] sm:$0xff]
  %v6161 = vld [vmem:[%s1 + $0x7e0] sm:$0xff]
  %v6162 = vld [vmem:[%s1 + $0x7e8] sm:$0xff]
  %v6163 = vld [vmem:[%s1 + $0x7f0] sm:$0xff]
  %v6164 = vld [vmem:[%s1 + $0x7f8] sm:$0xff]
  %v6165 = vadd.f32 %v5653, %v5909
  %v6166 = vadd.f32 %v5654, %v5910
  %v6167 = vadd.f32 %v5655, %v5911
  %v6168 = vadd.f32 %v5656, %v5912
  %v6169 = vadd.f32 %v5657, %v5913
  %v6170 = vadd.f32 %v5658, %v5914
  %v6171 = vadd.f32 %v5659, %v5915
  %v6172 = vadd.f32 %v5660, %v5916
  %v6173 = vadd.f32 %v5661, %v5917
  %v6174 = vadd.f32 %v5662, %v5918
  %v6175 = vadd.f32 %v5663, %v5919
  %v6176 = vadd.f32 %v5664, %v5920
  %v6177 = vadd.f32 %v5665, %v5921
  %v6178 = vadd.f32 %v5666, %v5922
  %v6179 = vadd.f32 %v5667, %v5923
  %v6180 = vadd.f32 %v5668, %v5924
  %v6181 = vadd.f32 %v5669, %v5925
  %v6182 = vadd.f32 %v5670, %v5926
  %v6183 = vadd.f32 %v5671, %v5927
  %v6184 = vadd.f32 %v5672, %v5928
  %v6185 = vadd.f32 %v5673, %v5929
  %v6186 = vadd.f32 %v5674, %v5930
  %v6187 = vadd.f32 %v5675, %v5931
  %v6188 = vadd.f32 %v5676, %v5932
  %v6189 = vadd.f32 %v5677, %v5933
  %v6190 = vadd.f32 %v5678, %v5934
  %v6191 = vadd.f32 %v5679, %v5935
  %v6192 = vadd.f32 %v5680, %v5936
  %v6193 = vadd.f32 %v5681, %v5937
  %v6194 = vadd.f32 %v5682, %v5938
  %v6195 = vadd.f32 %v5683, %v5939
  %v6196 = vadd.f32 %v5684, %v5940
  %v6197 = vadd.f32 %v5685, %v5941
  %v6198 = vadd.f32 %v5686, %v5942
  %v6199 = vadd.f32 %v5687, %v5943
  %v6200 = vadd.f32 %v5688, %v5944
  %v6201 = vadd.f32 %v5689, %v5945
  %v6202 = vadd.f32 %v5690, %v5946
  %v6203 = vadd.f32 %v5691, %v5947
  %v6204 = vadd.f32 %v5692, %v5948
  %v6205 = vadd.f32 %v5693, %v5949
  %v6206 = vadd.f32 %v5694, %v5950
  %v6207 = vadd.f32 %v5695, %v5951
  %v6208 = vadd.f32 %v5696, %v5952
  %v6209 = vadd.f32 %v5697, %v5953
  %v6210 = vadd.f32 %v5698, %v5954
  %v6211 = vadd.f32 %v5699, %v5955
  %v6212 = vadd.f32 %v5700, %v5956
  %v6213 = vadd.f32 %v5701, %v5957
  %v6214 = vadd.f32 %v5702, %v5958
  %v6215 = vadd.f32 %v5703, %v5959
  %v6216 = vadd.f32 %v5704, %v5960
  %v6217 = vadd.f32 %v5705, %v5961
  %v6218 = vadd.f32 %v5706, %v5962
  %v6219 = vadd.f32 %v5707, %v5963
  %v6220 = vadd.f32 %v5708, %v5964
  %v6221 = vadd.f32 %v5709, %v5965
  %v6222 = vadd.f32 %v5710, %v5966
  %v6223 = vadd.f32 %v5711, %v5967
  %v6224 = vadd.f32 %v5712, %v5968
  %v6225 = vadd.f32 %v5713, %v5969
  %v6226 = vadd.f32 %v5714, %v5970
  %v6227 = vadd.f32 %v5715, %v5971
  %v6228 = vadd.f32 %v5716, %v5972
  %v6229 = vadd.f32 %v5717, %v5973
  %v6230 = vadd.f32 %v5718, %v5974
  %v6231 = vadd.f32 %v5719, %v5975
  %v6232 = vadd.f32 %v5720, %v5976
  %v6233 = vadd.f32 %v5721, %v5977
  %v6234 = vadd.f32 %v5722, %v5978
  %v6235 = vadd.f32 %v5723, %v5979
  %v6236 = vadd.f32 %v5724, %v5980
  %v6237 = vadd.f32 %v5725, %v5981
  %v6238 = vadd.f32 %v5726, %v5982
  %v6239 = vadd.f32 %v5727, %v5983
  %v6240 = vadd.f32 %v5728, %v5984
  %v6241 = vadd.f32 %v5729, %v5985
  %v6242 = vadd.f32 %v5730, %v5986
  %v6243 = vadd.f32 %v5731, %v5987
  %v6244 = vadd.f32 %v5732, %v5988
  %v6245 = vadd.f32 %v5733, %v5989
  %v6246 = vadd.f32 %v5734, %v5990
  %v6247 = vadd.f32 %v5735, %v5991
  %v6248 = vadd.f32 %v5736, %v5992
  %v6249 = vadd.f32 %v5737, %v5993
  %v6250 = vadd.f32 %v5738, %v5994
  %v6251 = vadd.f32 %v5739, %v5995
  %v6252 = vadd.f32 %v5740, %v5996
  %v6253 = vadd.f32 %v5741, %v5997
  %v6254 = vadd.f32 %v5742, %v5998
  %v6255 = vadd.f32 %v5743, %v5999
  %v6256 = vadd.f32 %v5744, %v6000
  %v6257 = vadd.f32 %v5745, %v6001
  %v6258 = vadd.f32 %v5746, %v6002
  %v6259 = vadd.f32 %v5747, %v6003
  %v6260 = vadd.f32 %v5748, %v6004
  %v6261 = vadd.f32 %v5749, %v6005
  %v6262 = vadd.f32 %v5750, %v6006
  %v6263 = vadd.f32 %v5751, %v6007
  %v6264 = vadd.f32 %v5752, %v6008
  %v6265 = vadd.f32 %v5753, %v6009
  %v6266 = vadd.f32 %v5754, %v6010
  %v6267 = vadd.f32 %v5755, %v6011
  %v6268 = vadd.f32 %v5756, %v6012
  %v6269 = vadd.f32 %v5757, %v6013
  %v6270 = vadd.f32 %v5758, %v6014
  %v6271 = vadd.f32 %v5759, %v6015
  %v6272 = vadd.f32 %v5760, %v6016
  %v6273 = vadd.f32 %v5761, %v6017
  %v6274 = vadd.f32 %v5762, %v6018
  %v6275 = vadd.f32 %v5763, %v6019
  %v6276 = vadd.f32 %v5764, %v6020
  %v6277 = vadd.f32 %v5765, %v6021
  %v6278 = vadd.f32 %v5766, %v6022
  %v6279 = vadd.f32 %v5767, %v6023
  %v6280 = vadd.f32 %v5768, %v6024
  %v6281 = vadd.f32 %v5769, %v6025
  %v6282 = vadd.f32 %v5770, %v6026
  %v6283 = vadd.f32 %v5771, %v6027
  %v6284 = vadd.f32 %v5772, %v6028
  %v6285 = vadd.f32 %v5773, %v6029
  %v6286 = vadd.f32 %v5774, %v6030
  %v6287 = vadd.f32 %v5775, %v6031
  %v6288 = vadd.f32 %v5776, %v6032
  %v6289 = vadd.f32 %v5777, %v6033
  %v6290 = vadd.f32 %v5778, %v6034
  %v6291 = vadd.f32 %v5779, %v6035
  %v6292 = vadd.f32 %v5780, %v6036
  %v6293 = vadd.f32 %v5781, %v6037
  %v6294 = vadd.f32 %v5782, %v6038
  %v6295 = vadd.f32 %v5783, %v6039
  %v6296 = vadd.f32 %v5784, %v6040
  %v6297 = vadd.f32 %v5785, %v6041
  %v6298 = vadd.f32 %v5786, %v6042
  %v6299 = vadd.f32 %v5787, %v6043
  %v6300 = vadd.f32 %v5788, %v6044
  %v6301 = vadd.f32 %v5789, %v6045
  %v6302 = vadd.f32 %v5790, %v6046
  %v6303 = vadd.f32 %v5791, %v6047
  %v6304 = vadd.f32 %v5792, %v6048
  %v6305 = vadd.f32 %v5793, %v6049
  %v6306 = vadd.f32 %v5794, %v6050
  %v6307 = vadd.f32 %v5795, %v6051
  %v6308 = vadd.f32 %v5796, %v6052
  %v6309 = vadd.f32 %v5797, %v6053
  %v6310 = vadd.f32 %v5798, %v6054
  %v6311 = vadd.f32 %v5799, %v6055
  %v6312 = vadd.f32 %v5800, %v6056
  %v6313 = vadd.f32 %v5801, %v6057
  %v6314 = vadd.f32 %v5802, %v6058
  %v6315 = vadd.f32 %v5803, %v6059
  %v6316 = vadd.f32 %v5804, %v6060
  %v6317 = vadd.f32 %v5805, %v6061
  %v6318 = vadd.f32 %v5806, %v6062
  %v6319 = vadd.f32 %v5807, %v6063
  %v6320 = vadd.f32 %v5808, %v6064
  %v6321 = vadd.f32 %v5809, %v6065
  %v6322 = vadd.f32 %v5810, %v6066
  %v6323 = vadd.f32 %v5811, %v6067
  %v6324 = vadd.f32 %v5812, %v6068
  %v6325 = vadd.f32 %v5813, %v6069
  %v6326 = vadd.f32 %v5814, %v6070
  %v6327 = vadd.f32 %v5815, %v6071
  %v6328 = vadd.f32 %v5816, %v6072
  %v6329 = vadd.f32 %v5817, %v6073
  %v6330 = vadd.f32 %v5818, %v6074
  %v6331 = vadd.f32 %v5819, %v6075
  %v6332 = vadd.f32 %v5820, %v6076
  %v6333 = vadd.f32 %v5821, %v6077
  %v6334 = vadd.f32 %v5822, %v6078
  %v6335 = vadd.f32 %v5823, %v6079
  %v6336 = vadd.f32 %v5824, %v6080
  %v6337 = vadd.f32 %v5825, %v6081
  %v6338 = vadd.f32 %v5826, %v6082
  %v6339 = vadd.f32 %v5827, %v6083
  %v6340 = vadd.f32 %v5828, %v6084
  %v6341 = vadd.f32 %v5829, %v6085
  %v6342 = vadd.f32 %v5830, %v6086
  %v6343 = vadd.f32 %v5831, %v6087
  %v6344 = vadd.f32 %v5832, %v6088
  %v6345 = vadd.f32 %v5833, %v6089
  %v6346 = vadd.f32 %v5834, %v6090
  %v6347 = vadd.f32 %v5835, %v6091
  %v6348 = vadd.f32 %v5836, %v6092
  %v6349 = vadd.f32 %v5837, %v6093
  %v6350 = vadd.f32 %v5838, %v6094
  %v6351 = vadd.f32 %v5839, %v6095
  %v6352 = vadd.f32 %v5840, %v6096
  %v6353 = vadd.f32 %v5841, %v6097
  %v6354 = vadd.f32 %v5842, %v6098
  %v6355 = vadd.f32 %v5843, %v6099
  %v6356 = vadd.f32 %v5844, %v6100
  %v6357 = vadd.f32 %v5845, %v6101
  %v6358 = vadd.f32 %v5846, %v6102
  %v6359 = vadd.f32 %v5847, %v6103
  %v6360 = vadd.f32 %v5848, %v6104
  %v6361 = vadd.f32 %v5849, %v6105
  %v6362 = vadd.f32 %v5850, %v6106
  %v6363 = vadd.f32 %v5851, %v6107
  %v6364 = vadd.f32 %v5852, %v6108
  %v6365 = vadd.f32 %v5853, %v6109
  %v6366 = vadd.f32 %v5854, %v6110
  %v6367 = vadd.f32 %v5855, %v6111
  %v6368 = vadd.f32 %v5856, %v6112
  %v6369 = vadd.f32 %v5857, %v6113
  %v6370 = vadd.f32 %v5858, %v6114
  %v6371 = vadd.f32 %v5859, %v6115
  %v6372 = vadd.f32 %v5860, %v6116
  %v6373 = vadd.f32 %v5861, %v6117
  %v6374 = vadd.f32 %v5862, %v6118
  %v6375 = vadd.f32 %v5863, %v6119
  %v6376 = vadd.f32 %v5864, %v6120
  %v6377 = vadd.f32 %v5865, %v6121
  %v6378 = vadd.f32 %v5866, %v6122
  %v6379 = vadd.f32 %v5867, %v6123
  %v6380 = vadd.f32 %v5868, %v6124
  %v6381 = vadd.f32 %v5869, %v6125
  %v6382 = vadd.f32 %v5870, %v6126
  %v6383 = vadd.f32 %v5871, %v6127
  %v6384 = vadd.f32 %v5872, %v6128
  %v6385 = vadd.f32 %v5873, %v6129
  %v6386 = vadd.f32 %v5874, %v6130
  %v6387 = vadd.f32 %v5875, %v6131
  %v6388 = vadd.f32 %v5876, %v6132
  %v6389 = vadd.f32 %v5877, %v6133
  %v6390 = vadd.f32 %v5878, %v6134
  %v6391 = vadd.f32 %v5879, %v6135
  %v6392 = vadd.f32 %v5880, %v6136
  %v6393 = vadd.f32 %v5881, %v6137
  %v6394 = vadd.f32 %v5882, %v6138
  %v6395 = vadd.f32 %v5883, %v6139
  %v6396 = vadd.f32 %v5884, %v6140
  %v6397 = vadd.f32 %v5885, %v6141
  %v6398 = vadd.f32 %v5886, %v6142
  %v6399 = vadd.f32 %v5887, %v6143
  %v6400 = vadd.f32 %v5888, %v6144
  %v6401 = vadd.f32 %v5889, %v6145
  %v6402 = vadd.f32 %v5890, %v6146
  %v6403 = vadd.f32 %v5891, %v6147
  %v6404 = vadd.f32 %v5892, %v6148
  %v6405 = vadd.f32 %v5893, %v6149
  %v6406 = vadd.f32 %v5894, %v6150
  %v6407 = vadd.f32 %v5895, %v6151
  %v6408 = vadd.f32 %v5896, %v6152
  %v6409 = vadd.f32 %v5897, %v6153
  %v6410 = vadd.f32 %v5898, %v6154
  %v6411 = vadd.f32 %v5899, %v6155
  %v6412 = vadd.f32 %v5900, %v6156
  %v6413 = vadd.f32 %v5901, %v6157
  %v6414 = vadd.f32 %v5902, %v6158
  %v6415 = vadd.f32 %v5903, %v6159
  %v6416 = vadd.f32 %v5904, %v6160
  %v6417 = vadd.f32 %v5905, %v6161
  %v6418 = vadd.f32 %v5906, %v6162
  %v6419 = vadd.f32 %v5907, %v6163
  %v6420 = vadd.f32 %v5908, %v6164
  %6421 = vst [vmem:[%s4] sm:$0xff] %v6165
  %6422 = vst.msk [vmem:[%s4 + $0x8] sm:$0xff] %vm532, %v6166
  %6423 = vst [vmem:[%s4 + $0x10] sm:$0xff] %v6167
  %6424 = vst.msk [vmem:[%s4 + $0x18] sm:$0xff] %vm532, %v6168
  %6425 = vst [vmem:[%s4 + $0x20] sm:$0xff] %v6169
  %6426 = vst.msk [vmem:[%s4 + $0x28] sm:$0xff] %vm532, %v6170
  %6427 = vst [vmem:[%s4 + $0x30] sm:$0xff] %v6171
  %6428 = vst.msk [vmem:[%s4 + $0x38] sm:$0xff] %vm532, %v6172
  %6429 = vst [vmem:[%s4 + $0x40] sm:$0xff] %v6173
  %6430 = vst.msk [vmem:[%s4 + $0x48] sm:$0xff] %vm532, %v6174
  %6431 = vst [vmem:[%s4 + $0x50] sm:$0xff] %v6175
  %6432 = vst.msk [vmem:[%s4 + $0x58] sm:$0xff] %vm532, %v6176
  %6433 = vst [vmem:[%s4 + $0x60] sm:$0xff] %v6177
  %6434 = vst.msk [vmem:[%s4 + $0x68] sm:$0xff] %vm532, %v6178
  %6435 = vst [vmem:[%s4 + $0x70] sm:$0xff] %v6179
  %6436 = vst.msk [vmem:[%s4 + $0x78] sm:$0xff] %vm532, %v6180
  %6437 = vst [vmem:[%s4 + $0x80] sm:$0xff] %v6181
  %6438 = vst.msk [vmem:[%s4 + $0x88] sm:$0xff] %vm532, %v6182
  %6439 = vst [vmem:[%s4 + $0x90] sm:$0xff] %v6183
  %6440 = vst.msk [vmem:[%s4 + $0x98] sm:$0xff] %vm532, %v6184
  %6441 = vst [vmem:[%s4 + $0xa0] sm:$0xff] %v6185
  %6442 = vst.msk [vmem:[%s4 + $0xa8] sm:$0xff] %vm532, %v6186
  %6443 = vst [vmem:[%s4 + $0xb0] sm:$0xff] %v6187
  %6444 = vst.msk [vmem:[%s4 + $0xb8] sm:$0xff] %vm532, %v6188
  %6445 = vst [vmem:[%s4 + $0xc0] sm:$0xff] %v6189
  %6446 = vst.msk [vmem:[%s4 + $0xc8] sm:$0xff] %vm532, %v6190
  %6447 = vst [vmem:[%s4 + $0xd0] sm:$0xff] %v6191
  %6448 = vst.msk [vmem:[%s4 + $0xd8] sm:$0xff] %vm532, %v6192
  %6449 = vst [vmem:[%s4 + $0xe0] sm:$0xff] %v6193
  %6450 = vst.msk [vmem:[%s4 + $0xe8] sm:$0xff] %vm532, %v6194
  %6451 = vst [vmem:[%s4 + $0xf0] sm:$0xff] %v6195
  %6452 = vst.msk [vmem:[%s4 + $0xf8] sm:$0xff] %vm532, %v6196
  %6453 = vst [vmem:[%s4 + $0x100] sm:$0xff] %v6197
  %6454 = vst.msk [vmem:[%s4 + $0x108] sm:$0xff] %vm532, %v6198
  %6455 = vst [vmem:[%s4 + $0x110] sm:$0xff] %v6199
  %6456 = vst.msk [vmem:[%s4 + $0x118] sm:$0xff] %vm532, %v6200
  %6457 = vst [vmem:[%s4 + $0x120] sm:$0xff] %v6201
  %6458 = vst.msk [vmem:[%s4 + $0x128] sm:$0xff] %vm532, %v6202
  %6459 = vst [vmem:[%s4 + $0x130] sm:$0xff] %v6203
  %6460 = vst.msk [vmem:[%s4 + $0x138] sm:$0xff] %vm532, %v6204
  %6461 = vst [vmem:[%s4 + $0x140] sm:$0xff] %v6205
  %6462 = vst.msk [vmem:[%s4 + $0x148] sm:$0xff] %vm532, %v6206
  %6463 = vst [vmem:[%s4 + $0x150] sm:$0xff] %v6207
  %6464 = vst.msk [vmem:[%s4 + $0x158] sm:$0xff] %vm532, %v6208
  %6465 = vst [vmem:[%s4 + $0x160] sm:$0xff] %v6209
  %6466 = vst.msk [vmem:[%s4 + $0x168] sm:$0xff] %vm532, %v6210
  %6467 = vst [vmem:[%s4 + $0x170] sm:$0xff] %v6211
  %6468 = vst.msk [vmem:[%s4 + $0x178] sm:$0xff] %vm532, %v6212
  %6469 = vst [vmem:[%s4 + $0x180] sm:$0xff] %v6213
  %6470 = vst.msk [vmem:[%s4 + $0x188] sm:$0xff] %vm532, %v6214
  %6471 = vst [vmem:[%s4 + $0x190] sm:$0xff] %v6215
  %6472 = vst.msk [vmem:[%s4 + $0x198] sm:$0xff] %vm532, %v6216
  %6473 = vst [vmem:[%s4 + $0x1a0] sm:$0xff] %v6217
  %6474 = vst.msk [vmem:[%s4 + $0x1a8] sm:$0xff] %vm532, %v6218
  %6475 = vst [vmem:[%s4 + $0x1b0] sm:$0xff] %v6219
  %6476 = vst.msk [vmem:[%s4 + $0x1b8] sm:$0xff] %vm532, %v6220
  %6477 = vst [vmem:[%s4 + $0x1c0] sm:$0xff] %v6221
  %6478 = vst.msk [vmem:[%s4 + $0x1c8] sm:$0xff] %vm532, %v6222
  %6479 = vst [vmem:[%s4 + $0x1d0] sm:$0xff] %v6223
  %6480 = vst.msk [vmem:[%s4 + $0x1d8] sm:$0xff] %vm532, %v6224
  %6481 = vst [vmem:[%s4 + $0x1e0] sm:$0xff] %v6225
  %6482 = vst.msk [vmem:[%s4 + $0x1e8] sm:$0xff] %vm532, %v6226
  %6483 = vst [vmem:[%s4 + $0x1f0] sm:$0xff] %v6227
  %6484 = vst.msk [vmem:[%s4 + $0x1f8] sm:$0xff] %vm532, %v6228
  %6485 = vst [vmem:[%s4 + $0x200] sm:$0xff] %v6229
  %6486 = vst.msk [vmem:[%s4 + $0x208] sm:$0xff] %vm532, %v6230
  %6487 = vst [vmem:[%s4 + $0x210] sm:$0xff] %v6231
  %6488 = vst.msk [vmem:[%s4 + $0x218] sm:$0xff] %vm532, %v6232
  %6489 = vst [vmem:[%s4 + $0x220] sm:$0xff] %v6233
  %6490 = vst.msk [vmem:[%s4 + $0x228] sm:$0xff] %vm532, %v6234
  %6491 = vst [vmem:[%s4 + $0x230] sm:$0xff] %v6235
  %6492 = vst.msk [vmem:[%s4 + $0x238] sm:$0xff] %vm532, %v6236
  %6493 = vst [vmem:[%s4 + $0x240] sm:$0xff] %v6237
  %6494 = vst.msk [vmem:[%s4 + $0x248] sm:$0xff] %vm532, %v6238
  %6495 = vst [vmem:[%s4 + $0x250] sm:$0xff] %v6239
  %6496 = vst.msk [vmem:[%s4 + $0x258] sm:$0xff] %vm532, %v6240
  %6497 = vst [vmem:[%s4 + $0x260] sm:$0xff] %v6241
  %6498 = vst.msk [vmem:[%s4 + $0x268] sm:$0xff] %vm532, %v6242
  %6499 = vst [vmem:[%s4 + $0x270] sm:$0xff] %v6243
  %6500 = vst.msk [vmem:[%s4 + $0x278] sm:$0xff] %vm532, %v6244
  %6501 = vst [vmem:[%s4 + $0x280] sm:$0xff] %v6245
  %6502 = vst.msk [vmem:[%s4 + $0x288] sm:$0xff] %vm532, %v6246
  %6503 = vst [vmem:[%s4 + $0x290] sm:$0xff] %v6247
  %6504 = vst.msk [vmem:[%s4 + $0x298] sm:$0xff] %vm532, %v6248
  %6505 = vst [vmem:[%s4 + $0x2a0] sm:$0xff] %v6249
  %6506 = vst.msk [vmem:[%s4 + $0x2a8] sm:$0xff] %vm532, %v6250
  %6507 = vst [vmem:[%s4 + $0x2b0] sm:$0xff] %v6251
  %6508 = vst.msk [vmem:[%s4 + $0x2b8] sm:$0xff] %vm532, %v6252
  %6509 = vst [vmem:[%s4 + $0x2c0] sm:$0xff] %v6253
  %6510 = vst.msk [vmem:[%s4 + $0x2c8] sm:$0xff] %vm532, %v6254
  %6511 = vst [vmem:[%s4 + $0x2d0] sm:$0xff] %v6255
  %6512 = vst.msk [vmem:[%s4 + $0x2d8] sm:$0xff] %vm532, %v6256
  %6513 = vst [vmem:[%s4 + $0x2e0] sm:$0xff] %v6257
  %6514 = vst.msk [vmem:[%s4 + $0x2e8] sm:$0xff] %vm532, %v6258
  %6515 = vst [vmem:[%s4 + $0x2f0] sm:$0xff] %v6259
  %6516 = vst.msk [vmem:[%s4 + $0x2f8] sm:$0xff] %vm532, %v6260
  %6517 = vst [vmem:[%s4 + $0x300] sm:$0xff] %v6261
  %6518 = vst.msk [vmem:[%s4 + $0x308] sm:$0xff] %vm532, %v6262
  %6519 = vst [vmem:[%s4 + $0x310] sm:$0xff] %v6263
  %6520 = vst.msk [vmem:[%s4 + $0x318] sm:$0xff] %vm532, %v6264
  %6521 = vst [vmem:[%s4 + $0x320] sm:$0xff] %v6265
  %6522 = vst.msk [vmem:[%s4 + $0x328] sm:$0xff] %vm532, %v6266
  %6523 = vst [vmem:[%s4 + $0x330] sm:$0xff] %v6267
  %6524 = vst.msk [vmem:[%s4 + $0x338] sm:$0xff] %vm532, %v6268
  %6525 = vst [vmem:[%s4 + $0x340] sm:$0xff] %v6269
  %6526 = vst.msk [vmem:[%s4 + $0x348] sm:$0xff] %vm532, %v6270
  %6527 = vst [vmem:[%s4 + $0x350] sm:$0xff] %v6271
  %6528 = vst.msk [vmem:[%s4 + $0x358] sm:$0xff] %vm532, %v6272
  %6529 = vst [vmem:[%s4 + $0x360] sm:$0xff] %v6273
  %6530 = vst.msk [vmem:[%s4 + $0x368] sm:$0xff] %vm532, %v6274
  %6531 = vst [vmem:[%s4 + $0x370] sm:$0xff] %v6275
  %6532 = vst.msk [vmem:[%s4 + $0x378] sm:$0xff] %vm532, %v6276
  %6533 = vst [vmem:[%s4 + $0x380] sm:$0xff] %v6277
  %6534 = vst.msk [vmem:[%s4 + $0x388] sm:$0xff] %vm532, %v6278
  %6535 = vst [vmem:[%s4 + $0x390] sm:$0xff] %v6279
  %6536 = vst.msk [vmem:[%s4 + $0x398] sm:$0xff] %vm532, %v6280
  %6537 = vst [vmem:[%s4 + $0x3a0] sm:$0xff] %v6281
  %6538 = vst.msk [vmem:[%s4 + $0x3a8] sm:$0xff] %vm532, %v6282
  %6539 = vst [vmem:[%s4 + $0x3b0] sm:$0xff] %v6283
  %6540 = vst.msk [vmem:[%s4 + $0x3b8] sm:$0xff] %vm532, %v6284
  %6541 = vst [vmem:[%s4 + $0x3c0] sm:$0xff] %v6285
  %6542 = vst.msk [vmem:[%s4 + $0x3c8] sm:$0xff] %vm532, %v6286
  %6543 = vst [vmem:[%s4 + $0x3d0] sm:$0xff] %v6287
  %6544 = vst.msk [vmem:[%s4 + $0x3d8] sm:$0xff] %vm532, %v6288
  %6545 = vst [vmem:[%s4 + $0x3e0] sm:$0xff] %v6289
  %6546 = vst.msk [vmem:[%s4 + $0x3e8] sm:$0xff] %vm532, %v6290
  %6547 = vst [vmem:[%s4 + $0x3f0] sm:$0xff] %v6291
  %6548 = vst.msk [vmem:[%s4 + $0x3f8] sm:$0xff] %vm532, %v6292
  %6549 = vst [vmem:[%s4 + $0x400] sm:$0xff] %v6293
  %6550 = vst.msk [vmem:[%s4 + $0x408] sm:$0xff] %vm532, %v6294
  %6551 = vst [vmem:[%s4 + $0x410] sm:$0xff] %v6295
  %6552 = vst.msk [vmem:[%s4 + $0x418] sm:$0xff] %vm532, %v6296
  %6553 = vst [vmem:[%s4 + $0x420] sm:$0xff] %v6297
  %6554 = vst.msk [vmem:[%s4 + $0x428] sm:$0xff] %vm532, %v6298
  %6555 = vst [vmem:[%s4 + $0x430] sm:$0xff] %v6299
  %6556 = vst.msk [vmem:[%s4 + $0x438] sm:$0xff] %vm532, %v6300
  %6557 = vst [vmem:[%s4 + $0x440] sm:$0xff] %v6301
  %6558 = vst.msk [vmem:[%s4 + $0x448] sm:$0xff] %vm532, %v6302
  %6559 = vst [vmem:[%s4 + $0x450] sm:$0xff] %v6303
  %6560 = vst.msk [vmem:[%s4 + $0x458] sm:$0xff] %vm532, %v6304
  %6561 = vst [vmem:[%s4 + $0x460] sm:$0xff] %v6305
  %6562 = vst.msk [vmem:[%s4 + $0x468] sm:$0xff] %vm532, %v6306
  %6563 = vst [vmem:[%s4 + $0x470] sm:$0xff] %v6307
  %6564 = vst.msk [vmem:[%s4 + $0x478] sm:$0xff] %vm532, %v6308
  %6565 = vst [vmem:[%s4 + $0x480] sm:$0xff] %v6309
  %6566 = vst.msk [vmem:[%s4 + $0x488] sm:$0xff] %vm532, %v6310
  %6567 = vst [vmem:[%s4 + $0x490] sm:$0xff] %v6311
  %6568 = vst.msk [vmem:[%s4 + $0x498] sm:$0xff] %vm532, %v6312
  %6569 = vst [vmem:[%s4 + $0x4a0] sm:$0xff] %v6313
  %6570 = vst.msk [vmem:[%s4 + $0x4a8] sm:$0xff] %vm532, %v6314
  %6571 = vst [vmem:[%s4 + $0x4b0] sm:$0xff] %v6315
  %6572 = vst.msk [vmem:[%s4 + $0x4b8] sm:$0xff] %vm532, %v6316
  %6573 = vst [vmem:[%s4 + $0x4c0] sm:$0xff] %v6317
  %6574 = vst.msk [vmem:[%s4 + $0x4c8] sm:$0xff] %vm532, %v6318
  %6575 = vst [vmem:[%s4 + $0x4d0] sm:$0xff] %v6319
  %6576 = vst.msk [vmem:[%s4 + $0x4d8] sm:$0xff] %vm532, %v6320
  %6577 = vst [vmem:[%s4 + $0x4e0] sm:$0xff] %v6321
  %6578 = vst.msk [vmem:[%s4 + $0x4e8] sm:$0xff] %vm532, %v6322
  %6579 = vst [vmem:[%s4 + $0x4f0] sm:$0xff] %v6323
  %6580 = vst.msk [vmem:[%s4 + $0x4f8] sm:$0xff] %vm532, %v6324
  %6581 = vst [vmem:[%s4 + $0x500] sm:$0xff] %v6325
  %6582 = vst.msk [vmem:[%s4 + $0x508] sm:$0xff] %vm532, %v6326
  %6583 = vst [vmem:[%s4 + $0x510] sm:$0xff] %v6327
  %6584 = vst.msk [vmem:[%s4 + $0x518] sm:$0xff] %vm532, %v6328
  %6585 = vst [vmem:[%s4 + $0x520] sm:$0xff] %v6329
  %6586 = vst.msk [vmem:[%s4 + $0x528] sm:$0xff] %vm532, %v6330
  %6587 = vst [vmem:[%s4 + $0x530] sm:$0xff] %v6331
  %6588 = vst.msk [vmem:[%s4 + $0x538] sm:$0xff] %vm532, %v6332
  %6589 = vst [vmem:[%s4 + $0x540] sm:$0xff] %v6333
  %6590 = vst.msk [vmem:[%s4 + $0x548] sm:$0xff] %vm532, %v6334
  %6591 = vst [vmem:[%s4 + $0x550] sm:$0xff] %v6335
  %6592 = vst.msk [vmem:[%s4 + $0x558] sm:$0xff] %vm532, %v6336
  %6593 = vst [vmem:[%s4 + $0x560] sm:$0xff] %v6337
  %6594 = vst.msk [vmem:[%s4 + $0x568] sm:$0xff] %vm532, %v6338
  %6595 = vst [vmem:[%s4 + $0x570] sm:$0xff] %v6339
  %6596 = vst.msk [vmem:[%s4 + $0x578] sm:$0xff] %vm532, %v6340
  %6597 = vst [vmem:[%s4 + $0x580] sm:$0xff] %v6341
  %6598 = vst.msk [vmem:[%s4 + $0x588] sm:$0xff] %vm532, %v6342
  %6599 = vst [vmem:[%s4 + $0x590] sm:$0xff] %v6343
  %6600 = vst.msk [vmem:[%s4 + $0x598] sm:$0xff] %vm532, %v6344
  %6601 = vst [vmem:[%s4 + $0x5a0] sm:$0xff] %v6345
  %6602 = vst.msk [vmem:[%s4 + $0x5a8] sm:$0xff] %vm532, %v6346
  %6603 = vst [vmem:[%s4 + $0x5b0] sm:$0xff] %v6347
  %6604 = vst.msk [vmem:[%s4 + $0x5b8] sm:$0xff] %vm532, %v6348
  %6605 = vst [vmem:[%s4 + $0x5c0] sm:$0xff] %v6349
  %6606 = vst.msk [vmem:[%s4 + $0x5c8] sm:$0xff] %vm532, %v6350
  %6607 = vst [vmem:[%s4 + $0x5d0] sm:$0xff] %v6351
  %6608 = vst.msk [vmem:[%s4 + $0x5d8] sm:$0xff] %vm532, %v6352
  %6609 = vst [vmem:[%s4 + $0x5e0] sm:$0xff] %v6353
  %6610 = vst.msk [vmem:[%s4 + $0x5e8] sm:$0xff] %vm532, %v6354
  %6611 = vst [vmem:[%s4 + $0x5f0] sm:$0xff] %v6355
  %6612 = vst.msk [vmem:[%s4 + $0x5f8] sm:$0xff] %vm532, %v6356
  %6613 = vst [vmem:[%s4 + $0x600] sm:$0xff] %v6357
  %6614 = vst.msk [vmem:[%s4 + $0x608] sm:$0xff] %vm532, %v6358
  %6615 = vst [vmem:[%s4 + $0x610] sm:$0xff] %v6359
  %6616 = vst.msk [vmem:[%s4 + $0x618] sm:$0xff] %vm532, %v6360
  %6617 = vst [vmem:[%s4 + $0x620] sm:$0xff] %v6361
  %6618 = vst.msk [vmem:[%s4 + $0x628] sm:$0xff] %vm532, %v6362
  %6619 = vst [vmem:[%s4 + $0x630] sm:$0xff] %v6363
  %6620 = vst.msk [vmem:[%s4 + $0x638] sm:$0xff] %vm532, %v6364
  %6621 = vst [vmem:[%s4 + $0x640] sm:$0xff] %v6365
  %6622 = vst.msk [vmem:[%s4 + $0x648] sm:$0xff] %vm532, %v6366
  %6623 = vst [vmem:[%s4 + $0x650] sm:$0xff] %v6367
  %6624 = vst.msk [vmem:[%s4 + $0x658] sm:$0xff] %vm532, %v6368
  %6625 = vst [vmem:[%s4 + $0x660] sm:$0xff] %v6369
  %6626 = vst.msk [vmem:[%s4 + $0x668] sm:$0xff] %vm532, %v6370
  %6627 = vst [vmem:[%s4 + $0x670] sm:$0xff] %v6371
  %6628 = vst.msk [vmem:[%s4 + $0x678] sm:$0xff] %vm532, %v6372
  %6629 = vst [vmem:[%s4 + $0x680] sm:$0xff] %v6373
  %6630 = vst.msk [vmem:[%s4 + $0x688] sm:$0xff] %vm532, %v6374
  %6631 = vst [vmem:[%s4 + $0x690] sm:$0xff] %v6375
  %6632 = vst.msk [vmem:[%s4 + $0x698] sm:$0xff] %vm532, %v6376
  %6633 = vst [vmem:[%s4 + $0x6a0] sm:$0xff] %v6377
  %6634 = vst.msk [vmem:[%s4 + $0x6a8] sm:$0xff] %vm532, %v6378
  %6635 = vst [vmem:[%s4 + $0x6b0] sm:$0xff] %v6379
  %6636 = vst.msk [vmem:[%s4 + $0x6b8] sm:$0xff] %vm532, %v6380
  %6637 = vst [vmem:[%s4 + $0x6c0] sm:$0xff] %v6381
  %6638 = vst.msk [vmem:[%s4 + $0x6c8] sm:$0xff] %vm532, %v6382
  %6639 = vst [vmem:[%s4 + $0x6d0] sm:$0xff] %v6383
  %6640 = vst.msk [vmem:[%s4 + $0x6d8] sm:$0xff] %vm532, %v6384
  %6641 = vst [vmem:[%s4 + $0x6e0] sm:$0xff] %v6385
  %6642 = vst.msk [vmem:[%s4 + $0x6e8] sm:$0xff] %vm532, %v6386
  %6643 = vst [vmem:[%s4 + $0x6f0] sm:$0xff] %v6387
  %6644 = vst.msk [vmem:[%s4 + $0x6f8] sm:$0xff] %vm532, %v6388
  %6645 = vst [vmem:[%s4 + $0x700] sm:$0xff] %v6389
  %6646 = vst.msk [vmem:[%s4 + $0x708] sm:$0xff] %vm532, %v6390
  %6647 = vst [vmem:[%s4 + $0x710] sm:$0xff] %v6391
  %6648 = vst.msk [vmem:[%s4 + $0x718] sm:$0xff] %vm532, %v6392
  %6649 = vst [vmem:[%s4 + $0x720] sm:$0xff] %v6393
  %6650 = vst.msk [vmem:[%s4 + $0x728] sm:$0xff] %vm532, %v6394
  %6651 = vst [vmem:[%s4 + $0x730] sm:$0xff] %v6395
  %6652 = vst.msk [vmem:[%s4 + $0x738] sm:$0xff] %vm532, %v6396
  %6653 = vst [vmem:[%s4 + $0x740] sm:$0xff] %v6397
  %6654 = vst.msk [vmem:[%s4 + $0x748] sm:$0xff] %vm532, %v6398
  %6655 = vst [vmem:[%s4 + $0x750] sm:$0xff] %v6399
  %6656 = vst.msk [vmem:[%s4 + $0x758] sm:$0xff] %vm532, %v6400
  %6657 = vst [vmem:[%s4 + $0x760] sm:$0xff] %v6401
  %6658 = vst.msk [vmem:[%s4 + $0x768] sm:$0xff] %vm532, %v6402
  %6659 = vst [vmem:[%s4 + $0x770] sm:$0xff] %v6403
  %6660 = vst.msk [vmem:[%s4 + $0x778] sm:$0xff] %vm532, %v6404
  %6661 = vst [vmem:[%s4 + $0x780] sm:$0xff] %v6405
  %6662 = vst.msk [vmem:[%s4 + $0x788] sm:$0xff] %vm532, %v6406
  %6663 = vst [vmem:[%s4 + $0x790] sm:$0xff] %v6407
  %6664 = vst.msk [vmem:[%s4 + $0x798] sm:$0xff] %vm532, %v6408
  %6665 = vst [vmem:[%s4 + $0x7a0] sm:$0xff] %v6409
  %6666 = vst.msk [vmem:[%s4 + $0x7a8] sm:$0xff] %vm532, %v6410
  %6667 = vst [vmem:[%s4 + $0x7b0] sm:$0xff] %v6411
  %6668 = vst.msk [vmem:[%s4 + $0x7b8] sm:$0xff] %vm532, %v6412
  %6669 = vst [vmem:[%s4 + $0x7c0] sm:$0xff] %v6413
  %6670 = vst.msk [vmem:[%s4 + $0x7c8] sm:$0xff] %vm532, %v6414
  %6671 = vst [vmem:[%s4 + $0x7d0] sm:$0xff] %v6415
  %6672 = vst.msk [vmem:[%s4 + $0x7d8] sm:$0xff] %vm532, %v6416
  %6673 = vst [vmem:[%s4 + $0x7e0] sm:$0xff] %v6417
  %6674 = vst.msk [vmem:[%s4 + $0x7e8] sm:$0xff] %vm532, %v6418
  %6675 = vst [vmem:[%s4 + $0x7f0] sm:$0xff] %v6419
  %6676 = vst.msk [vmem:[%s4 + $0x7f8] sm:$0xff] %vm532, %v6420
  // Predicated region
  $region18: #{tpu_custom_call.1} parent=0 // pred_check
    _
  $region19: #{tpu_custom_call.1} parent=0 // pred_check_branch
    %6678 = sbr.rel (0) target = $region21
  $region20: #{tpu_custom_call.1} parent=0 // pred_region
    _
  $region21: #{tpu_custom_call.1} parent=0 // pred_fallthru
    _
  // Predicated region
  $region22: #{tpu_custom_call.1} parent=0 // pred_check
    _
  $region23: #{tpu_custom_call.1} parent=0 // pred_check_branch
    %6680 = sbr.rel (0) target = $region25
  $region24: #{tpu_custom_call.1} parent=0 // pred_region
    _
  $region25: #{tpu_custom_call.1} parent=0 // pred_fallthru
    _

</llo_original>
